<compile_context>
chip_gen: v5e
topology: v5e:2x2
jax: 0.10.0
libtpu: 0.0.40
codegen_flags: <defaults>
</compile_context>

<pallas_src>
import functools

import jax
import jax.numpy as jnp
from jax.experimental import pallas as pl
from jax.experimental.pallas import tpu as pltpu

BETA = 0.9
THRESH = 1.0
NUM_INPUTS = 28 * 28          # 784
NUM_OUTPUTS = 10
POPULATION = 80
OUT_DIM = NUM_OUTPUTS * POPULATION   # 800
NUM_STEPS = 15
H_LAYERS = 128

LANE = 128


def _round_up(x, m):
    return (x + m - 1) // m * m


def popnet_kernel(x_ref, w1_ref, b1_ref, w2_ref, b2_ref,
                  spk_out_ref, mem_out_ref,
                  spk1_buf_ref, cur2_buf_ref,
                  *, num_steps):
    B = x_ref.shape[0]
    H = w1_ref.shape[1]
    nout = w2_ref.shape[1]            # lane-padded output width (multiple of 128)
    m_pad = spk1_buf_ref.shape[0]     # num_steps*B rounded up to a multiple of 8

    # ---- fc1 once: x does not change across time steps ----
    cur1 = (jnp.dot(x_ref[...], w1_ref[...],
                    preferred_element_type=jnp.float32)
            + jnp.broadcast_to(b1_ref[...], (B, H)))

    # Defined data in any pad rows of the spike buffer (unused rows of fc2 out).
    if m_pad > num_steps * B:
        spk1_buf_ref[num_steps * B:, :] = jnp.zeros(
            (m_pad - num_steps * B, H), jnp.float32)

    # ---- layer-1 LIF recurrence, fully unrolled (VPU only, state in vregs) ----
    # reset_t == spk_{t-1}: both are (mem_{t-1} > thr) and mem starts at 0.
    mem1 = jnp.zeros((B, H), jnp.float32)
    spk1 = jnp.zeros((B, H), jnp.float32)
    for step in range(num_steps):
        mem1 = BETA * mem1 + cur1 - spk1 * THRESH
        spk1 = (mem1 > THRESH).astype(jnp.float32)
        spk1_buf_ref[step * B:(step + 1) * B, :] = spk1   # static, aligned slice

    # ---- fc2 for all time steps: one big MXU matmul + one bias add ----
    cur2_buf_ref[...] = (
        jnp.dot(spk1_buf_ref[...], w2_ref[...],
                preferred_element_type=jnp.float32)
        + jnp.broadcast_to(b2_ref[...], (m_pad, nout)))

    # ---- layer-2 LIF recurrence + per-step output writes (unrolled) ----
    mem2 = jnp.zeros((B, nout), jnp.float32)
    spk2 = jnp.zeros((B, nout), jnp.float32)
    for step in range(num_steps):
        cur2 = cur2_buf_ref[step * B:(step + 1) * B, :]
        mem2 = BETA * mem2 + cur2 - spk2 * THRESH
        spk2 = (mem2 > THRESH).astype(jnp.float32)
        spk_out_ref[step] = spk2
        mem_out_ref[step] = mem2


def popnet_forward(x, w1, b1, w2, b2, *, num_steps=NUM_STEPS):
    B, nin = x.shape
    H = w1.shape[1]
    nout = w2.shape[1]

    # Lane-pad the 800-wide output dim to a multiple of 128 (896) so all
    # per-step LIF ops / stores are unmasked; sliced back after the call.
    nout_pad = _round_up(nout, LANE)
    w2_p = jnp.pad(w2, ((0, 0), (0, nout_pad - nout)))
    b2_p = jnp.pad(b2, (0, nout_pad - nout)).reshape(1, nout_pad)
    b1_2d = b1.reshape(1, H)

    BM = B                                   # small batch -> one batch tile
    m_pad = _round_up(num_steps * BM, 8)     # rows of the batched-fc2 matmul

    kernel = functools.partial(popnet_kernel, num_steps=num_steps)

    spk_rec, mem_rec = pl.pallas_call(
        kernel,
        out_shape=(
            jax.ShapeDtypeStruct((num_steps, B, nout_pad), jnp.float32),
            jax.ShapeDtypeStruct((num_steps, B, nout_pad), jnp.float32),
        ),
        grid_spec=pltpu.PrefetchScalarGridSpec(
            num_scalar_prefetch=0,
            grid=(pl.cdiv(B, BM),),
            in_specs=[
                pl.BlockSpec((BM, nin), lambda i: (i, 0)),        # x
                pl.BlockSpec((nin, H), lambda i: (0, 0)),         # W1
                pl.BlockSpec((1, H), lambda i: (0, 0)),           # b1
                pl.BlockSpec((H, nout_pad), lambda i: (0, 0)),    # W2 (padded)
                pl.BlockSpec((1, nout_pad), lambda i: (0, 0)),    # b2 (padded)
            ],
            out_specs=[
                pl.BlockSpec((num_steps, BM, nout_pad), lambda i: (0, i, 0)),
                pl.BlockSpec((num_steps, BM, nout_pad), lambda i: (0, i, 0)),
            ],
            scratch_shapes=[
                pltpu.VMEM((m_pad, H), jnp.float32),         # stacked spk1 (all steps)
                pltpu.VMEM((m_pad, nout_pad), jnp.float32),  # batched fc2 output
            ],
        ),
        compiler_params=pltpu.CompilerParams(
            dimension_semantics=("parallel",),
        ),
    )(x, w1, b1_2d, w2_p, b2_p)

    # TODO(synk): weights kept in f32 (bf16 MXU path would drift past the 1e-4
    # mem_rec tolerance vs the f32 reference).
    return spk_rec[..., :nout], mem_rec[..., :nout]


def popnet_reference(x, w1, b1, w2, b2, *, num_steps=NUM_STEPS):
    """Pure-JAX reference mirroring the PyTorch forward."""
    B = x.shape[0]
    mem1 = jnp.zeros((B, w1.shape[1]), jnp.float32)
    mem2 = jnp.zeros((B, w2.shape[1]), jnp.float32)
    cur1 = x @ w1 + b1
    spk_rec, mem_rec = [], []
    for _ in range(num_steps):
        reset1 = (mem1 > THRESH).astype(jnp.float32)
        mem1 = BETA * mem1 + cur1 - reset1 * THRESH
        spk1 = (mem1 > THRESH).astype(jnp.float32)
        cur2 = spk1 @ w2 + b2
        reset2 = (mem2 > THRESH).astype(jnp.float32)
        mem2 = BETA * mem2 + cur2 - reset2 * THRESH
        spk2 = (mem2 > THRESH).astype(jnp.float32)
        spk_rec.append(spk2)
        mem_rec.append(mem2)
    return jnp.stack(spk_rec, 0), jnp.stack(mem_rec, 0)


if __name__ == "__main__":
    key = jax.random.PRNGKey(0)
    k_x, k_w1, k_b1, k_w2, k_b2 = jax.random.split(key, 5)

    B = 8  # small batch

    # Deterministic parameter init (PyTorch Linear-style uniform +/- 1/sqrt(fan_in)).
    lim1 = 1.0 / jnp.sqrt(jnp.float32(NUM_INPUTS))
    lim2 = 1.0 / jnp.sqrt(jnp.float32(H_LAYERS))
    w1 = jax.random.uniform(k_w1, (NUM_INPUTS, H_LAYERS), jnp.float32, -lim1, lim1)
    b1 = jax.random.uniform(k_b1, (H_LAYERS,), jnp.float32, -lim1, lim1)
    w2 = jax.random.uniform(k_w2, (H_LAYERS, OUT_DIM), jnp.float32, -lim2, lim2)
    b2 = jax.random.uniform(k_b2, (OUT_DIM,), jnp.float32, -lim2, lim2)

    # Input: flattened MNIST-like image batch, scaled so some neurons spike.
    x = jax.random.uniform(k_x, (B, NUM_INPUTS), jnp.float32, 0.0, 1.0)

    spk_rec, mem_rec = popnet_forward(x, w1, b1, w2, b2)
    jax.block_until_ready((spk_rec, mem_rec))

    assert spk_rec.shape == (NUM_STEPS, B, OUT_DIM)
    assert mem_rec.shape == (NUM_STEPS, B, OUT_DIM)

    # Sanity check against pure-JAX reference (both spikes and membrane).
    spk_ref, mem_ref = popnet_reference(x, w1, b1, w2, b2)
    assert jnp.allclose(mem_rec, mem_ref, atol=1e-4, rtol=1e-4)
    assert jnp.allclose(spk_rec, spk_ref, atol=1e-4, rtol=1e-4)

    print("KERNEL_OK")
</pallas_src>

<mosaic_0001>
module attributes {stable_mosaic.version = 11 : i64} {
  func.func @popnet_kernel(%arg0: i32, %arg1: memref<8x784xf32, #tpu.memory_space<vmem>>, %arg2: memref<784x128xf32, #tpu.memory_space<vmem>>, %arg3: memref<1x128xf32, #tpu.memory_space<vmem>>, %arg4: memref<128x896xf32, #tpu.memory_space<vmem>>, %arg5: memref<1x896xf32, #tpu.memory_space<vmem>>, %arg6: memref<15x8x896xf32, #tpu.memory_space<vmem>>, %arg7: memref<15x8x896xf32, #tpu.memory_space<vmem>>, %arg8: memref<120x128xf32, #tpu.memory_space<vmem>>, %arg9: memref<120x896xf32, #tpu.memory_space<vmem>>) attributes {dimension_semantics = [#tpu.dimension_semantics<parallel>], iteration_bounds = array<i64: 1>, scalar_prefetch = 0 : i64, scratch_operands = 2 : i64, tpu.core_type = #tpu.core_type<tc>, window_params = [{transform_indices = @transform_0, window_bounds = array<i64: 8, 784>}, {pipeline_mode = #tpu.pipeline_mode<synchronous>, transform_indices = @transform_1, window_bounds = array<i64: 784, 128>}, {pipeline_mode = #tpu.pipeline_mode<synchronous>, transform_indices = @transform_2, window_bounds = array<i64: 1, 128>}, {pipeline_mode = #tpu.pipeline_mode<synchronous>, transform_indices = @transform_3, window_bounds = array<i64: 128, 896>}, {pipeline_mode = #tpu.pipeline_mode<synchronous>, transform_indices = @transform_4, window_bounds = array<i64: 1, 896>}, {transform_indices = @transform_5, window_bounds = array<i64: 15, 8, 896>}, {transform_indices = @transform_6, window_bounds = array<i64: 15, 8, 896>}]} {
    %c0 = arith.constant 0 : index
    %c0_0 = arith.constant 0 : index
    %0 = vector.load %arg1[%c0, %c0_0] : memref<8x784xf32, #tpu.memory_space<vmem>>, vector<8x784xf32>
    %c0_1 = arith.constant 0 : index
    %c0_2 = arith.constant 0 : index
    %1 = vector.load %arg2[%c0_1, %c0_2] : memref<784x128xf32, #tpu.memory_space<vmem>>, vector<784x128xf32>
    %cst = arith.constant dense<0.000000e+00> : vector<8x128xf32>
    %2 = tpu.matmul %0, %1, %cst {dimension_numbers = #tpu.dot_dimension_numbers<[1], [0], [0], [1], [0, 0, 1, 1], [], []>} : vector<8x784xf32>, vector<784x128xf32>, vector<8x128xf32> -> vector<8x128xf32>
    %c0_3 = arith.constant 0 : index
    %c0_4 = arith.constant 0 : index
    %3 = vector.load %arg3[%c0_3, %c0_4] : memref<1x128xf32, #tpu.memory_space<vmem>>, vector<1x128xf32>
    %4 = vector.shape_cast %3 : vector<1x128xf32> to vector<1x128xf32>
    %5 = vector.broadcast %4 : vector<1x128xf32> to vector<8x128xf32>
    %6 = arith.addf %2, %5 : vector<8x128xf32>
    %cst_5 = arith.constant 0.000000e+00 : f32
    %7 = vector.broadcast %cst_5 : f32 to vector<8x128xf32>
    %cst_6 = arith.constant 0.000000e+00 : f32
    %8 = vector.broadcast %cst_6 : f32 to vector<8x128xf32>
    %cst_7 = arith.constant 0.899999976 : f32
    %9 = vector.broadcast %cst_7 : f32 to vector<8x128xf32>
    %10 = arith.mulf %9, %7 : vector<8x128xf32>
    %11 = arith.addf %10, %6 : vector<8x128xf32>
    %cst_8 = arith.constant 1.000000e+00 : f32
    %12 = vector.broadcast %cst_8 : f32 to vector<8x128xf32>
    %13 = arith.mulf %8, %12 : vector<8x128xf32>
    %14 = arith.subf %11, %13 : vector<8x128xf32>
    %cst_9 = arith.constant 1.000000e+00 : f32
    %15 = vector.broadcast %cst_9 : f32 to vector<8x128xf32>
    %16 = arith.cmpf ogt, %14, %15 : vector<8x128xf32>
    %17 = arith.extui %16 : vector<8x128xi1> to vector<8x128xi32>
    %18 = arith.sitofp %17 : vector<8x128xi32> to vector<8x128xf32>
    %c0_10 = arith.constant 0 : index
    %c0_11 = arith.constant 0 : index
    %19 = vector.load %arg8[%c0_10, %c0_11] : memref<120x128xf32, #tpu.memory_space<vmem>>, vector<8x128xf32>
    tpu.vector_store %arg8[%c0_10, %c0_11], %18 {strides = array<i32>} : memref<120x128xf32, #tpu.memory_space<vmem>>, vector<8x128xf32>,
    %cst_12 = arith.constant 0.899999976 : f32
    %20 = vector.broadcast %cst_12 : f32 to vector<8x128xf32>
    %21 = arith.mulf %20, %14 : vector<8x128xf32>
    %22 = arith.addf %21, %6 : vector<8x128xf32>
    %cst_13 = arith.constant 1.000000e+00 : f32
    %23 = vector.broadcast %cst_13 : f32 to vector<8x128xf32>
    %24 = arith.mulf %18, %23 : vector<8x128xf32>
    %25 = arith.subf %22, %24 : vector<8x128xf32>
    %cst_14 = arith.constant 1.000000e+00 : f32
    %26 = vector.broadcast %cst_14 : f32 to vector<8x128xf32>
    %27 = arith.cmpf ogt, %25, %26 : vector<8x128xf32>
    %28 = arith.extui %27 : vector<8x128xi1> to vector<8x128xi32>
    %29 = arith.sitofp %28 : vector<8x128xi32> to vector<8x128xf32>
    %c8 = arith.constant 8 : index
    %c0_15 = arith.constant 0 : index
    %30 = vector.load %arg8[%c8, %c0_15] : memref<120x128xf32, #tpu.memory_space<vmem>>, vector<8x128xf32>
    tpu.vector_store %arg8[%c8, %c0_15], %29 {strides = array<i32>} : memref<120x128xf32, #tpu.memory_space<vmem>>, vector<8x128xf32>,
    %cst_16 = arith.constant 0.899999976 : f32
    %31 = vector.broadcast %cst_16 : f32 to vector<8x128xf32>
    %32 = arith.mulf %31, %25 : vector<8x128xf32>
    %33 = arith.addf %32, %6 : vector<8x128xf32>
    %cst_17 = arith.constant 1.000000e+00 : f32
    %34 = vector.broadcast %cst_17 : f32 to vector<8x128xf32>
    %35 = arith.mulf %29, %34 : vector<8x128xf32>
    %36 = arith.subf %33, %35 : vector<8x128xf32>
    %cst_18 = arith.constant 1.000000e+00 : f32
    %37 = vector.broadcast %cst_18 : f32 to vector<8x128xf32>
    %38 = arith.cmpf ogt, %36, %37 : vector<8x128xf32>
    %39 = arith.extui %38 : vector<8x128xi1> to vector<8x128xi32>
    %40 = arith.sitofp %39 : vector<8x128xi32> to vector<8x128xf32>
    %c16 = arith.constant 16 : index
    %c0_19 = arith.constant 0 : index
    %41 = vector.load %arg8[%c16, %c0_19] : memref<120x128xf32, #tpu.memory_space<vmem>>, vector<8x128xf32>
    tpu.vector_store %arg8[%c16, %c0_19], %40 {strides = array<i32>} : memref<120x128xf32, #tpu.memory_space<vmem>>, vector<8x128xf32>,
    %cst_20 = arith.constant 0.899999976 : f32
    %42 = vector.broadcast %cst_20 : f32 to vector<8x128xf32>
    %43 = arith.mulf %42, %36 : vector<8x128xf32>
    %44 = arith.addf %43, %6 : vector<8x128xf32>
    %cst_21 = arith.constant 1.000000e+00 : f32
    %45 = vector.broadcast %cst_21 : f32 to vector<8x128xf32>
    %46 = arith.mulf %40, %45 : vector<8x128xf32>
    %47 = arith.subf %44, %46 : vector<8x128xf32>
    %cst_22 = arith.constant 1.000000e+00 : f32
    %48 = vector.broadcast %cst_22 : f32 to vector<8x128xf32>
    %49 = arith.cmpf ogt, %47, %48 : vector<8x128xf32>
    %50 = arith.extui %49 : vector<8x128xi1> to vector<8x128xi32>
    %51 = arith.sitofp %50 : vector<8x128xi32> to vector<8x128xf32>
    %c24 = arith.constant 24 : index
    %c0_23 = arith.constant 0 : index
    %52 = vector.load %arg8[%c24, %c0_23] : memref<120x128xf32, #tpu.memory_space<vmem>>, vector<8x128xf32>
    tpu.vector_store %arg8[%c24, %c0_23], %51 {strides = array<i32>} : memref<120x128xf32, #tpu.memory_space<vmem>>, vector<8x128xf32>,
    %cst_24 = arith.constant 0.899999976 : f32
    %53 = vector.broadcast %cst_24 : f32 to vector<8x128xf32>
    %54 = arith.mulf %53, %47 : vector<8x128xf32>
    %55 = arith.addf %54, %6 : vector<8x128xf32>
    %cst_25 = arith.constant 1.000000e+00 : f32
    %56 = vector.broadcast %cst_25 : f32 to vector<8x128xf32>
    %57 = arith.mulf %51, %56 : vector<8x128xf32>
    %58 = arith.subf %55, %57 : vector<8x128xf32>
    %cst_26 = arith.constant 1.000000e+00 : f32
    %59 = vector.broadcast %cst_26 : f32 to vector<8x128xf32>
    %60 = arith.cmpf ogt, %58, %59 : vector<8x128xf32>
    %61 = arith.extui %60 : vector<8x128xi1> to vector<8x128xi32>
    %62 = arith.sitofp %61 : vector<8x128xi32> to vector<8x128xf32>
    %c32 = arith.constant 32 : index
    %c0_27 = arith.constant 0 : index
    %63 = vector.load %arg8[%c32, %c0_27] : memref<120x128xf32, #tpu.memory_space<vmem>>, vector<8x128xf32>
    tpu.vector_store %arg8[%c32, %c0_27], %62 {strides = array<i32>} : memref<120x128xf32, #tpu.memory_space<vmem>>, vector<8x128xf32>,
    %cst_28 = arith.constant 0.899999976 : f32
    %64 = vector.broadcast %cst_28 : f32 to vector<8x128xf32>
    %65 = arith.mulf %64, %58 : vector<8x128xf32>
    %66 = arith.addf %65, %6 : vector<8x128xf32>
    %cst_29 = arith.constant 1.000000e+00 : f32
    %67 = vector.broadcast %cst_29 : f32 to vector<8x128xf32>
    %68 = arith.mulf %62, %67 : vector<8x128xf32>
    %69 = arith.subf %66, %68 : vector<8x128xf32>
    %cst_30 = arith.constant 1.000000e+00 : f32
    %70 = vector.broadcast %cst_30 : f32 to vector<8x128xf32>
    %71 = arith.cmpf ogt, %69, %70 : vector<8x128xf32>
    %72 = arith.extui %71 : vector<8x128xi1> to vector<8x128xi32>
    %73 = arith.sitofp %72 : vector<8x128xi32> to vector<8x128xf32>
    %c40 = arith.constant 40 : index
    %c0_31 = arith.constant 0 : index
    %74 = vector.load %arg8[%c40, %c0_31] : memref<120x128xf32, #tpu.memory_space<vmem>>, vector<8x128xf32>
    tpu.vector_store %arg8[%c40, %c0_31], %73 {strides = array<i32>} : memref<120x128xf32, #tpu.memory_space<vmem>>, vector<8x128xf32>,
    %cst_32 = arith.constant 0.899999976 : f32
    %75 = vector.broadcast %cst_32 : f32 to vector<8x128xf32>
    %76 = arith.mulf %75, %69 : vector<8x128xf32>
    %77 = arith.addf %76, %6 : vector<8x128xf32>
    %cst_33 = arith.constant 1.000000e+00 : f32
    %78 = vector.broadcast %cst_33 : f32 to vector<8x128xf32>
    %79 = arith.mulf %73, %78 : vector<8x128xf32>
    %80 = arith.subf %77, %79 : vector<8x128xf32>
    %cst_34 = arith.constant 1.000000e+00 : f32
    %81 = vector.broadcast %cst_34 : f32 to vector<8x128xf32>
    %82 = arith.cmpf ogt, %80, %81 : vector<8x128xf32>
    %83 = arith.extui %82 : vector<8x128xi1> to vector<8x128xi32>
    %84 = arith.sitofp %83 : vector<8x128xi32> to vector<8x128xf32>
    %c48 = arith.constant 48 : index
    %c0_35 = arith.constant 0 : index
    %85 = vector.load %arg8[%c48, %c0_35] : memref<120x128xf32, #tpu.memory_space<vmem>>, vector<8x128xf32>
    tpu.vector_store %arg8[%c48, %c0_35], %84 {strides = array<i32>} : memref<120x128xf32, #tpu.memory_space<vmem>>, vector<8x128xf32>,
    %cst_36 = arith.constant 0.899999976 : f32
    %86 = vector.broadcast %cst_36 : f32 to vector<8x128xf32>
    %87 = arith.mulf %86, %80 : vector<8x128xf32>
    %88 = arith.addf %87, %6 : vector<8x128xf32>
    %cst_37 = arith.constant 1.000000e+00 : f32
    %89 = vector.broadcast %cst_37 : f32 to vector<8x128xf32>
    %90 = arith.mulf %84, %89 : vector<8x128xf32>
    %91 = arith.subf %88, %90 : vector<8x128xf32>
    %cst_38 = arith.constant 1.000000e+00 : f32
    %92 = vector.broadcast %cst_38 : f32 to vector<8x128xf32>
    %93 = arith.cmpf ogt, %91, %92 : vector<8x128xf32>
    %94 = arith.extui %93 : vector<8x128xi1> to vector<8x128xi32>
    %95 = arith.sitofp %94 : vector<8x128xi32> to vector<8x128xf32>
    %c56 = arith.constant 56 : index
    %c0_39 = arith.constant 0 : index
    %96 = vector.load %arg8[%c56, %c0_39] : memref<120x128xf32, #tpu.memory_space<vmem>>, vector<8x128xf32>
    tpu.vector_store %arg8[%c56, %c0_39], %95 {strides = array<i32>} : memref<120x128xf32, #tpu.memory_space<vmem>>, vector<8x128xf32>,
    %cst_40 = arith.constant 0.899999976 : f32
    %97 = vector.broadcast %cst_40 : f32 to vector<8x128xf32>
    %98 = arith.mulf %97, %91 : vector<8x128xf32>
    %99 = arith.addf %98, %6 : vector<8x128xf32>
    %cst_41 = arith.constant 1.000000e+00 : f32
    %100 = vector.broadcast %cst_41 : f32 to vector<8x128xf32>
    %101 = arith.mulf %95, %100 : vector<8x128xf32>
    %102 = arith.subf %99, %101 : vector<8x128xf32>
    %cst_42 = arith.constant 1.000000e+00 : f32
    %103 = vector.broadcast %cst_42 : f32 to vector<8x128xf32>
    %104 = arith.cmpf ogt, %102, %103 : vector<8x128xf32>
    %105 = arith.extui %104 : vector<8x128xi1> to vector<8x128xi32>
    %106 = arith.sitofp %105 : vector<8x128xi32> to vector<8x128xf32>
    %c64 = arith.constant 64 : index
    %c0_43 = arith.constant 0 : index
    %107 = vector.load %arg8[%c64, %c0_43] : memref<120x128xf32, #tpu.memory_space<vmem>>, vector<8x128xf32>
    tpu.vector_store %arg8[%c64, %c0_43], %106 {strides = array<i32>} : memref<120x128xf32, #tpu.memory_space<vmem>>, vector<8x128xf32>,
    %cst_44 = arith.constant 0.899999976 : f32
    %108 = vector.broadcast %cst_44 : f32 to vector<8x128xf32>
    %109 = arith.mulf %108, %102 : vector<8x128xf32>
    %110 = arith.addf %109, %6 : vector<8x128xf32>
    %cst_45 = arith.constant 1.000000e+00 : f32
    %111 = vector.broadcast %cst_45 : f32 to vector<8x128xf32>
    %112 = arith.mulf %106, %111 : vector<8x128xf32>
    %113 = arith.subf %110, %112 : vector<8x128xf32>
    %cst_46 = arith.constant 1.000000e+00 : f32
    %114 = vector.broadcast %cst_46 : f32 to vector<8x128xf32>
    %115 = arith.cmpf ogt, %113, %114 : vector<8x128xf32>
    %116 = arith.extui %115 : vector<8x128xi1> to vector<8x128xi32>
    %117 = arith.sitofp %116 : vector<8x128xi32> to vector<8x128xf32>
    %c72 = arith.constant 72 : index
    %c0_47 = arith.constant 0 : index
    %118 = vector.load %arg8[%c72, %c0_47] : memref<120x128xf32, #tpu.memory_space<vmem>>, vector<8x128xf32>
    tpu.vector_store %arg8[%c72, %c0_47], %117 {strides = array<i32>} : memref<120x128xf32, #tpu.memory_space<vmem>>, vector<8x128xf32>,
    %cst_48 = arith.constant 0.899999976 : f32
    %119 = vector.broadcast %cst_48 : f32 to vector<8x128xf32>
    %120 = arith.mulf %119, %113 : vector<8x128xf32>
    %121 = arith.addf %120, %6 : vector<8x128xf32>
    %cst_49 = arith.constant 1.000000e+00 : f32
    %122 = vector.broadcast %cst_49 : f32 to vector<8x128xf32>
    %123 = arith.mulf %117, %122 : vector<8x128xf32>
    %124 = arith.subf %121, %123 : vector<8x128xf32>
    %cst_50 = arith.constant 1.000000e+00 : f32
    %125 = vector.broadcast %cst_50 : f32 to vector<8x128xf32>
    %126 = arith.cmpf ogt, %124, %125 : vector<8x128xf32>
    %127 = arith.extui %126 : vector<8x128xi1> to vector<8x128xi32>
    %128 = arith.sitofp %127 : vector<8x128xi32> to vector<8x128xf32>
    %c80 = arith.constant 80 : index
    %c0_51 = arith.constant 0 : index
    %129 = vector.load %arg8[%c80, %c0_51] : memref<120x128xf32, #tpu.memory_space<vmem>>, vector<8x128xf32>
    tpu.vector_store %arg8[%c80, %c0_51], %128 {strides = array<i32>} : memref<120x128xf32, #tpu.memory_space<vmem>>, vector<8x128xf32>,
    %cst_52 = arith.constant 0.899999976 : f32
    %130 = vector.broadcast %cst_52 : f32 to vector<8x128xf32>
    %131 = arith.mulf %130, %124 : vector<8x128xf32>
    %132 = arith.addf %131, %6 : vector<8x128xf32>
    %cst_53 = arith.constant 1.000000e+00 : f32
    %133 = vector.broadcast %cst_53 : f32 to vector<8x128xf32>
    %134 = arith.mulf %128, %133 : vector<8x128xf32>
    %135 = arith.subf %132, %134 : vector<8x128xf32>
    %cst_54 = arith.constant 1.000000e+00 : f32
    %136 = vector.broadcast %cst_54 : f32 to vector<8x128xf32>
    %137 = arith.cmpf ogt, %135, %136 : vector<8x128xf32>
    %138 = arith.extui %137 : vector<8x128xi1> to vector<8x128xi32>
    %139 = arith.sitofp %138 : vector<8x128xi32> to vector<8x128xf32>
    %c88 = arith.constant 88 : index
    %c0_55 = arith.constant 0 : index
    %140 = vector.load %arg8[%c88, %c0_55] : memref<120x128xf32, #tpu.memory_space<vmem>>, vector<8x128xf32>
    tpu.vector_store %arg8[%c88, %c0_55], %139 {strides = array<i32>} : memref<120x128xf32, #tpu.memory_space<vmem>>, vector<8x128xf32>,
    %cst_56 = arith.constant 0.899999976 : f32
    %141 = vector.broadcast %cst_56 : f32 to vector<8x128xf32>
    %142 = arith.mulf %141, %135 : vector<8x128xf32>
    %143 = arith.addf %142, %6 : vector<8x128xf32>
    %cst_57 = arith.constant 1.000000e+00 : f32
    %144 = vector.broadcast %cst_57 : f32 to vector<8x128xf32>
    %145 = arith.mulf %139, %144 : vector<8x128xf32>
    %146 = arith.subf %143, %145 : vector<8x128xf32>
    %cst_58 = arith.constant 1.000000e+00 : f32
    %147 = vector.broadcast %cst_58 : f32 to vector<8x128xf32>
    %148 = arith.cmpf ogt, %146, %147 : vector<8x128xf32>
    %149 = arith.extui %148 : vector<8x128xi1> to vector<8x128xi32>
    %150 = arith.sitofp %149 : vector<8x128xi32> to vector<8x128xf32>
    %c96 = arith.constant 96 : index
    %c0_59 = arith.constant 0 : index
    %151 = vector.load %arg8[%c96, %c0_59] : memref<120x128xf32, #tpu.memory_space<vmem>>, vector<8x128xf32>
    tpu.vector_store %arg8[%c96, %c0_59], %150 {strides = array<i32>} : memref<120x128xf32, #tpu.memory_space<vmem>>, vector<8x128xf32>,
    %cst_60 = arith.constant 0.899999976 : f32
    %152 = vector.broadcast %cst_60 : f32 to vector<8x128xf32>
    %153 = arith.mulf %152, %146 : vector<8x128xf32>
    %154 = arith.addf %153, %6 : vector<8x128xf32>
    %cst_61 = arith.constant 1.000000e+00 : f32
    %155 = vector.broadcast %cst_61 : f32 to vector<8x128xf32>
    %156 = arith.mulf %150, %155 : vector<8x128xf32>
    %157 = arith.subf %154, %156 : vector<8x128xf32>
    %cst_62 = arith.constant 1.000000e+00 : f32
    %158 = vector.broadcast %cst_62 : f32 to vector<8x128xf32>
    %159 = arith.cmpf ogt, %157, %158 : vector<8x128xf32>
    %160 = arith.extui %159 : vector<8x128xi1> to vector<8x128xi32>
    %161 = arith.sitofp %160 : vector<8x128xi32> to vector<8x128xf32>
    %c104 = arith.constant 104 : index
    %c0_63 = arith.constant 0 : index
    %162 = vector.load %arg8[%c104, %c0_63] : memref<120x128xf32, #tpu.memory_space<vmem>>, vector<8x128xf32>
    tpu.vector_store %arg8[%c104, %c0_63], %161 {strides = array<i32>} : memref<120x128xf32, #tpu.memory_space<vmem>>, vector<8x128xf32>,
    %cst_64 = arith.constant 0.899999976 : f32
    %163 = vector.broadcast %cst_64 : f32 to vector<8x128xf32>
    %164 = arith.mulf %163, %157 : vector<8x128xf32>
    %165 = arith.addf %164, %6 : vector<8x128xf32>
    %cst_65 = arith.constant 1.000000e+00 : f32
    %166 = vector.broadcast %cst_65 : f32 to vector<8x128xf32>
    %167 = arith.mulf %161, %166 : vector<8x128xf32>
    %168 = arith.subf %165, %167 : vector<8x128xf32>
    %cst_66 = arith.constant 1.000000e+00 : f32
    %169 = vector.broadcast %cst_66 : f32 to vector<8x128xf32>
    %170 = arith.cmpf ogt, %168, %169 : vector<8x128xf32>
    %171 = arith.extui %170 : vector<8x128xi1> to vector<8x128xi32>
    %172 = arith.sitofp %171 : vector<8x128xi32> to vector<8x128xf32>
    %c112 = arith.constant 112 : index
    %c0_67 = arith.constant 0 : index
    %173 = vector.load %arg8[%c112, %c0_67] : memref<120x128xf32, #tpu.memory_space<vmem>>, vector<8x128xf32>
    tpu.vector_store %arg8[%c112, %c0_67], %172 {strides = array<i32>} : memref<120x128xf32, #tpu.memory_space<vmem>>, vector<8x128xf32>,
    %c0_68 = arith.constant 0 : index
    %c0_69 = arith.constant 0 : index
    %174 = vector.load %arg8[%c0_68, %c0_69] : memref<120x128xf32, #tpu.memory_space<vmem>>, vector<120x128xf32>
    %c0_70 = arith.constant 0 : index
    %c0_71 = arith.constant 0 : index
    %175 = vector.load %arg4[%c0_70, %c0_71] : memref<128x896xf32, #tpu.memory_space<vmem>>, vector<128x896xf32>
    %cst_72 = arith.constant dense<0.000000e+00> : vector<120x896xf32>
    %176 = tpu.matmul %174, %175, %cst_72 {dimension_numbers = #tpu.dot_dimension_numbers<[1], [0], [0], [1], [0, 0, 1, 1], [], []>} : vector<120x128xf32>, vector<128x896xf32>, vector<120x896xf32> -> vector<120x896xf32>
    %c0_73 = arith.constant 0 : index
    %c0_74 = arith.constant 0 : index
    %177 = vector.load %arg5[%c0_73, %c0_74] : memref<1x896xf32, #tpu.memory_space<vmem>>, vector<1x896xf32>
    %178 = vector.shape_cast %177 : vector<1x896xf32> to vector<1x896xf32>
    %179 = vector.broadcast %178 : vector<1x896xf32> to vector<120x896xf32>
    %180 = arith.addf %176, %179 : vector<120x896xf32>
    %c0_75 = arith.constant 0 : index
    %c0_76 = arith.constant 0 : index
    %181 = vector.load %arg9[%c0_75, %c0_76] : memref<120x896xf32, #tpu.memory_space<vmem>>, vector<120x896xf32>
    tpu.vector_store %arg9[%c0_75, %c0_76], %180 {strides = array<i32>} : memref<120x896xf32, #tpu.memory_space<vmem>>, vector<120x896xf32>,
    %cst_77 = arith.constant 0.000000e+00 : f32
    %182 = vector.broadcast %cst_77 : f32 to vector<8x896xf32>
    %cst_78 = arith.constant 0.000000e+00 : f32
    %183 = vector.broadcast %cst_78 : f32 to vector<8x896xf32>
    %c0_79 = arith.constant 0 : index
    %c0_80 = arith.constant 0 : index
    %184 = vector.load %arg9[%c0_79, %c0_80] : memref<120x896xf32, #tpu.memory_space<vmem>>, vector<8x896xf32>
    %cst_81 = arith.constant 0.899999976 : f32
    %185 = vector.broadcast %cst_81 : f32 to vector<8x896xf32>
    %186 = arith.mulf %185, %182 : vector<8x896xf32>
    %187 = arith.addf %186, %184 : vector<8x896xf32>
    %cst_82 = arith.constant 1.000000e+00 : f32
    %188 = vector.broadcast %cst_82 : f32 to vector<8x896xf32>
    %189 = arith.mulf %183, %188 : vector<8x896xf32>
    %190 = arith.subf %187, %189 : vector<8x896xf32>
    %cst_83 = arith.constant 1.000000e+00 : f32
    %191 = vector.broadcast %cst_83 : f32 to vector<8x896xf32>
    %192 = arith.cmpf ogt, %190, %191 : vector<8x896xf32>
    %193 = arith.extui %192 : vector<8x896xi1> to vector<8x896xi32>
    %194 = arith.sitofp %193 : vector<8x896xi32> to vector<8x896xf32>
    %c0_84 = arith.constant 0 : index
    %c0_85 = arith.constant 0 : index
    %c0_86 = arith.constant 0 : index
    %195 = vector.load %arg6[%c0_84, %c0_85, %c0_86] : memref<15x8x896xf32, #tpu.memory_space<vmem>>, vector<1x8x896xf32>
    %196 = vector.shape_cast %195 : vector<1x8x896xf32> to vector<8x896xf32>
    %197 = vector.shape_cast %194 : vector<8x896xf32> to vector<1x8x896xf32>
    tpu.vector_store %arg6[%c0_84, %c0_85, %c0_86], %197 {strides = array<i32>} : memref<15x8x896xf32, #tpu.memory_space<vmem>>, vector<1x8x896xf32>,
    %c0_87 = arith.constant 0 : index
    %c0_88 = arith.constant 0 : index
    %c0_89 = arith.constant 0 : index
    %198 = vector.load %arg7[%c0_87, %c0_88, %c0_89] : memref<15x8x896xf32, #tpu.memory_space<vmem>>, vector<1x8x896xf32>
    %199 = vector.shape_cast %198 : vector<1x8x896xf32> to vector<8x896xf32>
    %200 = vector.shape_cast %190 : vector<8x896xf32> to vector<1x8x896xf32>
    tpu.vector_store %arg7[%c0_87, %c0_88, %c0_89], %200 {strides = array<i32>} : memref<15x8x896xf32, #tpu.memory_space<vmem>>, vector<1x8x896xf32>,
    %c8_90 = arith.constant 8 : index
    %c0_91 = arith.constant 0 : index
    %201 = vector.load %arg9[%c8_90, %c0_91] : memref<120x896xf32, #tpu.memory_space<vmem>>, vector<8x896xf32>
    %cst_92 = arith.constant 0.899999976 : f32
    %202 = vector.broadcast %cst_92 : f32 to vector<8x896xf32>
    %203 = arith.mulf %202, %190 : vector<8x896xf32>
    %204 = arith.addf %203, %201 : vector<8x896xf32>
    %cst_93 = arith.constant 1.000000e+00 : f32
    %205 = vector.broadcast %cst_93 : f32 to vector<8x896xf32>
    %206 = arith.mulf %194, %205 : vector<8x896xf32>
    %207 = arith.subf %204, %206 : vector<8x896xf32>
    %cst_94 = arith.constant 1.000000e+00 : f32
    %208 = vector.broadcast %cst_94 : f32 to vector<8x896xf32>
    %209 = arith.cmpf ogt, %207, %208 : vector<8x896xf32>
    %210 = arith.extui %209 : vector<8x896xi1> to vector<8x896xi32>
    %211 = arith.sitofp %210 : vector<8x896xi32> to vector<8x896xf32>
    %c1 = arith.constant 1 : index
    %c0_95 = arith.constant 0 : index
    %c0_96 = arith.constant 0 : index
    %212 = vector.load %arg6[%c1, %c0_95, %c0_96] : memref<15x8x896xf32, #tpu.memory_space<vmem>>, vector<1x8x896xf32>
    %213 = vector.shape_cast %212 : vector<1x8x896xf32> to vector<8x896xf32>
    %214 = vector.shape_cast %211 : vector<8x896xf32> to vector<1x8x896xf32>
    tpu.vector_store %arg6[%c1, %c0_95, %c0_96], %214 {strides = array<i32>} : memref<15x8x896xf32, #tpu.memory_space<vmem>>, vector<1x8x896xf32>,
    %c1_97 = arith.constant 1 : index
    %c0_98 = arith.constant 0 : index
    %c0_99 = arith.constant 0 : index
    %215 = vector.load %arg7[%c1_97, %c0_98, %c0_99] : memref<15x8x896xf32, #tpu.memory_space<vmem>>, vector<1x8x896xf32>
    %216 = vector.shape_cast %215 : vector<1x8x896xf32> to vector<8x896xf32>
    %217 = vector.shape_cast %207 : vector<8x896xf32> to vector<1x8x896xf32>
    tpu.vector_store %arg7[%c1_97, %c0_98, %c0_99], %217 {strides = array<i32>} : memref<15x8x896xf32, #tpu.memory_space<vmem>>, vector<1x8x896xf32>,
    %c16_100 = arith.constant 16 : index
    %c0_101 = arith.constant 0 : index
    %218 = vector.load %arg9[%c16_100, %c0_101] : memref<120x896xf32, #tpu.memory_space<vmem>>, vector<8x896xf32>
    %cst_102 = arith.constant 0.899999976 : f32
    %219 = vector.broadcast %cst_102 : f32 to vector<8x896xf32>
    %220 = arith.mulf %219, %207 : vector<8x896xf32>
    %221 = arith.addf %220, %218 : vector<8x896xf32>
    %cst_103 = arith.constant 1.000000e+00 : f32
    %222 = vector.broadcast %cst_103 : f32 to vector<8x896xf32>
    %223 = arith.mulf %211, %222 : vector<8x896xf32>
    %224 = arith.subf %221, %223 : vector<8x896xf32>
    %cst_104 = arith.constant 1.000000e+00 : f32
    %225 = vector.broadcast %cst_104 : f32 to vector<8x896xf32>
    %226 = arith.cmpf ogt, %224, %225 : vector<8x896xf32>
    %227 = arith.extui %226 : vector<8x896xi1> to vector<8x896xi32>
    %228 = arith.sitofp %227 : vector<8x896xi32> to vector<8x896xf32>
    %c2 = arith.constant 2 : index
    %c0_105 = arith.constant 0 : index
    %c0_106 = arith.constant 0 : index
    %229 = vector.load %arg6[%c2, %c0_105, %c0_106] : memref<15x8x896xf32, #tpu.memory_space<vmem>>, vector<1x8x896xf32>
    %230 = vector.shape_cast %229 : vector<1x8x896xf32> to vector<8x896xf32>
    %231 = vector.shape_cast %228 : vector<8x896xf32> to vector<1x8x896xf32>
    tpu.vector_store %arg6[%c2, %c0_105, %c0_106], %231 {strides = array<i32>} : memref<15x8x896xf32, #tpu.memory_space<vmem>>, vector<1x8x896xf32>,
    %c2_107 = arith.constant 2 : index
    %c0_108 = arith.constant 0 : index
    %c0_109 = arith.constant 0 : index
    %232 = vector.load %arg7[%c2_107, %c0_108, %c0_109] : memref<15x8x896xf32, #tpu.memory_space<vmem>>, vector<1x8x896xf32>
    %233 = vector.shape_cast %232 : vector<1x8x896xf32> to vector<8x896xf32>
    %234 = vector.shape_cast %224 : vector<8x896xf32> to vector<1x8x896xf32>
    tpu.vector_store %arg7[%c2_107, %c0_108, %c0_109], %234 {strides = array<i32>} : memref<15x8x896xf32, #tpu.memory_space<vmem>>, vector<1x8x896xf32>,
    %c24_110 = arith.constant 24 : index
    %c0_111 = arith.constant 0 : index
    %235 = vector.load %arg9[%c24_110, %c0_111] : memref<120x896xf32, #tpu.memory_space<vmem>>, vector<8x896xf32>
    %cst_112 = arith.constant 0.899999976 : f32
    %236 = vector.broadcast %cst_112 : f32 to vector<8x896xf32>
    %237 = arith.mulf %236, %224 : vector<8x896xf32>
    %238 = arith.addf %237, %235 : vector<8x896xf32>
    %cst_113 = arith.constant 1.000000e+00 : f32
    %239 = vector.broadcast %cst_113 : f32 to vector<8x896xf32>
    %240 = arith.mulf %228, %239 : vector<8x896xf32>
    %241 = arith.subf %238, %240 : vector<8x896xf32>
    %cst_114 = arith.constant 1.000000e+00 : f32
    %242 = vector.broadcast %cst_114 : f32 to vector<8x896xf32>
    %243 = arith.cmpf ogt, %241, %242 : vector<8x896xf32>
    %244 = arith.extui %243 : vector<8x896xi1> to vector<8x896xi32>
    %245 = arith.sitofp %244 : vector<8x896xi32> to vector<8x896xf32>
    %c3 = arith.constant 3 : index
    %c0_115 = arith.constant 0 : index
    %c0_116 = arith.constant 0 : index
    %246 = vector.load %arg6[%c3, %c0_115, %c0_116] : memref<15x8x896xf32, #tpu.memory_space<vmem>>, vector<1x8x896xf32>
    %247 = vector.shape_cast %246 : vector<1x8x896xf32> to vector<8x896xf32>
    %248 = vector.shape_cast %245 : vector<8x896xf32> to vector<1x8x896xf32>
    tpu.vector_store %arg6[%c3, %c0_115, %c0_116], %248 {strides = array<i32>} : memref<15x8x896xf32, #tpu.memory_space<vmem>>, vector<1x8x896xf32>,
    %c3_117 = arith.constant 3 : index
    %c0_118 = arith.constant 0 : index
    %c0_119 = arith.constant 0 : index
    %249 = vector.load %arg7[%c3_117, %c0_118, %c0_119] : memref<15x8x896xf32, #tpu.memory_space<vmem>>, vector<1x8x896xf32>
    %250 = vector.shape_cast %249 : vector<1x8x896xf32> to vector<8x896xf32>
    %251 = vector.shape_cast %241 : vector<8x896xf32> to vector<1x8x896xf32>
    tpu.vector_store %arg7[%c3_117, %c0_118, %c0_119], %251 {strides = array<i32>} : memref<15x8x896xf32, #tpu.memory_space<vmem>>, vector<1x8x896xf32>,
    %c32_120 = arith.constant 32 : index
    %c0_121 = arith.constant 0 : index
    %252 = vector.load %arg9[%c32_120, %c0_121] : memref<120x896xf32, #tpu.memory_space<vmem>>, vector<8x896xf32>
    %cst_122 = arith.constant 0.899999976 : f32
    %253 = vector.broadcast %cst_122 : f32 to vector<8x896xf32>
    %254 = arith.mulf %253, %241 : vector<8x896xf32>
    %255 = arith.addf %254, %252 : vector<8x896xf32>
    %cst_123 = arith.constant 1.000000e+00 : f32
    %256 = vector.broadcast %cst_123 : f32 to vector<8x896xf32>
    %257 = arith.mulf %245, %256 : vector<8x896xf32>
    %258 = arith.subf %255, %257 : vector<8x896xf32>
    %cst_124 = arith.constant 1.000000e+00 : f32
    %259 = vector.broadcast %cst_124 : f32 to vector<8x896xf32>
    %260 = arith.cmpf ogt, %258, %259 : vector<8x896xf32>
    %261 = arith.extui %260 : vector<8x896xi1> to vector<8x896xi32>
    %262 = arith.sitofp %261 : vector<8x896xi32> to vector<8x896xf32>
    %c4 = arith.constant 4 : index
    %c0_125 = arith.constant 0 : index
    %c0_126 = arith.constant 0 : index
    %263 = vector.load %arg6[%c4, %c0_125, %c0_126] : memref<15x8x896xf32, #tpu.memory_space<vmem>>, vector<1x8x896xf32>
    %264 = vector.shape_cast %263 : vector<1x8x896xf32> to vector<8x896xf32>
    %265 = vector.shape_cast %262 : vector<8x896xf32> to vector<1x8x896xf32>
    tpu.vector_store %arg6[%c4, %c0_125, %c0_126], %265 {strides = array<i32>} : memref<15x8x896xf32, #tpu.memory_space<vmem>>, vector<1x8x896xf32>,
    %c4_127 = arith.constant 4 : index
    %c0_128 = arith.constant 0 : index
    %c0_129 = arith.constant 0 : index
    %266 = vector.load %arg7[%c4_127, %c0_128, %c0_129] : memref<15x8x896xf32, #tpu.memory_space<vmem>>, vector<1x8x896xf32>
    %267 = vector.shape_cast %266 : vector<1x8x896xf32> to vector<8x896xf32>
    %268 = vector.shape_cast %258 : vector<8x896xf32> to vector<1x8x896xf32>
    tpu.vector_store %arg7[%c4_127, %c0_128, %c0_129], %268 {strides = array<i32>} : memref<15x8x896xf32, #tpu.memory_space<vmem>>, vector<1x8x896xf32>,
    %c40_130 = arith.constant 40 : index
    %c0_131 = arith.constant 0 : index
    %269 = vector.load %arg9[%c40_130, %c0_131] : memref<120x896xf32, #tpu.memory_space<vmem>>, vector<8x896xf32>
    %cst_132 = arith.constant 0.899999976 : f32
    %270 = vector.broadcast %cst_132 : f32 to vector<8x896xf32>
    %271 = arith.mulf %270, %258 : vector<8x896xf32>
    %272 = arith.addf %271, %269 : vector<8x896xf32>
    %cst_133 = arith.constant 1.000000e+00 : f32
    %273 = vector.broadcast %cst_133 : f32 to vector<8x896xf32>
    %274 = arith.mulf %262, %273 : vector<8x896xf32>
    %275 = arith.subf %272, %274 : vector<8x896xf32>
    %cst_134 = arith.constant 1.000000e+00 : f32
    %276 = vector.broadcast %cst_134 : f32 to vector<8x896xf32>
    %277 = arith.cmpf ogt, %275, %276 : vector<8x896xf32>
    %278 = arith.extui %277 : vector<8x896xi1> to vector<8x896xi32>
    %279 = arith.sitofp %278 : vector<8x896xi32> to vector<8x896xf32>
    %c5 = arith.constant 5 : index
    %c0_135 = arith.constant 0 : index
    %c0_136 = arith.constant 0 : index
    %280 = vector.load %arg6[%c5, %c0_135, %c0_136] : memref<15x8x896xf32, #tpu.memory_space<vmem>>, vector<1x8x896xf32>
    %281 = vector.shape_cast %280 : vector<1x8x896xf32> to vector<8x896xf32>
    %282 = vector.shape_cast %279 : vector<8x896xf32> to vector<1x8x896xf32>
    tpu.vector_store %arg6[%c5, %c0_135, %c0_136], %282 {strides = array<i32>} : memref<15x8x896xf32, #tpu.memory_space<vmem>>, vector<1x8x896xf32>,
    %c5_137 = arith.constant 5 : index
    %c0_138 = arith.constant 0 : index
    %c0_139 = arith.constant 0 : index
    %283 = vector.load %arg7[%c5_137, %c0_138, %c0_139] : memref<15x8x896xf32, #tpu.memory_space<vmem>>, vector<1x8x896xf32>
    %284 = vector.shape_cast %283 : vector<1x8x896xf32> to vector<8x896xf32>
    %285 = vector.shape_cast %275 : vector<8x896xf32> to vector<1x8x896xf32>
    tpu.vector_store %arg7[%c5_137, %c0_138, %c0_139], %285 {strides = array<i32>} : memref<15x8x896xf32, #tpu.memory_space<vmem>>, vector<1x8x896xf32>,
    %c48_140 = arith.constant 48 : index
    %c0_141 = arith.constant 0 : index
    %286 = vector.load %arg9[%c48_140, %c0_141] : memref<120x896xf32, #tpu.memory_space<vmem>>, vector<8x896xf32>
    %cst_142 = arith.constant 0.899999976 : f32
    %287 = vector.broadcast %cst_142 : f32 to vector<8x896xf32>
    %288 = arith.mulf %287, %275 : vector<8x896xf32>
    %289 = arith.addf %288, %286 : vector<8x896xf32>
    %cst_143 = arith.constant 1.000000e+00 : f32
    %290 = vector.broadcast %cst_143 : f32 to vector<8x896xf32>
    %291 = arith.mulf %279, %290 : vector<8x896xf32>
    %292 = arith.subf %289, %291 : vector<8x896xf32>
    %cst_144 = arith.constant 1.000000e+00 : f32
    %293 = vector.broadcast %cst_144 : f32 to vector<8x896xf32>
    %294 = arith.cmpf ogt, %292, %293 : vector<8x896xf32>
    %295 = arith.extui %294 : vector<8x896xi1> to vector<8x896xi32>
    %296 = arith.sitofp %295 : vector<8x896xi32> to vector<8x896xf32>
    %c6 = arith.constant 6 : index
    %c0_145 = arith.constant 0 : index
    %c0_146 = arith.constant 0 : index
    %297 = vector.load %arg6[%c6, %c0_145, %c0_146] : memref<15x8x896xf32, #tpu.memory_space<vmem>>, vector<1x8x896xf32>
    %298 = vector.shape_cast %297 : vector<1x8x896xf32> to vector<8x896xf32>
    %299 = vector.shape_cast %296 : vector<8x896xf32> to vector<1x8x896xf32>
    tpu.vector_store %arg6[%c6, %c0_145, %c0_146], %299 {strides = array<i32>} : memref<15x8x896xf32, #tpu.memory_space<vmem>>, vector<1x8x896xf32>,
    %c6_147 = arith.constant 6 : index
    %c0_148 = arith.constant 0 : index
    %c0_149 = arith.constant 0 : index
    %300 = vector.load %arg7[%c6_147, %c0_148, %c0_149] : memref<15x8x896xf32, #tpu.memory_space<vmem>>, vector<1x8x896xf32>
    %301 = vector.shape_cast %300 : vector<1x8x896xf32> to vector<8x896xf32>
    %302 = vector.shape_cast %292 : vector<8x896xf32> to vector<1x8x896xf32>
    tpu.vector_store %arg7[%c6_147, %c0_148, %c0_149], %302 {strides = array<i32>} : memref<15x8x896xf32, #tpu.memory_space<vmem>>, vector<1x8x896xf32>,
    %c56_150 = arith.constant 56 : index
    %c0_151 = arith.constant 0 : index
    %303 = vector.load %arg9[%c56_150, %c0_151] : memref<120x896xf32, #tpu.memory_space<vmem>>, vector<8x896xf32>
    %cst_152 = arith.constant 0.899999976 : f32
    %304 = vector.broadcast %cst_152 : f32 to vector<8x896xf32>
    %305 = arith.mulf %304, %292 : vector<8x896xf32>
    %306 = arith.addf %305, %303 : vector<8x896xf32>
    %cst_153 = arith.constant 1.000000e+00 : f32
    %307 = vector.broadcast %cst_153 : f32 to vector<8x896xf32>
    %308 = arith.mulf %296, %307 : vector<8x896xf32>
    %309 = arith.subf %306, %308 : vector<8x896xf32>
    %cst_154 = arith.constant 1.000000e+00 : f32
    %310 = vector.broadcast %cst_154 : f32 to vector<8x896xf32>
    %311 = arith.cmpf ogt, %309, %310 : vector<8x896xf32>
    %312 = arith.extui %311 : vector<8x896xi1> to vector<8x896xi32>
    %313 = arith.sitofp %312 : vector<8x896xi32> to vector<8x896xf32>
    %c7 = arith.constant 7 : index
    %c0_155 = arith.constant 0 : index
    %c0_156 = arith.constant 0 : index
    %314 = vector.load %arg6[%c7, %c0_155, %c0_156] : memref<15x8x896xf32, #tpu.memory_space<vmem>>, vector<1x8x896xf32>
    %315 = vector.shape_cast %314 : vector<1x8x896xf32> to vector<8x896xf32>
    %316 = vector.shape_cast %313 : vector<8x896xf32> to vector<1x8x896xf32>
    tpu.vector_store %arg6[%c7, %c0_155, %c0_156], %316 {strides = array<i32>} : memref<15x8x896xf32, #tpu.memory_space<vmem>>, vector<1x8x896xf32>,
    %c7_157 = arith.constant 7 : index
    %c0_158 = arith.constant 0 : index
    %c0_159 = arith.constant 0 : index
    %317 = vector.load %arg7[%c7_157, %c0_158, %c0_159] : memref<15x8x896xf32, #tpu.memory_space<vmem>>, vector<1x8x896xf32>
    %318 = vector.shape_cast %317 : vector<1x8x896xf32> to vector<8x896xf32>
    %319 = vector.shape_cast %309 : vector<8x896xf32> to vector<1x8x896xf32>
    tpu.vector_store %arg7[%c7_157, %c0_158, %c0_159], %319 {strides = array<i32>} : memref<15x8x896xf32, #tpu.memory_space<vmem>>, vector<1x8x896xf32>,
    %c64_160 = arith.constant 64 : index
    %c0_161 = arith.constant 0 : index
    %320 = vector.load %arg9[%c64_160, %c0_161] : memref<120x896xf32, #tpu.memory_space<vmem>>, vector<8x896xf32>
    %cst_162 = arith.constant 0.899999976 : f32
    %321 = vector.broadcast %cst_162 : f32 to vector<8x896xf32>
    %322 = arith.mulf %321, %309 : vector<8x896xf32>
    %323 = arith.addf %322, %320 : vector<8x896xf32>
    %cst_163 = arith.constant 1.000000e+00 : f32
    %324 = vector.broadcast %cst_163 : f32 to vector<8x896xf32>
    %325 = arith.mulf %313, %324 : vector<8x896xf32>
    %326 = arith.subf %323, %325 : vector<8x896xf32>
    %cst_164 = arith.constant 1.000000e+00 : f32
    %327 = vector.broadcast %cst_164 : f32 to vector<8x896xf32>
    %328 = arith.cmpf ogt, %326, %327 : vector<8x896xf32>
    %329 = arith.extui %328 : vector<8x896xi1> to vector<8x896xi32>
    %330 = arith.sitofp %329 : vector<8x896xi32> to vector<8x896xf32>
    %c8_165 = arith.constant 8 : index
    %c0_166 = arith.constant 0 : index
    %c0_167 = arith.constant 0 : index
    %331 = vector.load %arg6[%c8_165, %c0_166, %c0_167] : memref<15x8x896xf32, #tpu.memory_space<vmem>>, vector<1x8x896xf32>
    %332 = vector.shape_cast %331 : vector<1x8x896xf32> to vector<8x896xf32>
    %333 = vector.shape_cast %330 : vector<8x896xf32> to vector<1x8x896xf32>
    tpu.vector_store %arg6[%c8_165, %c0_166, %c0_167], %333 {strides = array<i32>} : memref<15x8x896xf32, #tpu.memory_space<vmem>>, vector<1x8x896xf32>,
    %c8_168 = arith.constant 8 : index
    %c0_169 = arith.constant 0 : index
    %c0_170 = arith.constant 0 : index
    %334 = vector.load %arg7[%c8_168, %c0_169, %c0_170] : memref<15x8x896xf32, #tpu.memory_space<vmem>>, vector<1x8x896xf32>
    %335 = vector.shape_cast %334 : vector<1x8x896xf32> to vector<8x896xf32>
    %336 = vector.shape_cast %326 : vector<8x896xf32> to vector<1x8x896xf32>
    tpu.vector_store %arg7[%c8_168, %c0_169, %c0_170], %336 {strides = array<i32>} : memref<15x8x896xf32, #tpu.memory_space<vmem>>, vector<1x8x896xf32>,
    %c72_171 = arith.constant 72 : index
    %c0_172 = arith.constant 0 : index
    %337 = vector.load %arg9[%c72_171, %c0_172] : memref<120x896xf32, #tpu.memory_space<vmem>>, vector<8x896xf32>
    %cst_173 = arith.constant 0.899999976 : f32
    %338 = vector.broadcast %cst_173 : f32 to vector<8x896xf32>
    %339 = arith.mulf %338, %326 : vector<8x896xf32>
    %340 = arith.addf %339, %337 : vector<8x896xf32>
    %cst_174 = arith.constant 1.000000e+00 : f32
    %341 = vector.broadcast %cst_174 : f32 to vector<8x896xf32>
    %342 = arith.mulf %330, %341 : vector<8x896xf32>
    %343 = arith.subf %340, %342 : vector<8x896xf32>
    %cst_175 = arith.constant 1.000000e+00 : f32
    %344 = vector.broadcast %cst_175 : f32 to vector<8x896xf32>
    %345 = arith.cmpf ogt, %343, %344 : vector<8x896xf32>
    %346 = arith.extui %345 : vector<8x896xi1> to vector<8x896xi32>
    %347 = arith.sitofp %346 : vector<8x896xi32> to vector<8x896xf32>
    %c9 = arith.constant 9 : index
    %c0_176 = arith.constant 0 : index
    %c0_177 = arith.constant 0 : index
    %348 = vector.load %arg6[%c9, %c0_176, %c0_177] : memref<15x8x896xf32, #tpu.memory_space<vmem>>, vector<1x8x896xf32>
    %349 = vector.shape_cast %348 : vector<1x8x896xf32> to vector<8x896xf32>
    %350 = vector.shape_cast %347 : vector<8x896xf32> to vector<1x8x896xf32>
    tpu.vector_store %arg6[%c9, %c0_176, %c0_177], %350 {strides = array<i32>} : memref<15x8x896xf32, #tpu.memory_space<vmem>>, vector<1x8x896xf32>,
    %c9_178 = arith.constant 9 : index
    %c0_179 = arith.constant 0 : index
    %c0_180 = arith.constant 0 : index
    %351 = vector.load %arg7[%c9_178, %c0_179, %c0_180] : memref<15x8x896xf32, #tpu.memory_space<vmem>>, vector<1x8x896xf32>
    %352 = vector.shape_cast %351 : vector<1x8x896xf32> to vector<8x896xf32>
    %353 = vector.shape_cast %343 : vector<8x896xf32> to vector<1x8x896xf32>
    tpu.vector_store %arg7[%c9_178, %c0_179, %c0_180], %353 {strides = array<i32>} : memref<15x8x896xf32, #tpu.memory_space<vmem>>, vector<1x8x896xf32>,
    %c80_181 = arith.constant 80 : index
    %c0_182 = arith.constant 0 : index
    %354 = vector.load %arg9[%c80_181, %c0_182] : memref<120x896xf32, #tpu.memory_space<vmem>>, vector<8x896xf32>
    %cst_183 = arith.constant 0.899999976 : f32
    %355 = vector.broadcast %cst_183 : f32 to vector<8x896xf32>
    %356 = arith.mulf %355, %343 : vector<8x896xf32>
    %357 = arith.addf %356, %354 : vector<8x896xf32>
    %cst_184 = arith.constant 1.000000e+00 : f32
    %358 = vector.broadcast %cst_184 : f32 to vector<8x896xf32>
    %359 = arith.mulf %347, %358 : vector<8x896xf32>
    %360 = arith.subf %357, %359 : vector<8x896xf32>
    %cst_185 = arith.constant 1.000000e+00 : f32
    %361 = vector.broadcast %cst_185 : f32 to vector<8x896xf32>
    %362 = arith.cmpf ogt, %360, %361 : vector<8x896xf32>
    %363 = arith.extui %362 : vector<8x896xi1> to vector<8x896xi32>
    %364 = arith.sitofp %363 : vector<8x896xi32> to vector<8x896xf32>
    %c10 = arith.constant 10 : index
    %c0_186 = arith.constant 0 : index
    %c0_187 = arith.constant 0 : index
    %365 = vector.load %arg6[%c10, %c0_186, %c0_187] : memref<15x8x896xf32, #tpu.memory_space<vmem>>, vector<1x8x896xf32>
    %366 = vector.shape_cast %365 : vector<1x8x896xf32> to vector<8x896xf32>
    %367 = vector.shape_cast %364 : vector<8x896xf32> to vector<1x8x896xf32>
    tpu.vector_store %arg6[%c10, %c0_186, %c0_187], %367 {strides = array<i32>} : memref<15x8x896xf32, #tpu.memory_space<vmem>>, vector<1x8x896xf32>,
    %c10_188 = arith.constant 10 : index
    %c0_189 = arith.constant 0 : index
    %c0_190 = arith.constant 0 : index
    %368 = vector.load %arg7[%c10_188, %c0_189, %c0_190] : memref<15x8x896xf32, #tpu.memory_space<vmem>>, vector<1x8x896xf32>
    %369 = vector.shape_cast %368 : vector<1x8x896xf32> to vector<8x896xf32>
    %370 = vector.shape_cast %360 : vector<8x896xf32> to vector<1x8x896xf32>
    tpu.vector_store %arg7[%c10_188, %c0_189, %c0_190], %370 {strides = array<i32>} : memref<15x8x896xf32, #tpu.memory_space<vmem>>, vector<1x8x896xf32>,
    %c88_191 = arith.constant 88 : index
    %c0_192 = arith.constant 0 : index
    %371 = vector.load %arg9[%c88_191, %c0_192] : memref<120x896xf32, #tpu.memory_space<vmem>>, vector<8x896xf32>
    %cst_193 = arith.constant 0.899999976 : f32
    %372 = vector.broadcast %cst_193 : f32 to vector<8x896xf32>
    %373 = arith.mulf %372, %360 : vector<8x896xf32>
    %374 = arith.addf %373, %371 : vector<8x896xf32>
    %cst_194 = arith.constant 1.000000e+00 : f32
    %375 = vector.broadcast %cst_194 : f32 to vector<8x896xf32>
    %376 = arith.mulf %364, %375 : vector<8x896xf32>
    %377 = arith.subf %374, %376 : vector<8x896xf32>
    %cst_195 = arith.constant 1.000000e+00 : f32
    %378 = vector.broadcast %cst_195 : f32 to vector<8x896xf32>
    %379 = arith.cmpf ogt, %377, %378 : vector<8x896xf32>
    %380 = arith.extui %379 : vector<8x896xi1> to vector<8x896xi32>
    %381 = arith.sitofp %380 : vector<8x896xi32> to vector<8x896xf32>
    %c11 = arith.constant 11 : index
    %c0_196 = arith.constant 0 : index
    %c0_197 = arith.constant 0 : index
    %382 = vector.load %arg6[%c11, %c0_196, %c0_197] : memref<15x8x896xf32, #tpu.memory_space<vmem>>, vector<1x8x896xf32>
    %383 = vector.shape_cast %382 : vector<1x8x896xf32> to vector<8x896xf32>
    %384 = vector.shape_cast %381 : vector<8x896xf32> to vector<1x8x896xf32>
    tpu.vector_store %arg6[%c11, %c0_196, %c0_197], %384 {strides = array<i32>} : memref<15x8x896xf32, #tpu.memory_space<vmem>>, vector<1x8x896xf32>,
    %c11_198 = arith.constant 11 : index
    %c0_199 = arith.constant 0 : index
    %c0_200 = arith.constant 0 : index
    %385 = vector.load %arg7[%c11_198, %c0_199, %c0_200] : memref<15x8x896xf32, #tpu.memory_space<vmem>>, vector<1x8x896xf32>
    %386 = vector.shape_cast %385 : vector<1x8x896xf32> to vector<8x896xf32>
    %387 = vector.shape_cast %377 : vector<8x896xf32> to vector<1x8x896xf32>
    tpu.vector_store %arg7[%c11_198, %c0_199, %c0_200], %387 {strides = array<i32>} : memref<15x8x896xf32, #tpu.memory_space<vmem>>, vector<1x8x896xf32>,
    %c96_201 = arith.constant 96 : index
    %c0_202 = arith.constant 0 : index
    %388 = vector.load %arg9[%c96_201, %c0_202] : memref<120x896xf32, #tpu.memory_space<vmem>>, vector<8x896xf32>
    %cst_203 = arith.constant 0.899999976 : f32
    %389 = vector.broadcast %cst_203 : f32 to vector<8x896xf32>
    %390 = arith.mulf %389, %377 : vector<8x896xf32>
    %391 = arith.addf %390, %388 : vector<8x896xf32>
    %cst_204 = arith.constant 1.000000e+00 : f32
    %392 = vector.broadcast %cst_204 : f32 to vector<8x896xf32>
    %393 = arith.mulf %381, %392 : vector<8x896xf32>
    %394 = arith.subf %391, %393 : vector<8x896xf32>
    %cst_205 = arith.constant 1.000000e+00 : f32
    %395 = vector.broadcast %cst_205 : f32 to vector<8x896xf32>
    %396 = arith.cmpf ogt, %394, %395 : vector<8x896xf32>
    %397 = arith.extui %396 : vector<8x896xi1> to vector<8x896xi32>
    %398 = arith.sitofp %397 : vector<8x896xi32> to vector<8x896xf32>
    %c12 = arith.constant 12 : index
    %c0_206 = arith.constant 0 : index
    %c0_207 = arith.constant 0 : index
    %399 = vector.load %arg6[%c12, %c0_206, %c0_207] : memref<15x8x896xf32, #tpu.memory_space<vmem>>, vector<1x8x896xf32>
    %400 = vector.shape_cast %399 : vector<1x8x896xf32> to vector<8x896xf32>
    %401 = vector.shape_cast %398 : vector<8x896xf32> to vector<1x8x896xf32>
    tpu.vector_store %arg6[%c12, %c0_206, %c0_207], %401 {strides = array<i32>} : memref<15x8x896xf32, #tpu.memory_space<vmem>>, vector<1x8x896xf32>,
    %c12_208 = arith.constant 12 : index
    %c0_209 = arith.constant 0 : index
    %c0_210 = arith.constant 0 : index
    %402 = vector.load %arg7[%c12_208, %c0_209, %c0_210] : memref<15x8x896xf32, #tpu.memory_space<vmem>>, vector<1x8x896xf32>
    %403 = vector.shape_cast %402 : vector<1x8x896xf32> to vector<8x896xf32>
    %404 = vector.shape_cast %394 : vector<8x896xf32> to vector<1x8x896xf32>
    tpu.vector_store %arg7[%c12_208, %c0_209, %c0_210], %404 {strides = array<i32>} : memref<15x8x896xf32, #tpu.memory_space<vmem>>, vector<1x8x896xf32>,
    %c104_211 = arith.constant 104 : index
    %c0_212 = arith.constant 0 : index
    %405 = vector.load %arg9[%c104_211, %c0_212] : memref<120x896xf32, #tpu.memory_space<vmem>>, vector<8x896xf32>
    %cst_213 = arith.constant 0.899999976 : f32
    %406 = vector.broadcast %cst_213 : f32 to vector<8x896xf32>
    %407 = arith.mulf %406, %394 : vector<8x896xf32>
    %408 = arith.addf %407, %405 : vector<8x896xf32>
    %cst_214 = arith.constant 1.000000e+00 : f32
    %409 = vector.broadcast %cst_214 : f32 to vector<8x896xf32>
    %410 = arith.mulf %398, %409 : vector<8x896xf32>
    %411 = arith.subf %408, %410 : vector<8x896xf32>
    %cst_215 = arith.constant 1.000000e+00 : f32
    %412 = vector.broadcast %cst_215 : f32 to vector<8x896xf32>
    %413 = arith.cmpf ogt, %411, %412 : vector<8x896xf32>
    %414 = arith.extui %413 : vector<8x896xi1> to vector<8x896xi32>
    %415 = arith.sitofp %414 : vector<8x896xi32> to vector<8x896xf32>
    %c13 = arith.constant 13 : index
    %c0_216 = arith.constant 0 : index
    %c0_217 = arith.constant 0 : index
    %416 = vector.load %arg6[%c13, %c0_216, %c0_217] : memref<15x8x896xf32, #tpu.memory_space<vmem>>, vector<1x8x896xf32>
    %417 = vector.shape_cast %416 : vector<1x8x896xf32> to vector<8x896xf32>
    %418 = vector.shape_cast %415 : vector<8x896xf32> to vector<1x8x896xf32>
    tpu.vector_store %arg6[%c13, %c0_216, %c0_217], %418 {strides = array<i32>} : memref<15x8x896xf32, #tpu.memory_space<vmem>>, vector<1x8x896xf32>,
    %c13_218 = arith.constant 13 : index
    %c0_219 = arith.constant 0 : index
    %c0_220 = arith.constant 0 : index
    %419 = vector.load %arg7[%c13_218, %c0_219, %c0_220] : memref<15x8x896xf32, #tpu.memory_space<vmem>>, vector<1x8x896xf32>
    %420 = vector.shape_cast %419 : vector<1x8x896xf32> to vector<8x896xf32>
    %421 = vector.shape_cast %411 : vector<8x896xf32> to vector<1x8x896xf32>
    tpu.vector_store %arg7[%c13_218, %c0_219, %c0_220], %421 {strides = array<i32>} : memref<15x8x896xf32, #tpu.memory_space<vmem>>, vector<1x8x896xf32>,
    %c112_221 = arith.constant 112 : index
    %c0_222 = arith.constant 0 : index
    %422 = vector.load %arg9[%c112_221, %c0_222] : memref<120x896xf32, #tpu.memory_space<vmem>>, vector<8x896xf32>
    %cst_223 = arith.constant 0.899999976 : f32
    %423 = vector.broadcast %cst_223 : f32 to vector<8x896xf32>
    %424 = arith.mulf %423, %411 : vector<8x896xf32>
    %425 = arith.addf %424, %422 : vector<8x896xf32>
    %cst_224 = arith.constant 1.000000e+00 : f32
    %426 = vector.broadcast %cst_224 : f32 to vector<8x896xf32>
    %427 = arith.mulf %415, %426 : vector<8x896xf32>
    %428 = arith.subf %425, %427 : vector<8x896xf32>
    %cst_225 = arith.constant 1.000000e+00 : f32
    %429 = vector.broadcast %cst_225 : f32 to vector<8x896xf32>
    %430 = arith.cmpf ogt, %428, %429 : vector<8x896xf32>
    %431 = arith.extui %430 : vector<8x896xi1> to vector<8x896xi32>
    %432 = arith.sitofp %431 : vector<8x896xi32> to vector<8x896xf32>
    %c14 = arith.constant 14 : index
    %c0_226 = arith.constant 0 : index
    %c0_227 = arith.constant 0 : index
    %433 = vector.load %arg6[%c14, %c0_226, %c0_227] : memref<15x8x896xf32, #tpu.memory_space<vmem>>, vector<1x8x896xf32>
    %434 = vector.shape_cast %433 : vector<1x8x896xf32> to vector<8x896xf32>
    %435 = vector.shape_cast %432 : vector<8x896xf32> to vector<1x8x896xf32>
    tpu.vector_store %arg6[%c14, %c0_226, %c0_227], %435 {strides = array<i32>} : memref<15x8x896xf32, #tpu.memory_space<vmem>>, vector<1x8x896xf32>,
    %c14_228 = arith.constant 14 : index
    %c0_229 = arith.constant 0 : index
    %c0_230 = arith.constant 0 : index
    %436 = vector.load %arg7[%c14_228, %c0_229, %c0_230] : memref<15x8x896xf32, #tpu.memory_space<vmem>>, vector<1x8x896xf32>
    %437 = vector.shape_cast %436 : vector<1x8x896xf32> to vector<8x896xf32>
    %438 = vector.shape_cast %428 : vector<8x896xf32> to vector<1x8x896xf32>
    tpu.vector_store %arg7[%c14_228, %c0_229, %c0_230], %438 {strides = array<i32>} : memref<15x8x896xf32, #tpu.memory_space<vmem>>, vector<1x8x896xf32>,
    return
  }
  func.func @transform_0(%arg0: i32) -> (i32, i32) {
    %c0_i32 = arith.constant 0 : i32
    %c0_i32_0 = arith.constant 0 : i32
    return %arg0, %c0_i32 : i32, i32
  }
  func.func @transform_1(%arg0: i32) -> (i32, i32) {
    %c0_i32 = arith.constant 0 : i32
    %c0_i32_0 = arith.constant 0 : i32
    %c0_i32_1 = arith.constant 0 : i32
    return %c0_i32, %c0_i32_0 : i32, i32
  }
  func.func @transform_2(%arg0: i32) -> (i32, i32) {
    %c0_i32 = arith.constant 0 : i32
    %c0_i32_0 = arith.constant 0 : i32
    %c0_i32_1 = arith.constant 0 : i32
    return %c0_i32, %c0_i32_0 : i32, i32
  }
  func.func @transform_3(%arg0: i32) -> (i32, i32) {
    %c0_i32 = arith.constant 0 : i32
    %c0_i32_0 = arith.constant 0 : i32
    %c0_i32_1 = arith.constant 0 : i32
    return %c0_i32, %c0_i32_0 : i32, i32
  }
  func.func @transform_4(%arg0: i32) -> (i32, i32) {
    %c0_i32 = arith.constant 0 : i32
    %c0_i32_0 = arith.constant 0 : i32
    %c0_i32_1 = arith.constant 0 : i32
    return %c0_i32, %c0_i32_0 : i32, i32
  }
  func.func @transform_5(%arg0: i32) -> (i32, i32, i32) {
    %c0_i32 = arith.constant 0 : i32
    %c0_i32_0 = arith.constant 0 : i32
    %c0_i32_1 = arith.constant 0 : i32
    return %c0_i32, %arg0, %c0_i32_0 : i32, i32, i32
  }
  func.func @transform_6(%arg0: i32) -> (i32, i32, i32) {
    %c0_i32 = arith.constant 0 : i32
    %c0_i32_0 = arith.constant 0 : i32
    %c0_i32_1 = arith.constant 0 : i32
    return %c0_i32, %arg0, %c0_i32_0 : i32, i32, i32
  }
}

</mosaic_0001>

<llo_original>
// kernel: tpu_custom_call.1
$region0: #{tpu_custom_call.1}
  #allocation0 [shape = 'u32[]', space=smem, size = 0x4, offset = 0x4, fixed_abs, tag = 'smem constant byte address 0x4 - core index']
  #allocation1 [shape = 'u32[72,128]{1,0:T(1,128)}', space=vmem, size = 0x9000, scoped, tag = 'internal scratch']
  #allocation2 [shape = 'f32[120,128]{1,0:T(8,128)}', space=vmem, size = 0xf000, scoped, tag = 'scratch operand']
  #allocation3 [shape = 'f32[120,896]{1,0:T(8,128)}', space=vmem, size = 0x69000, scoped, tag = 'scratch operand']
  %s0 = inlined_call_operand.hbm [shape: f32[8,784], index: 0, kind: input, shape index: {}]
  %s1 = inlined_call_operand.hbm [shape: f32[784,128], index: 1, kind: input, shape index: {}]
  %s2 = inlined_call_operand.vmem [shape: f32[1,128], index: 2, kind: input, shape index: {}]
  %s3 = inlined_call_operand.hbm [shape: f32[128,896], index: 3, kind: input, shape index: {}]
  %s4 = inlined_call_operand.hbm [shape: f32[1,896], index: 4, kind: input, shape index: {}]
  %s5 = inlined_call_operand.hbm [shape: f32[15,8,896], index: 5, kind: output, shape index: {0}]
  %s6 = inlined_call_operand.hbm [shape: f32[15,8,896], index: 6, kind: output, shape index: {1}]
  %7 = xla_tuple %s5, %s6
  %s8 = sld [smem:[#allocation0]]
  $region54: #{tpu_custom_call.1} parent=0
    _
  %s10 = ssub.s32 1, %s8
  %s11 = scalar_select 0, %s10, %s8
  $region1: #{tpu_custom_call.1} parent=0
    #allocation4 [shape = 'u8[28672]{0}', space=vmem, size = 0x7000, scoped, tag = 'input window, operand 0, single buffered']
    #allocation5 [shape = 's32[1]{0}', space=sflag, size = 0x4, scoped, tag = 'scoped memory for tpu_custom_call.1']
    #allocation6 [shape = 's32[1]{0}', space=sflag, size = 0x4, scoped, tag = 'scoped memory for tpu_custom_call.1']
    #allocation7 [shape = 'u8[401408]{0}', space=vmem, size = 0x62000, scoped, tag = 'input window, operand 1, single buffered']
    #allocation8 [shape = 's32[1]{0}', space=sflag, size = 0x4, scoped, tag = 'scoped memory for tpu_custom_call.1']
    #allocation9 [shape = 'u8[458752]{0}', space=vmem, size = 0x70000, scoped, tag = 'input window, operand 3, single buffered']
    #allocation10 [shape = 'u8[3584]{0}', space=vmem, size = 0x1000, scoped, tag = 'input window, operand 4, single buffered']
    #allocation11 [shape = 's32[1]{0}', space=sflag, size = 0x4, scoped, tag = 'scoped memory for tpu_custom_call.1']
    #allocation12 [shape = 'u8[430080]{0}', space=vmem, size = 0x69000, scoped, tag = 'output window, operand 0, single buffered']
    #allocation13 [shape = 'u8[430080]{0}', space=vmem, size = 0x69000, scoped, tag = 'output window, operand 1, single buffered']
    #allocation14 [shape = 's32[1]{0}', space=sflag, size = 0x4, scoped, tag = 'scoped memory for tpu_custom_call.1']
    %12 = vsyncpa [#allocation5], 0
    %13 = vsyncpa [#allocation8], 0
    %14 = vsyncpa [#allocation11], 0
    %15 = vsyncpa [#allocation6], 0
    %16 = vsyncpa [#allocation14], 0
    // Predicated region
    $region2: #{tpu_custom_call.1} parent=1 // pred_check
      _
    $region3: #{tpu_custom_call.1} parent=1 // pred_check_branch
      %18 = sbr.rel (0) target = $region5
    $region4: #{tpu_custom_call.1} parent=1 // pred_region
      %20 = vsyncadd [#allocation5], 0
      %s22 = sshll.u32 %s0, 4
      %s23 = int_to_ptr.hbm [resolvable:$true] %s22
      %s24 = sshll.u32 [#allocation4], 4
      %s25 = int_to_ptr.vmem [resolvable:$true] %s24
      %27 = dma.hbm_to_vmem [thread:$0]  %s23, 896, %s25, [#allocation5]
    $region5: #{tpu_custom_call.1} parent=1 // pred_fallthru
      _
    // Predicated region
    $region6: #{tpu_custom_call.1} parent=1 // pred_check
      _
    $region7: #{tpu_custom_call.1} parent=1 // pred_check_branch
      %29 = sbr.rel (0) target = $region9
    $region8: #{tpu_custom_call.1} parent=1 // pred_region
      %31 = vsyncadd [#allocation8], 0
      %s32 = sshll.u32 %s1, 4
      %s33 = int_to_ptr.hbm [resolvable:$true] %s32
      %s34 = sshll.u32 [#allocation7], 4
      %s35 = int_to_ptr.vmem [resolvable:$true] %s34
      %40 = dma.hbm_to_vmem [thread:$0]  %s33, 12544, %s35, [#allocation8], 128, 128, 8
    $region9: #{tpu_custom_call.1} parent=1 // pred_fallthru
      _
    // Predicated region
    $region10: #{tpu_custom_call.1} parent=1 // pred_check
      _
    $region11: #{tpu_custom_call.1} parent=1 // pred_check_branch
      %42 = sbr.rel (0) target = $region13
    $region12: #{tpu_custom_call.1} parent=1 // pred_region
      _
    $region13: #{tpu_custom_call.1} parent=1 // pred_fallthru
      _
    // Predicated region
    $region14: #{tpu_custom_call.1} parent=1 // pred_check
      _
    $region15: #{tpu_custom_call.1} parent=1 // pred_check_branch
      %44 = sbr.rel (0) target = $region17
    $region16: #{tpu_custom_call.1} parent=1 // pred_region
      %46 = vsyncadd [#allocation8], 0
      %s47 = sshll.u32 %s3, 4
      %s48 = int_to_ptr.hbm [resolvable:$true] %s47
      %s49 = sshll.u32 [#allocation9], 4
      %s50 = int_to_ptr.vmem [resolvable:$true] %s49
      %55 = dma.hbm_to_vmem [thread:$0]  %s48, 14336, %s50, [#allocation8], 896, 896, 56
    $region17: #{tpu_custom_call.1} parent=1 // pred_fallthru
      _
    // Predicated region
    $region18: #{tpu_custom_call.1} parent=1 // pred_check
      _
    $region19: #{tpu_custom_call.1} parent=1 // pred_check_branch
      %57 = sbr.rel (0) target = $region21
    $region20: #{tpu_custom_call.1} parent=1 // pred_region
      %59 = vsyncadd [#allocation11], 0
      %s61 = sshll.u32 %s4, 4
      %s62 = int_to_ptr.hbm [resolvable:$true] %s61
      %s63 = sshll.u32 [#allocation10], 4
      %s64 = int_to_ptr.vmem [resolvable:$true] %s63
      %66 = dma.hbm_to_vmem [thread:$0]  %s62, 112, %s64, [#allocation11]
    $region21: #{tpu_custom_call.1} parent=1 // pred_fallthru
      _
    // Predicated region
    $region22: #{tpu_custom_call.1} parent=1 // pred_check
      _
    $region23: #{tpu_custom_call.1} parent=1 // pred_check_branch
      %68 = sbr.rel (0) target = $region25
    $region24: #{tpu_custom_call.1} parent=1 // pred_region
      %70 = dma.done [#allocation5], 896
    $region25: #{tpu_custom_call.1} parent=1 // pred_fallthru
      _
    // Predicated region
    $region26: #{tpu_custom_call.1} parent=1 // pred_check
      _
    $region27: #{tpu_custom_call.1} parent=1 // pred_check_branch
      %72 = sbr.rel (0) target = $region29
    $region28: #{tpu_custom_call.1} parent=1 // pred_region
      %74 = dma.done [#allocation8], 12544
    $region29: #{tpu_custom_call.1} parent=1 // pred_fallthru
      _
    // Predicated region
    $region30: #{tpu_custom_call.1} parent=1 // pred_check
      _
    $region31: #{tpu_custom_call.1} parent=1 // pred_check_branch
      %76 = sbr.rel (0) target = $region33
    $region32: #{tpu_custom_call.1} parent=1 // pred_region
      %78 = dma.done [#allocation8], 14336
    $region33: #{tpu_custom_call.1} parent=1 // pred_fallthru
      _
    // Predicated region
    $region34: #{tpu_custom_call.1} parent=1 // pred_check
      _
    $region35: #{tpu_custom_call.1} parent=1 // pred_check_branch
      %80 = sbr.rel (0) target = $region37
    $region36: #{tpu_custom_call.1} parent=1 // pred_region
      %82 = dma.done [#allocation11], 112
    $region37: #{tpu_custom_call.1} parent=1 // pred_fallthru
      _
    %v83 = vld [vmem:[#allocation4] sm:$0xff]
    %v84 = vld [vmem:[#allocation4 + $0x8] sm:$0xff]
    %v85 = vld [vmem:[#allocation4 + $0x10] sm:$0xff]
    %v86 = vld [vmem:[#allocation4 + $0x18] sm:$0xff]
    %v87 = vld [vmem:[#allocation4 + $0x20] sm:$0xff]
    %v88 = vld [vmem:[#allocation4 + $0x28] sm:$0xff]
    %v89 = vld [vmem:[#allocation4 + $0x30] sm:$0xff]
    %v90 = vld [vmem:[#allocation7] sm:$0xff]
    %v91 = vld [vmem:[#allocation7 + $0x8] sm:$0xff]
    %v92 = vld [vmem:[#allocation7 + $0x10] sm:$0xff]
    %v93 = vld [vmem:[#allocation7 + $0x18] sm:$0xff]
    %v94 = vld [vmem:[#allocation7 + $0x20] sm:$0xff]
    %v95 = vld [vmem:[#allocation7 + $0x28] sm:$0xff]
    %v96 = vld [vmem:[#allocation7 + $0x30] sm:$0xff]
    %v97 = vld [vmem:[#allocation7 + $0x38] sm:$0xff]
    %v98 = vld [vmem:[#allocation7 + $0x40] sm:$0xff]
    %v99 = vld [vmem:[#allocation7 + $0x48] sm:$0xff]
    %v100 = vld [vmem:[#allocation7 + $0x50] sm:$0xff]
    %v101 = vld [vmem:[#allocation7 + $0x58] sm:$0xff]
    %v102 = vld [vmem:[#allocation7 + $0x60] sm:$0xff]
    %v103 = vld [vmem:[#allocation7 + $0x68] sm:$0xff]
    %v104 = vld [vmem:[#allocation7 + $0x70] sm:$0xff]
    %v105 = vld [vmem:[#allocation7 + $0x78] sm:$0xff]
    %v106 = vld [vmem:[#allocation7 + $0x80] sm:$0xff]
    %v107 = vld [vmem:[#allocation7 + $0x88] sm:$0xff]
    %v108 = vld [vmem:[#allocation7 + $0x90] sm:$0xff]
    %v109 = vld [vmem:[#allocation7 + $0x98] sm:$0xff]
    %v110 = vld [vmem:[#allocation7 + $0xa0] sm:$0xff]
    %v111 = vld [vmem:[#allocation7 + $0xa8] sm:$0xff]
    %v112 = vld [vmem:[#allocation7 + $0xb0] sm:$0xff]
    %v113 = vld [vmem:[#allocation7 + $0xb8] sm:$0xff]
    %v114 = vld [vmem:[#allocation7 + $0xc0] sm:$0xff]
    %v115 = vld [vmem:[#allocation7 + $0xc8] sm:$0xff]
    %v116 = vld [vmem:[#allocation7 + $0xd0] sm:$0xff]
    %v117 = vld [vmem:[#allocation7 + $0xd8] sm:$0xff]
    %v118 = vld [vmem:[#allocation7 + $0xe0] sm:$0xff]
    %v119 = vld [vmem:[#allocation7 + $0xe8] sm:$0xff]
    %v120 = vld [vmem:[#allocation7 + $0xf0] sm:$0xff]
    %v121 = vld [vmem:[#allocation7 + $0xf8] sm:$0xff]
    %v122 = vld [vmem:[#allocation7 + $0x100] sm:$0xff]
    %v123 = vld [vmem:[#allocation7 + $0x108] sm:$0xff]
    %v124 = vld [vmem:[#allocation7 + $0x110] sm:$0xff]
    %v125 = vld [vmem:[#allocation7 + $0x118] sm:$0xff]
    %v126 = vld [vmem:[#allocation7 + $0x120] sm:$0xff]
    %v127 = vld [vmem:[#allocation7 + $0x128] sm:$0xff]
    %v128 = vld [vmem:[#allocation7 + $0x130] sm:$0xff]
    %v129 = vld [vmem:[#allocation7 + $0x138] sm:$0xff]
    %v130 = vld [vmem:[#allocation7 + $0x140] sm:$0xff]
    %v131 = vld [vmem:[#allocation7 + $0x148] sm:$0xff]
    %v132 = vld [vmem:[#allocation7 + $0x150] sm:$0xff]
    %v133 = vld [vmem:[#allocation7 + $0x158] sm:$0xff]
    %v134 = vld [vmem:[#allocation7 + $0x160] sm:$0xff]
    %v135 = vld [vmem:[#allocation7 + $0x168] sm:$0xff]
    %v136 = vld [vmem:[#allocation7 + $0x170] sm:$0xff]
    %v137 = vld [vmem:[#allocation7 + $0x178] sm:$0xff]
    %v138 = vld [vmem:[#allocation7 + $0x180] sm:$0xff]
    %v139 = vld [vmem:[#allocation7 + $0x188] sm:$0xff]
    %v140 = vld [vmem:[#allocation7 + $0x190] sm:$0xff]
    %v141 = vld [vmem:[#allocation7 + $0x198] sm:$0xff]
    %v142 = vld [vmem:[#allocation7 + $0x1a0] sm:$0xff]
    %v143 = vld [vmem:[#allocation7 + $0x1a8] sm:$0xff]
    %v144 = vld [vmem:[#allocation7 + $0x1b0] sm:$0xff]
    %v145 = vld [vmem:[#allocation7 + $0x1b8] sm:$0xff]
    %v146 = vld [vmem:[#allocation7 + $0x1c0] sm:$0xff]
    %v147 = vld [vmem:[#allocation7 + $0x1c8] sm:$0xff]
    %v148 = vld [vmem:[#allocation7 + $0x1d0] sm:$0xff]
    %v149 = vld [vmem:[#allocation7 + $0x1d8] sm:$0xff]
    %v150 = vld [vmem:[#allocation7 + $0x1e0] sm:$0xff]
    %v151 = vld [vmem:[#allocation7 + $0x1e8] sm:$0xff]
    %v152 = vld [vmem:[#allocation7 + $0x1f0] sm:$0xff]
    %v153 = vld [vmem:[#allocation7 + $0x1f8] sm:$0xff]
    %v154 = vld [vmem:[#allocation7 + $0x200] sm:$0xff]
    %v155 = vld [vmem:[#allocation7 + $0x208] sm:$0xff]
    %v156 = vld [vmem:[#allocation7 + $0x210] sm:$0xff]
    %v157 = vld [vmem:[#allocation7 + $0x218] sm:$0xff]
    %v158 = vld [vmem:[#allocation7 + $0x220] sm:$0xff]
    %v159 = vld [vmem:[#allocation7 + $0x228] sm:$0xff]
    %v160 = vld [vmem:[#allocation7 + $0x230] sm:$0xff]
    %v161 = vld [vmem:[#allocation7 + $0x238] sm:$0xff]
    %v162 = vld [vmem:[#allocation7 + $0x240] sm:$0xff]
    %v163 = vld [vmem:[#allocation7 + $0x248] sm:$0xff]
    %v164 = vld [vmem:[#allocation7 + $0x250] sm:$0xff]
    %v165 = vld [vmem:[#allocation7 + $0x258] sm:$0xff]
    %v166 = vld [vmem:[#allocation7 + $0x260] sm:$0xff]
    %v167 = vld [vmem:[#allocation7 + $0x268] sm:$0xff]
    %v168 = vld [vmem:[#allocation7 + $0x270] sm:$0xff]
    %v169 = vld [vmem:[#allocation7 + $0x278] sm:$0xff]
    %v170 = vld [vmem:[#allocation7 + $0x280] sm:$0xff]
    %v171 = vld [vmem:[#allocation7 + $0x288] sm:$0xff]
    %v172 = vld [vmem:[#allocation7 + $0x290] sm:$0xff]
    %v173 = vld [vmem:[#allocation7 + $0x298] sm:$0xff]
    %v174 = vld [vmem:[#allocation7 + $0x2a0] sm:$0xff]
    %v175 = vld [vmem:[#allocation7 + $0x2a8] sm:$0xff]
    %v176 = vld [vmem:[#allocation7 + $0x2b0] sm:$0xff]
    %v177 = vld [vmem:[#allocation7 + $0x2b8] sm:$0xff]
    %v178 = vld [vmem:[#allocation7 + $0x2c0] sm:$0xff]
    %v179 = vld [vmem:[#allocation7 + $0x2c8] sm:$0xff]
    %v180 = vld [vmem:[#allocation7 + $0x2d0] sm:$0xff]
    %v181 = vld [vmem:[#allocation7 + $0x2d8] sm:$0xff]
    %v182 = vld [vmem:[#allocation7 + $0x2e0] sm:$0xff]
    %v183 = vld [vmem:[#allocation7 + $0x2e8] sm:$0xff]
    %v184 = vld [vmem:[#allocation7 + $0x2f0] sm:$0xff]
    %v185 = vld [vmem:[#allocation7 + $0x2f8] sm:$0xff]
    %v186 = vld [vmem:[#allocation7 + $0x300] sm:$0xff]
    %v187 = vld [vmem:[#allocation7 + $0x308] sm:$0xff]
    %v188 = vld [vmem:[%s2] sm:$0x1]
    %v190 = vperm.slane %v188, 0
    %vm192 = vcmask 130048
    %v194 = vsel %vm192, %v89, 0
    %196 = vmatpush.msra.mxu0 %v105
    %197 = vmatpush.msra.mxu0 %v104
    %198 = vmatpush.msra.mxu0 %v103
    %199 = vmatpush.msra.mxu0 %v102
    %200 = vmatpush.msra.mxu0 %v101
    %201 = vmatpush.msra.mxu0 %v100
    %202 = vmatpush.msra.mxu0 %v99
    %203 = vmatpush.msra.mxu0 %v98
    %204 = vmatpush.msra.mxu0 %v97
    %205 = vmatpush.msra.mxu0 %v96
    %206 = vmatpush.msra.mxu0 %v95
    %207 = vmatpush.msra.mxu0 %v94
    %208 = vmatpush.msra.mxu0 %v93
    %209 = vmatpush.msra.mxu0 %v92
    %210 = vmatpush.msra.mxu0 %v91
    %211 = vmatpush.msra.mxu0 %v90
    %212 = vmatmul.f32.gmra.mxu0 %v83
    %v213 = vpop.f32.mrf.mxu0
    %v214 = vadd.f32 %v190, %v213
    %215 = vdwg.mxu0
    %216 = vmatpush.msra.mxu0 %v121
    %217 = vmatpush.msra.mxu0 %v120
    %218 = vmatpush.msra.mxu0 %v119
    %219 = vmatpush.msra.mxu0 %v118
    %220 = vmatpush.msra.mxu0 %v117
    %221 = vmatpush.msra.mxu0 %v116
    %222 = vmatpush.msra.mxu0 %v115
    %223 = vmatpush.msra.mxu0 %v114
    %224 = vmatpush.msra.mxu0 %v113
    %225 = vmatpush.msra.mxu0 %v112
    %226 = vmatpush.msra.mxu0 %v111
    %227 = vmatpush.msra.mxu0 %v110
    %228 = vmatpush.msra.mxu0 %v109
    %229 = vmatpush.msra.mxu0 %v108
    %230 = vmatpush.msra.mxu0 %v107
    %231 = vmatpush.msra.mxu0 %v106
    %232 = vmatmul.f32.gmra.mxu0 %v84
    %v233 = vpop.f32.mrf.mxu0
    %v234 = vadd.f32 %v214, %v233
    %235 = vdwg.mxu0
    %236 = vmatpush.msra.mxu0 %v137
    %237 = vmatpush.msra.mxu0 %v136
    %238 = vmatpush.msra.mxu0 %v135
    %239 = vmatpush.msra.mxu0 %v134
    %240 = vmatpush.msra.mxu0 %v133
    %241 = vmatpush.msra.mxu0 %v132
    %242 = vmatpush.msra.mxu0 %v131
    %243 = vmatpush.msra.mxu0 %v130
    %244 = vmatpush.msra.mxu0 %v129
    %245 = vmatpush.msra.mxu0 %v128
    %246 = vmatpush.msra.mxu0 %v127
    %247 = vmatpush.msra.mxu0 %v126
    %248 = vmatpush.msra.mxu0 %v125
    %249 = vmatpush.msra.mxu0 %v124
    %250 = vmatpush.msra.mxu0 %v123
    %251 = vmatpush.msra.mxu0 %v122
    %252 = vmatmul.f32.gmra.mxu0 %v85
    %v253 = vpop.f32.mrf.mxu0
    %v254 = vadd.f32 %v234, %v253
    %255 = vdwg.mxu0
    %256 = vmatpush.msra.mxu0 %v153
    %257 = vmatpush.msra.mxu0 %v152
    %258 = vmatpush.msra.mxu0 %v151
    %259 = vmatpush.msra.mxu0 %v150
    %260 = vmatpush.msra.mxu0 %v149
    %261 = vmatpush.msra.mxu0 %v148
    %262 = vmatpush.msra.mxu0 %v147
    %263 = vmatpush.msra.mxu0 %v146
    %264 = vmatpush.msra.mxu0 %v145
    %265 = vmatpush.msra.mxu0 %v144
    %266 = vmatpush.msra.mxu0 %v143
    %267 = vmatpush.msra.mxu0 %v142
    %268 = vmatpush.msra.mxu0 %v141
    %269 = vmatpush.msra.mxu0 %v140
    %270 = vmatpush.msra.mxu0 %v139
    %271 = vmatpush.msra.mxu0 %v138
    %272 = vmatmul.f32.gmra.mxu0 %v86
    %v273 = vpop.f32.mrf.mxu0
    %v274 = vadd.f32 %v254, %v273
    %275 = vdwg.mxu0
    %276 = vmatpush.msra.mxu0 %v169
    %277 = vmatpush.msra.mxu0 %v168
    %278 = vmatpush.msra.mxu0 %v167
    %279 = vmatpush.msra.mxu0 %v166
    %280 = vmatpush.msra.mxu0 %v165
    %281 = vmatpush.msra.mxu0 %v164
    %282 = vmatpush.msra.mxu0 %v163
    %283 = vmatpush.msra.mxu0 %v162
    %284 = vmatpush.msra.mxu0 %v161
    %285 = vmatpush.msra.mxu0 %v160
    %286 = vmatpush.msra.mxu0 %v159
    %287 = vmatpush.msra.mxu0 %v158
    %288 = vmatpush.msra.mxu0 %v157
    %289 = vmatpush.msra.mxu0 %v156
    %290 = vmatpush.msra.mxu0 %v155
    %291 = vmatpush.msra.mxu0 %v154
    %292 = vmatmul.f32.gmra.mxu0 %v87
    %v293 = vpop.f32.mrf.mxu0
    %v294 = vadd.f32 %v274, %v293
    %295 = vdwg.mxu0
    %296 = vmatpush.msra.mxu0 %v185
    %297 = vmatpush.msra.mxu0 %v184
    %298 = vmatpush.msra.mxu0 %v183
    %299 = vmatpush.msra.mxu0 %v182
    %300 = vmatpush.msra.mxu0 %v181
    %301 = vmatpush.msra.mxu0 %v180
    %302 = vmatpush.msra.mxu0 %v179
    %303 = vmatpush.msra.mxu0 %v178
    %304 = vmatpush.msra.mxu0 %v177
    %305 = vmatpush.msra.mxu0 %v176
    %306 = vmatpush.msra.mxu0 %v175
    %307 = vmatpush.msra.mxu0 %v174
    %308 = vmatpush.msra.mxu0 %v173
    %309 = vmatpush.msra.mxu0 %v172
    %310 = vmatpush.msra.mxu0 %v171
    %311 = vmatpush.msra.mxu0 %v170
    %312 = vmatmul.f32.gmra.mxu0 %v88
    %v313 = vpop.f32.mrf.mxu0
    %v314 = vadd.f32 %v294, %v313
    %315 = vdwg.mxu0
    %316 = vmatpush.msra.mxu0 0.0
    %317 = vmatpush.msra.mxu0 0.0
    %318 = vmatpush.msra.mxu0 0.0
    %319 = vmatpush.msra.mxu0 0.0
    %320 = vmatpush.msra.mxu0 0.0
    %321 = vmatpush.msra.mxu0 0.0
    %322 = vmatpush.msra.mxu0 0.0
    %323 = vmatpush.msra.mxu0 0.0
    %324 = vmatpush.msra.mxu0 0.0
    %325 = vmatpush.msra.mxu0 0.0
    %326 = vmatpush.msra.mxu0 0.0
    %327 = vmatpush.msra.mxu0 0.0
    %328 = vmatpush.msra.mxu0 0.0
    %329 = vmatpush.msra.mxu0 0.0
    %330 = vmatpush.msra.mxu0 %v187
    %331 = vmatpush.msra.mxu0 %v186
    %332 = vmatmul.f32.gmra.mxu0 %v194
    %v333 = vpop.f32.mrf.mxu0
    %v334 = vadd.f32 %v314, %v333
    %335 = vdwg.mxu0
    %v336 = vadd.f32 %v334, 0.0
    %vm337 = vcmp.gt.f32.partialorder %v336, 1.0
    %v338 = vsel %vm337, 1, 0
    %v339 = vcvt.s32.f32 %v338
    %340 = vst [vmem:[#allocation2] sm:$0xff] %v339
    %v341 = vmul.f32 %v336, 0.9
    %v342 = vadd.f32 %v341, %v334
    %v343 = vsub.f32 %v342, %v339
    %vm344 = vcmp.gt.f32.partialorder %v343, 1.0
    %v345 = vsel %vm344, 1, 0
    %v346 = vcvt.s32.f32 %v345
    %347 = vst [vmem:[#allocation2 + $0x8] sm:$0xff] %v346
    %v348 = vmul.f32 %v343, 0.9
    %v349 = vadd.f32 %v348, %v334
    %v350 = vsub.f32 %v349, %v346
    %vm351 = vcmp.gt.f32.partialorder %v350, 1.0
    %v352 = vsel %vm351, 1, 0
    %v353 = vcvt.s32.f32 %v352
    %354 = vst [vmem:[#allocation2 + $0x10] sm:$0xff] %v353
    %v355 = vmul.f32 %v350, 0.9
    %v356 = vadd.f32 %v355, %v334
    %v357 = vsub.f32 %v356, %v353
    %vm358 = vcmp.gt.f32.partialorder %v357, 1.0
    %v359 = vsel %vm358, 1, 0
    %v360 = vcvt.s32.f32 %v359
    %361 = vst [vmem:[#allocation2 + $0x18] sm:$0xff] %v360
    %v362 = vmul.f32 %v357, 0.9
    %v363 = vadd.f32 %v362, %v334
    %v364 = vsub.f32 %v363, %v360
    %vm365 = vcmp.gt.f32.partialorder %v364, 1.0
    %v366 = vsel %vm365, 1, 0
    %v367 = vcvt.s32.f32 %v366
    %368 = vst [vmem:[#allocation2 + $0x20] sm:$0xff] %v367
    %v369 = vmul.f32 %v364, 0.9
    %v370 = vadd.f32 %v369, %v334
    %v371 = vsub.f32 %v370, %v367
    %vm372 = vcmp.gt.f32.partialorder %v371, 1.0
    %v373 = vsel %vm372, 1, 0
    %v374 = vcvt.s32.f32 %v373
    %375 = vst [vmem:[#allocation2 + $0x28] sm:$0xff] %v374
    %v376 = vmul.f32 %v371, 0.9
    %v377 = vadd.f32 %v376, %v334
    %v378 = vsub.f32 %v377, %v374
    %vm379 = vcmp.gt.f32.partialorder %v378, 1.0
    %v380 = vsel %vm379, 1, 0
    %v381 = vcvt.s32.f32 %v380
    %382 = vst [vmem:[#allocation2 + $0x30] sm:$0xff] %v381
    %v383 = vmul.f32 %v378, 0.9
    %v384 = vadd.f32 %v383, %v334
    %v385 = vsub.f32 %v384, %v381
    %vm386 = vcmp.gt.f32.partialorder %v385, 1.0
    %v387 = vsel %vm386, 1, 0
    %v388 = vcvt.s32.f32 %v387
    %389 = vst [vmem:[#allocation2 + $0x38] sm:$0xff] %v388
    %v390 = vmul.f32 %v385, 0.9
    %v391 = vadd.f32 %v390, %v334
    %v392 = vsub.f32 %v391, %v388
    %vm393 = vcmp.gt.f32.partialorder %v392, 1.0
    %v394 = vsel %vm393, 1, 0
    %v395 = vcvt.s32.f32 %v394
    %396 = vst [vmem:[#allocation2 + $0x40] sm:$0xff] %v395
    %v397 = vmul.f32 %v392, 0.9
    %v398 = vadd.f32 %v397, %v334
    %v399 = vsub.f32 %v398, %v395
    %vm400 = vcmp.gt.f32.partialorder %v399, 1.0
    %v401 = vsel %vm400, 1, 0
    %v402 = vcvt.s32.f32 %v401
    %403 = vst [vmem:[#allocation2 + $0x48] sm:$0xff] %v402
    %v404 = vmul.f32 %v399, 0.9
    %v405 = vadd.f32 %v404, %v334
    %v406 = vsub.f32 %v405, %v402
    %vm407 = vcmp.gt.f32.partialorder %v406, 1.0
    %v408 = vsel %vm407, 1, 0
    %v409 = vcvt.s32.f32 %v408
    %410 = vst [vmem:[#allocation2 + $0x50] sm:$0xff] %v409
    %v411 = vmul.f32 %v406, 0.9
    %v412 = vadd.f32 %v411, %v334
    %v413 = vsub.f32 %v412, %v409
    %vm414 = vcmp.gt.f32.partialorder %v413, 1.0
    %v415 = vsel %vm414, 1, 0
    %v416 = vcvt.s32.f32 %v415
    %417 = vst [vmem:[#allocation2 + $0x58] sm:$0xff] %v416
    %v418 = vmul.f32 %v413, 0.9
    %v419 = vadd.f32 %v418, %v334
    %v420 = vsub.f32 %v419, %v416
    %vm421 = vcmp.gt.f32.partialorder %v420, 1.0
    %v422 = vsel %vm421, 1, 0
    %v423 = vcvt.s32.f32 %v422
    %424 = vst [vmem:[#allocation2 + $0x60] sm:$0xff] %v423
    %v425 = vmul.f32 %v420, 0.9
    %v426 = vadd.f32 %v425, %v334
    %v427 = vsub.f32 %v426, %v423
    %vm428 = vcmp.gt.f32.partialorder %v427, 1.0
    %v429 = vsel %vm428, 1, 0
    %v430 = vcvt.s32.f32 %v429
    %431 = vst [vmem:[#allocation2 + $0x68] sm:$0xff] %v430
    %v432 = vmul.f32 %v427, 0.9
    %v433 = vadd.f32 %v432, %v334
    %v434 = vsub.f32 %v433, %v430
    %vm435 = vcmp.gt.f32.partialorder %v434, 1.0
    %v436 = vsel %vm435, 1, 0
    %v437 = vcvt.s32.f32 %v436
    %438 = vst [vmem:[#allocation2 + $0x70] sm:$0xff] %v437
    %v439 = vld [vmem:[#allocation2] sm:$0xff]
    %v440 = vld [vmem:[#allocation2 + $0x8] sm:$0xff]
    %v441 = vld [vmem:[#allocation2 + $0x10] sm:$0xff]
    %v442 = vld [vmem:[#allocation2 + $0x18] sm:$0xff]
    %v443 = vld [vmem:[#allocation2 + $0x20] sm:$0xff]
    %v444 = vld [vmem:[#allocation2 + $0x28] sm:$0xff]
    %v445 = vld [vmem:[#allocation2 + $0x30] sm:$0xff]
    %v446 = vld [vmem:[#allocation2 + $0x38] sm:$0xff]
    %v447 = vld [vmem:[#allocation2 + $0x40] sm:$0xff]
    %v448 = vld [vmem:[#allocation2 + $0x48] sm:$0xff]
    %v449 = vld [vmem:[#allocation2 + $0x50] sm:$0xff]
    %v450 = vld [vmem:[#allocation2 + $0x58] sm:$0xff]
    %v451 = vld [vmem:[#allocation2 + $0x60] sm:$0xff]
    %v452 = vld [vmem:[#allocation2 + $0x68] sm:$0xff]
    %v453 = vld [vmem:[#allocation2 + $0x70] sm:$0xff]
    %v454 = vld [vmem:[#allocation9] sm:$0xff]
    %v455 = vld [vmem:[#allocation9 + $0x8] sm:$0xff]
    %v456 = vld [vmem:[#allocation9 + $0x10] sm:$0xff]
    %v457 = vld [vmem:[#allocation9 + $0x18] sm:$0xff]
    %v458 = vld [vmem:[#allocation9 + $0x20] sm:$0xff]
    %v459 = vld [vmem:[#allocation9 + $0x28] sm:$0xff]
    %v460 = vld [vmem:[#allocation9 + $0x30] sm:$0xff]
    %v461 = vld [vmem:[#allocation9 + $0x38] sm:$0xff]
    %v462 = vld [vmem:[#allocation9 + $0x40] sm:$0xff]
    %v463 = vld [vmem:[#allocation9 + $0x48] sm:$0xff]
    %v464 = vld [vmem:[#allocation9 + $0x50] sm:$0xff]
    %v465 = vld [vmem:[#allocation9 + $0x58] sm:$0xff]
    %v466 = vld [vmem:[#allocation9 + $0x60] sm:$0xff]
    %v467 = vld [vmem:[#allocation9 + $0x68] sm:$0xff]
    %v468 = vld [vmem:[#allocation9 + $0x70] sm:$0xff]
    %v469 = vld [vmem:[#allocation9 + $0x78] sm:$0xff]
    %v470 = vld [vmem:[#allocation9 + $0x80] sm:$0xff]
    %v471 = vld [vmem:[#allocation9 + $0x88] sm:$0xff]
    %v472 = vld [vmem:[#allocation9 + $0x90] sm:$0xff]
    %v473 = vld [vmem:[#allocation9 + $0x98] sm:$0xff]
    %v474 = vld [vmem:[#allocation9 + $0xa0] sm:$0xff]
    %v475 = vld [vmem:[#allocation9 + $0xa8] sm:$0xff]
    %v476 = vld [vmem:[#allocation9 + $0xb0] sm:$0xff]
    %v477 = vld [vmem:[#allocation9 + $0xb8] sm:$0xff]
    %v478 = vld [vmem:[#allocation9 + $0xc0] sm:$0xff]
    %v479 = vld [vmem:[#allocation9 + $0xc8] sm:$0xff]
    %v480 = vld [vmem:[#allocation9 + $0xd0] sm:$0xff]
    %v481 = vld [vmem:[#allocation9 + $0xd8] sm:$0xff]
    %v482 = vld [vmem:[#allocation9 + $0xe0] sm:$0xff]
    %v483 = vld [vmem:[#allocation9 + $0xe8] sm:$0xff]
    %v484 = vld [vmem:[#allocation9 + $0xf0] sm:$0xff]
    %v485 = vld [vmem:[#allocation9 + $0xf8] sm:$0xff]
    %v486 = vld [vmem:[#allocation9 + $0x100] sm:$0xff]
    %v487 = vld [vmem:[#allocation9 + $0x108] sm:$0xff]
    %v488 = vld [vmem:[#allocation9 + $0x110] sm:$0xff]
    %v489 = vld [vmem:[#allocation9 + $0x118] sm:$0xff]
    %v490 = vld [vmem:[#allocation9 + $0x120] sm:$0xff]
    %v491 = vld [vmem:[#allocation9 + $0x128] sm:$0xff]
    %v492 = vld [vmem:[#allocation9 + $0x130] sm:$0xff]
    %v493 = vld [vmem:[#allocation9 + $0x138] sm:$0xff]
    %v494 = vld [vmem:[#allocation9 + $0x140] sm:$0xff]
    %v495 = vld [vmem:[#allocation9 + $0x148] sm:$0xff]
    %v496 = vld [vmem:[#allocation9 + $0x150] sm:$0xff]
    %v497 = vld [vmem:[#allocation9 + $0x158] sm:$0xff]
    %v498 = vld [vmem:[#allocation9 + $0x160] sm:$0xff]
    %v499 = vld [vmem:[#allocation9 + $0x168] sm:$0xff]
    %v500 = vld [vmem:[#allocation9 + $0x170] sm:$0xff]
    %v501 = vld [vmem:[#allocation9 + $0x178] sm:$0xff]
    %v502 = vld [vmem:[#allocation9 + $0x180] sm:$0xff]
    %v503 = vld [vmem:[#allocation9 + $0x188] sm:$0xff]
    %v504 = vld [vmem:[#allocation9 + $0x190] sm:$0xff]
    %v505 = vld [vmem:[#allocation9 + $0x198] sm:$0xff]
    %v506 = vld [vmem:[#allocation9 + $0x1a0] sm:$0xff]
    %v507 = vld [vmem:[#allocation9 + $0x1a8] sm:$0xff]
    %v508 = vld [vmem:[#allocation9 + $0x1b0] sm:$0xff]
    %v509 = vld [vmem:[#allocation9 + $0x1b8] sm:$0xff]
    %v510 = vld [vmem:[#allocation9 + $0x1c0] sm:$0xff]
    %v511 = vld [vmem:[#allocation9 + $0x1c8] sm:$0xff]
    %v512 = vld [vmem:[#allocation9 + $0x1d0] sm:$0xff]
    %v513 = vld [vmem:[#allocation9 + $0x1d8] sm:$0xff]
    %v514 = vld [vmem:[#allocation9 + $0x1e0] sm:$0xff]
    %v515 = vld [vmem:[#allocation9 + $0x1e8] sm:$0xff]
    %v516 = vld [vmem:[#allocation9 + $0x1f0] sm:$0xff]
    %v517 = vld [vmem:[#allocation9 + $0x1f8] sm:$0xff]
    %v518 = vld [vmem:[#allocation9 + $0x200] sm:$0xff]
    %v519 = vld [vmem:[#allocation9 + $0x208] sm:$0xff]
    %v520 = vld [vmem:[#allocation9 + $0x210] sm:$0xff]
    %v521 = vld [vmem:[#allocation9 + $0x218] sm:$0xff]
    %v522 = vld [vmem:[#allocation9 + $0x220] sm:$0xff]
    %v523 = vld [vmem:[#allocation9 + $0x228] sm:$0xff]
    %v524 = vld [vmem:[#allocation9 + $0x230] sm:$0xff]
    %v525 = vld [vmem:[#allocation9 + $0x238] sm:$0xff]
    %v526 = vld [vmem:[#allocation9 + $0x240] sm:$0xff]
    %v527 = vld [vmem:[#allocation9 + $0x248] sm:$0xff]
    %v528 = vld [vmem:[#allocation9 + $0x250] sm:$0xff]
    %v529 = vld [vmem:[#allocation9 + $0x258] sm:$0xff]
    %v530 = vld [vmem:[#allocation9 + $0x260] sm:$0xff]
    %v531 = vld [vmem:[#allocation9 + $0x268] sm:$0xff]
    %v532 = vld [vmem:[#allocation9 + $0x270] sm:$0xff]
    %v533 = vld [vmem:[#allocation9 + $0x278] sm:$0xff]
    %v534 = vld [vmem:[#allocation9 + $0x280] sm:$0xff]
    %v535 = vld [vmem:[#allocation9 + $0x288] sm:$0xff]
    %v536 = vld [vmem:[#allocation9 + $0x290] sm:$0xff]
    %v537 = vld [vmem:[#allocation9 + $0x298] sm:$0xff]
    %v538 = vld [vmem:[#allocation9 + $0x2a0] sm:$0xff]
    %v539 = vld [vmem:[#allocation9 + $0x2a8] sm:$0xff]
    %v540 = vld [vmem:[#allocation9 + $0x2b0] sm:$0xff]
    %v541 = vld [vmem:[#allocation9 + $0x2b8] sm:$0xff]
    %v542 = vld [vmem:[#allocation9 + $0x2c0] sm:$0xff]
    %v543 = vld [vmem:[#allocation9 + $0x2c8] sm:$0xff]
    %v544 = vld [vmem:[#allocation9 + $0x2d0] sm:$0xff]
    %v545 = vld [vmem:[#allocation9 + $0x2d8] sm:$0xff]
    %v546 = vld [vmem:[#allocation9 + $0x2e0] sm:$0xff]
    %v547 = vld [vmem:[#allocation9 + $0x2e8] sm:$0xff]
    %v548 = vld [vmem:[#allocation9 + $0x2f0] sm:$0xff]
    %v549 = vld [vmem:[#allocation9 + $0x2f8] sm:$0xff]
    %v550 = vld [vmem:[#allocation9 + $0x300] sm:$0xff]
    %v551 = vld [vmem:[#allocation9 + $0x308] sm:$0xff]
    %v552 = vld [vmem:[#allocation9 + $0x310] sm:$0xff]
    %v553 = vld [vmem:[#allocation9 + $0x318] sm:$0xff]
    %v554 = vld [vmem:[#allocation9 + $0x320] sm:$0xff]
    %v555 = vld [vmem:[#allocation9 + $0x328] sm:$0xff]
    %v556 = vld [vmem:[#allocation9 + $0x330] sm:$0xff]
    %v557 = vld [vmem:[#allocation9 + $0x338] sm:$0xff]
    %v558 = vld [vmem:[#allocation9 + $0x340] sm:$0xff]
    %v559 = vld [vmem:[#allocation9 + $0x348] sm:$0xff]
    %v560 = vld [vmem:[#allocation9 + $0x350] sm:$0xff]
    %v561 = vld [vmem:[#allocation9 + $0x358] sm:$0xff]
    %v562 = vld [vmem:[#allocation9 + $0x360] sm:$0xff]
    %v563 = vld [vmem:[#allocation9 + $0x368] sm:$0xff]
    %v564 = vld [vmem:[#allocation9 + $0x370] sm:$0xff]
    %v565 = vld [vmem:[#allocation9 + $0x378] sm:$0xff]
    %v566 = vld [vmem:[#allocation10] sm:$0xff]
    %v568 = vperm.slane %v566, 0
    %v569 = vperm.slane %v566, 1
    %v570 = vperm.slane %v566, 2
    %v571 = vperm.slane %v566, 3
    %v572 = vperm.slane %v566, 4
    %v573 = vperm.slane %v566, 5
    %v574 = vperm.slane %v566, 6
    %582 = vmatpush.msra.mxu0 %v559
    %583 = vmatpush.msra.mxu0 %v552
    %584 = vmatpush.msra.mxu0 %v545
    %585 = vmatpush.msra.mxu0 %v538
    %586 = vmatpush.msra.mxu0 %v531
    %587 = vmatpush.msra.mxu0 %v524
    %588 = vmatpush.msra.mxu0 %v517
    %589 = vmatpush.msra.mxu0 %v510
    %590 = vmatpush.msra.mxu0 %v503
    %591 = vmatpush.msra.mxu0 %v496
    %592 = vmatpush.msra.mxu0 %v489
    %593 = vmatpush.msra.mxu0 %v482
    %594 = vmatpush.msra.mxu0 %v475
    %595 = vmatpush.msra.mxu0 %v468
    %596 = vmatpush.msra.mxu0 %v461
    %597 = vmatpush.msra.mxu0 %v454
    %598 = vmatmul.f32.gmra.mxu0 %v439
    %v599 = vpop.f32.mrf.mxu0
    %v600 = vadd.f32 %v568, %v599
    %601 = vmatmul.f32.gmra.mxu0 %v440
    %v602 = vpop.f32.mrf.mxu0
    %v603 = vadd.f32 %v568, %v602
    %604 = vmatmul.f32.gmra.mxu0 %v441
    %v605 = vpop.f32.mrf.mxu0
    %v606 = vadd.f32 %v568, %v605
    %607 = vmatmul.f32.gmra.mxu0 %v442
    %v608 = vpop.f32.mrf.mxu0
    %v609 = vadd.f32 %v568, %v608
    %610 = vmatmul.f32.gmra.mxu0 %v443
    %v611 = vpop.f32.mrf.mxu0
    %v612 = vadd.f32 %v568, %v611
    %613 = vmatmul.f32.gmra.mxu0 %v444
    %v614 = vpop.f32.mrf.mxu0
    %v615 = vadd.f32 %v568, %v614
    %616 = vmatmul.f32.gmra.mxu0 %v445
    %v617 = vpop.f32.mrf.mxu0
    %v618 = vadd.f32 %v568, %v617
    %619 = vmatmul.f32.gmra.mxu0 %v446
    %v620 = vpop.f32.mrf.mxu0
    %v621 = vadd.f32 %v568, %v620
    %622 = vmatmul.f32.gmra.mxu0 %v447
    %v623 = vpop.f32.mrf.mxu0
    %v624 = vadd.f32 %v568, %v623
    %625 = vmatmul.f32.gmra.mxu0 %v448
    %v626 = vpop.f32.mrf.mxu0
    %v627 = vadd.f32 %v568, %v626
    %628 = vmatmul.f32.gmra.mxu0 %v449
    %v629 = vpop.f32.mrf.mxu0
    %v630 = vadd.f32 %v568, %v629
    %631 = vmatmul.f32.gmra.mxu0 %v450
    %v632 = vpop.f32.mrf.mxu0
    %v633 = vadd.f32 %v568, %v632
    %634 = vmatmul.f32.gmra.mxu0 %v451
    %v635 = vpop.f32.mrf.mxu0
    %v636 = vadd.f32 %v568, %v635
    %637 = vmatmul.f32.gmra.mxu0 %v452
    %v638 = vpop.f32.mrf.mxu0
    %v639 = vadd.f32 %v568, %v638
    %640 = vmatmul.f32.gmra.mxu0 %v453
    %v641 = vpop.f32.mrf.mxu0
    %v642 = vadd.f32 %v568, %v641
    %643 = vdwg.mxu0
    %644 = vmatpush.msra.mxu0 %v560
    %645 = vmatpush.msra.mxu0 %v553
    %646 = vmatpush.msra.mxu0 %v546
    %647 = vmatpush.msra.mxu0 %v539
    %648 = vmatpush.msra.mxu0 %v532
    %649 = vmatpush.msra.mxu0 %v525
    %650 = vmatpush.msra.mxu0 %v518
    %651 = vmatpush.msra.mxu0 %v511
    %652 = vmatpush.msra.mxu0 %v504
    %653 = vmatpush.msra.mxu0 %v497
    %654 = vmatpush.msra.mxu0 %v490
    %655 = vmatpush.msra.mxu0 %v483
    %656 = vmatpush.msra.mxu0 %v476
    %657 = vmatpush.msra.mxu0 %v469
    %658 = vmatpush.msra.mxu0 %v462
    %659 = vmatpush.msra.mxu0 %v455
    %660 = vmatmul.f32.gmra.mxu0 %v439
    %v661 = vpop.f32.mrf.mxu0
    %v662 = vadd.f32 %v569, %v661
    %663 = vmatmul.f32.gmra.mxu0 %v440
    %v664 = vpop.f32.mrf.mxu0
    %v665 = vadd.f32 %v569, %v664
    %666 = vmatmul.f32.gmra.mxu0 %v441
    %v667 = vpop.f32.mrf.mxu0
    %v668 = vadd.f32 %v569, %v667
    %669 = vmatmul.f32.gmra.mxu0 %v442
    %v670 = vpop.f32.mrf.mxu0
    %v671 = vadd.f32 %v569, %v670
    %672 = vmatmul.f32.gmra.mxu0 %v443
    %v673 = vpop.f32.mrf.mxu0
    %v674 = vadd.f32 %v569, %v673
    %675 = vmatmul.f32.gmra.mxu0 %v444
    %v676 = vpop.f32.mrf.mxu0
    %v677 = vadd.f32 %v569, %v676
    %678 = vmatmul.f32.gmra.mxu0 %v445
    %v679 = vpop.f32.mrf.mxu0
    %v680 = vadd.f32 %v569, %v679
    %681 = vmatmul.f32.gmra.mxu0 %v446
    %v682 = vpop.f32.mrf.mxu0
    %v683 = vadd.f32 %v569, %v682
    %684 = vmatmul.f32.gmra.mxu0 %v447
    %v685 = vpop.f32.mrf.mxu0
    %v686 = vadd.f32 %v569, %v685
    %687 = vmatmul.f32.gmra.mxu0 %v448
    %v688 = vpop.f32.mrf.mxu0
    %v689 = vadd.f32 %v569, %v688
    %690 = vmatmul.f32.gmra.mxu0 %v449
    %v691 = vpop.f32.mrf.mxu0
    %v692 = vadd.f32 %v569, %v691
    %693 = vmatmul.f32.gmra.mxu0 %v450
    %v694 = vpop.f32.mrf.mxu0
    %v695 = vadd.f32 %v569, %v694
    %696 = vmatmul.f32.gmra.mxu0 %v451
    %v697 = vpop.f32.mrf.mxu0
    %v698 = vadd.f32 %v569, %v697
    %699 = vmatmul.f32.gmra.mxu0 %v452
    %v700 = vpop.f32.mrf.mxu0
    %v701 = vadd.f32 %v569, %v700
    %702 = vmatmul.f32.gmra.mxu0 %v453
    %v703 = vpop.f32.mrf.mxu0
    %v704 = vadd.f32 %v569, %v703
    %705 = vdwg.mxu0
    %706 = vmatpush.msra.mxu0 %v561
    %707 = vmatpush.msra.mxu0 %v554
    %708 = vmatpush.msra.mxu0 %v547
    %709 = vmatpush.msra.mxu0 %v540
    %710 = vmatpush.msra.mxu0 %v533
    %711 = vmatpush.msra.mxu0 %v526
    %712 = vmatpush.msra.mxu0 %v519
    %713 = vmatpush.msra.mxu0 %v512
    %714 = vmatpush.msra.mxu0 %v505
    %715 = vmatpush.msra.mxu0 %v498
    %716 = vmatpush.msra.mxu0 %v491
    %717 = vmatpush.msra.mxu0 %v484
    %718 = vmatpush.msra.mxu0 %v477
    %719 = vmatpush.msra.mxu0 %v470
    %720 = vmatpush.msra.mxu0 %v463
    %721 = vmatpush.msra.mxu0 %v456
    %722 = vmatmul.f32.gmra.mxu0 %v439
    %v723 = vpop.f32.mrf.mxu0
    %v724 = vadd.f32 %v570, %v723
    %725 = vmatmul.f32.gmra.mxu0 %v440
    %v726 = vpop.f32.mrf.mxu0
    %v727 = vadd.f32 %v570, %v726
    %728 = vmatmul.f32.gmra.mxu0 %v441
    %v729 = vpop.f32.mrf.mxu0
    %v730 = vadd.f32 %v570, %v729
    %731 = vmatmul.f32.gmra.mxu0 %v442
    %v732 = vpop.f32.mrf.mxu0
    %v733 = vadd.f32 %v570, %v732
    %734 = vmatmul.f32.gmra.mxu0 %v443
    %v735 = vpop.f32.mrf.mxu0
    %v736 = vadd.f32 %v570, %v735
    %737 = vmatmul.f32.gmra.mxu0 %v444
    %v738 = vpop.f32.mrf.mxu0
    %v739 = vadd.f32 %v570, %v738
    %740 = vmatmul.f32.gmra.mxu0 %v445
    %v741 = vpop.f32.mrf.mxu0
    %v742 = vadd.f32 %v570, %v741
    %743 = vmatmul.f32.gmra.mxu0 %v446
    %v744 = vpop.f32.mrf.mxu0
    %v745 = vadd.f32 %v570, %v744
    %746 = vmatmul.f32.gmra.mxu0 %v447
    %v747 = vpop.f32.mrf.mxu0
    %v748 = vadd.f32 %v570, %v747
    %749 = vmatmul.f32.gmra.mxu0 %v448
    %v750 = vpop.f32.mrf.mxu0
    %v751 = vadd.f32 %v570, %v750
    %752 = vmatmul.f32.gmra.mxu0 %v449
    %v753 = vpop.f32.mrf.mxu0
    %v754 = vadd.f32 %v570, %v753
    %755 = vmatmul.f32.gmra.mxu0 %v450
    %v756 = vpop.f32.mrf.mxu0
    %v757 = vadd.f32 %v570, %v756
    %758 = vmatmul.f32.gmra.mxu0 %v451
    %v759 = vpop.f32.mrf.mxu0
    %v760 = vadd.f32 %v570, %v759
    %761 = vmatmul.f32.gmra.mxu0 %v452
    %v762 = vpop.f32.mrf.mxu0
    %v763 = vadd.f32 %v570, %v762
    %764 = vmatmul.f32.gmra.mxu0 %v453
    %v765 = vpop.f32.mrf.mxu0
    %v766 = vadd.f32 %v570, %v765
    %767 = vdwg.mxu0
    %768 = vmatpush.msra.mxu0 %v562
    %769 = vmatpush.msra.mxu0 %v555
    %770 = vmatpush.msra.mxu0 %v548
    %771 = vmatpush.msra.mxu0 %v541
    %772 = vmatpush.msra.mxu0 %v534
    %773 = vmatpush.msra.mxu0 %v527
    %774 = vmatpush.msra.mxu0 %v520
    %775 = vmatpush.msra.mxu0 %v513
    %776 = vmatpush.msra.mxu0 %v506
    %777 = vmatpush.msra.mxu0 %v499
    %778 = vmatpush.msra.mxu0 %v492
    %779 = vmatpush.msra.mxu0 %v485
    %780 = vmatpush.msra.mxu0 %v478
    %781 = vmatpush.msra.mxu0 %v471
    %782 = vmatpush.msra.mxu0 %v464
    %783 = vmatpush.msra.mxu0 %v457
    %784 = vmatmul.f32.gmra.mxu0 %v439
    %v785 = vpop.f32.mrf.mxu0
    %v786 = vadd.f32 %v571, %v785
    %787 = vmatmul.f32.gmra.mxu0 %v440
    %v788 = vpop.f32.mrf.mxu0
    %v789 = vadd.f32 %v571, %v788
    %790 = vmatmul.f32.gmra.mxu0 %v441
    %v791 = vpop.f32.mrf.mxu0
    %v792 = vadd.f32 %v571, %v791
    %793 = vmatmul.f32.gmra.mxu0 %v442
    %v794 = vpop.f32.mrf.mxu0
    %v795 = vadd.f32 %v571, %v794
    %796 = vmatmul.f32.gmra.mxu0 %v443
    %v797 = vpop.f32.mrf.mxu0
    %v798 = vadd.f32 %v571, %v797
    %799 = vmatmul.f32.gmra.mxu0 %v444
    %v800 = vpop.f32.mrf.mxu0
    %v801 = vadd.f32 %v571, %v800
    %802 = vmatmul.f32.gmra.mxu0 %v445
    %v803 = vpop.f32.mrf.mxu0
    %v804 = vadd.f32 %v571, %v803
    %805 = vmatmul.f32.gmra.mxu0 %v446
    %v806 = vpop.f32.mrf.mxu0
    %v807 = vadd.f32 %v571, %v806
    %808 = vmatmul.f32.gmra.mxu0 %v447
    %v809 = vpop.f32.mrf.mxu0
    %v810 = vadd.f32 %v571, %v809
    %811 = vmatmul.f32.gmra.mxu0 %v448
    %v812 = vpop.f32.mrf.mxu0
    %v813 = vadd.f32 %v571, %v812
    %814 = vmatmul.f32.gmra.mxu0 %v449
    %v815 = vpop.f32.mrf.mxu0
    %v816 = vadd.f32 %v571, %v815
    %817 = vmatmul.f32.gmra.mxu0 %v450
    %v818 = vpop.f32.mrf.mxu0
    %v819 = vadd.f32 %v571, %v818
    %820 = vmatmul.f32.gmra.mxu0 %v451
    %v821 = vpop.f32.mrf.mxu0
    %v822 = vadd.f32 %v571, %v821
    %823 = vmatmul.f32.gmra.mxu0 %v452
    %v824 = vpop.f32.mrf.mxu0
    %v825 = vadd.f32 %v571, %v824
    %826 = vmatmul.f32.gmra.mxu0 %v453
    %v827 = vpop.f32.mrf.mxu0
    %v828 = vadd.f32 %v571, %v827
    %829 = vdwg.mxu0
    %830 = vmatpush.msra.mxu0 %v563
    %831 = vmatpush.msra.mxu0 %v556
    %832 = vmatpush.msra.mxu0 %v549
    %833 = vmatpush.msra.mxu0 %v542
    %834 = vmatpush.msra.mxu0 %v535
    %835 = vmatpush.msra.mxu0 %v528
    %836 = vmatpush.msra.mxu0 %v521
    %837 = vmatpush.msra.mxu0 %v514
    %838 = vmatpush.msra.mxu0 %v507
    %839 = vmatpush.msra.mxu0 %v500
    %840 = vmatpush.msra.mxu0 %v493
    %841 = vmatpush.msra.mxu0 %v486
    %842 = vmatpush.msra.mxu0 %v479
    %843 = vmatpush.msra.mxu0 %v472
    %844 = vmatpush.msra.mxu0 %v465
    %845 = vmatpush.msra.mxu0 %v458
    %846 = vmatmul.f32.gmra.mxu0 %v439
    %v847 = vpop.f32.mrf.mxu0
    %v848 = vadd.f32 %v572, %v847
    %849 = vmatmul.f32.gmra.mxu0 %v440
    %v850 = vpop.f32.mrf.mxu0
    %v851 = vadd.f32 %v572, %v850
    %852 = vmatmul.f32.gmra.mxu0 %v441
    %v853 = vpop.f32.mrf.mxu0
    %v854 = vadd.f32 %v572, %v853
    %855 = vmatmul.f32.gmra.mxu0 %v442
    %v856 = vpop.f32.mrf.mxu0
    %v857 = vadd.f32 %v572, %v856
    %858 = vmatmul.f32.gmra.mxu0 %v443
    %v859 = vpop.f32.mrf.mxu0
    %v860 = vadd.f32 %v572, %v859
    %861 = vmatmul.f32.gmra.mxu0 %v444
    %v862 = vpop.f32.mrf.mxu0
    %v863 = vadd.f32 %v572, %v862
    %864 = vmatmul.f32.gmra.mxu0 %v445
    %v865 = vpop.f32.mrf.mxu0
    %v866 = vadd.f32 %v572, %v865
    %867 = vmatmul.f32.gmra.mxu0 %v446
    %v868 = vpop.f32.mrf.mxu0
    %v869 = vadd.f32 %v572, %v868
    %870 = vmatmul.f32.gmra.mxu0 %v447
    %v871 = vpop.f32.mrf.mxu0
    %v872 = vadd.f32 %v572, %v871
    %873 = vmatmul.f32.gmra.mxu0 %v448
    %v874 = vpop.f32.mrf.mxu0
    %v875 = vadd.f32 %v572, %v874
    %876 = vmatmul.f32.gmra.mxu0 %v449
    %v877 = vpop.f32.mrf.mxu0
    %v878 = vadd.f32 %v572, %v877
    %879 = vmatmul.f32.gmra.mxu0 %v450
    %v880 = vpop.f32.mrf.mxu0
    %v881 = vadd.f32 %v572, %v880
    %882 = vmatmul.f32.gmra.mxu0 %v451
    %v883 = vpop.f32.mrf.mxu0
    %v884 = vadd.f32 %v572, %v883
    %885 = vmatmul.f32.gmra.mxu0 %v452
    %v886 = vpop.f32.mrf.mxu0
    %v887 = vadd.f32 %v572, %v886
    %888 = vmatmul.f32.gmra.mxu0 %v453
    %v889 = vpop.f32.mrf.mxu0
    %v890 = vadd.f32 %v572, %v889
    %891 = vdwg.mxu0
    %892 = vmatpush.msra.mxu0 %v564
    %893 = vmatpush.msra.mxu0 %v557
    %894 = vmatpush.msra.mxu0 %v550
    %895 = vmatpush.msra.mxu0 %v543
    %896 = vmatpush.msra.mxu0 %v536
    %897 = vmatpush.msra.mxu0 %v529
    %898 = vmatpush.msra.mxu0 %v522
    %899 = vmatpush.msra.mxu0 %v515
    %900 = vmatpush.msra.mxu0 %v508
    %901 = vmatpush.msra.mxu0 %v501
    %902 = vmatpush.msra.mxu0 %v494
    %903 = vmatpush.msra.mxu0 %v487
    %904 = vmatpush.msra.mxu0 %v480
    %905 = vmatpush.msra.mxu0 %v473
    %906 = vmatpush.msra.mxu0 %v466
    %907 = vmatpush.msra.mxu0 %v459
    %908 = vmatmul.f32.gmra.mxu0 %v439
    %v909 = vpop.f32.mrf.mxu0
    %v910 = vadd.f32 %v573, %v909
    %911 = vmatmul.f32.gmra.mxu0 %v440
    %v912 = vpop.f32.mrf.mxu0
    %v913 = vadd.f32 %v573, %v912
    %914 = vmatmul.f32.gmra.mxu0 %v441
    %v915 = vpop.f32.mrf.mxu0
    %v916 = vadd.f32 %v573, %v915
    %917 = vmatmul.f32.gmra.mxu0 %v442
    %v918 = vpop.f32.mrf.mxu0
    %v919 = vadd.f32 %v573, %v918
    %920 = vmatmul.f32.gmra.mxu0 %v443
    %v921 = vpop.f32.mrf.mxu0
    %v922 = vadd.f32 %v573, %v921
    %923 = vmatmul.f32.gmra.mxu0 %v444
    %v924 = vpop.f32.mrf.mxu0
    %v925 = vadd.f32 %v573, %v924
    %926 = vmatmul.f32.gmra.mxu0 %v445
    %v927 = vpop.f32.mrf.mxu0
    %v928 = vadd.f32 %v573, %v927
    %929 = vmatmul.f32.gmra.mxu0 %v446
    %v930 = vpop.f32.mrf.mxu0
    %v931 = vadd.f32 %v573, %v930
    %932 = vmatmul.f32.gmra.mxu0 %v447
    %v933 = vpop.f32.mrf.mxu0
    %v934 = vadd.f32 %v573, %v933
    %935 = vmatmul.f32.gmra.mxu0 %v448
    %v936 = vpop.f32.mrf.mxu0
    %v937 = vadd.f32 %v573, %v936
    %938 = vmatmul.f32.gmra.mxu0 %v449
    %v939 = vpop.f32.mrf.mxu0
    %v940 = vadd.f32 %v573, %v939
    %941 = vmatmul.f32.gmra.mxu0 %v450
    %v942 = vpop.f32.mrf.mxu0
    %v943 = vadd.f32 %v573, %v942
    %944 = vmatmul.f32.gmra.mxu0 %v451
    %v945 = vpop.f32.mrf.mxu0
    %v946 = vadd.f32 %v573, %v945
    %947 = vmatmul.f32.gmra.mxu0 %v452
    %v948 = vpop.f32.mrf.mxu0
    %v949 = vadd.f32 %v573, %v948
    %950 = vmatmul.f32.gmra.mxu0 %v453
    %v951 = vpop.f32.mrf.mxu0
    %v952 = vadd.f32 %v573, %v951
    %953 = vdwg.mxu0
    %954 = vmatpush.msra.mxu0 %v565
    %955 = vmatpush.msra.mxu0 %v558
    %956 = vmatpush.msra.mxu0 %v551
    %957 = vmatpush.msra.mxu0 %v544
    %958 = vmatpush.msra.mxu0 %v537
    %959 = vmatpush.msra.mxu0 %v530
    %960 = vmatpush.msra.mxu0 %v523
    %961 = vmatpush.msra.mxu0 %v516
    %962 = vmatpush.msra.mxu0 %v509
    %963 = vmatpush.msra.mxu0 %v502
    %964 = vmatpush.msra.mxu0 %v495
    %965 = vmatpush.msra.mxu0 %v488
    %966 = vmatpush.msra.mxu0 %v481
    %967 = vmatpush.msra.mxu0 %v474
    %968 = vmatpush.msra.mxu0 %v467
    %969 = vmatpush.msra.mxu0 %v460
    %970 = vmatmul.f32.gmra.mxu0 %v439
    %v971 = vpop.f32.mrf.mxu0
    %v972 = vadd.f32 %v574, %v971
    %973 = vmatmul.f32.gmra.mxu0 %v440
    %v974 = vpop.f32.mrf.mxu0
    %v975 = vadd.f32 %v574, %v974
    %976 = vmatmul.f32.gmra.mxu0 %v441
    %v977 = vpop.f32.mrf.mxu0
    %v978 = vadd.f32 %v574, %v977
    %979 = vmatmul.f32.gmra.mxu0 %v442
    %v980 = vpop.f32.mrf.mxu0
    %v981 = vadd.f32 %v574, %v980
    %982 = vmatmul.f32.gmra.mxu0 %v443
    %v983 = vpop.f32.mrf.mxu0
    %v984 = vadd.f32 %v574, %v983
    %985 = vmatmul.f32.gmra.mxu0 %v444
    %v986 = vpop.f32.mrf.mxu0
    %v987 = vadd.f32 %v574, %v986
    %988 = vmatmul.f32.gmra.mxu0 %v445
    %v989 = vpop.f32.mrf.mxu0
    %v990 = vadd.f32 %v574, %v989
    %991 = vmatmul.f32.gmra.mxu0 %v446
    %v992 = vpop.f32.mrf.mxu0
    %v993 = vadd.f32 %v574, %v992
    %994 = vmatmul.f32.gmra.mxu0 %v447
    %v995 = vpop.f32.mrf.mxu0
    %v996 = vadd.f32 %v574, %v995
    %997 = vmatmul.f32.gmra.mxu0 %v448
    %v998 = vpop.f32.mrf.mxu0
    %v999 = vadd.f32 %v574, %v998
    %1000 = vmatmul.f32.gmra.mxu0 %v449
    %v1001 = vpop.f32.mrf.mxu0
    %v1002 = vadd.f32 %v574, %v1001
    %1003 = vmatmul.f32.gmra.mxu0 %v450
    %v1004 = vpop.f32.mrf.mxu0
    %v1005 = vadd.f32 %v574, %v1004
    %1006 = vmatmul.f32.gmra.mxu0 %v451
    %v1007 = vpop.f32.mrf.mxu0
    %v1008 = vadd.f32 %v574, %v1007
    %1009 = vmatmul.f32.gmra.mxu0 %v452
    %v1010 = vpop.f32.mrf.mxu0
    %v1011 = vadd.f32 %v574, %v1010
    %1012 = vmatmul.f32.gmra.mxu0 %v453
    %v1013 = vpop.f32.mrf.mxu0
    %v1014 = vadd.f32 %v574, %v1013
    %1015 = vdwg.mxu0
    %1016 = vst [vmem:[#allocation3] sm:$0xff] %v600
    %1017 = vst [vmem:[#allocation3 + $0x8] sm:$0xff] %v662
    %1018 = vst [vmem:[#allocation3 + $0x10] sm:$0xff] %v724
    %1019 = vst [vmem:[#allocation3 + $0x18] sm:$0xff] %v786
    %1020 = vst [vmem:[#allocation3 + $0x20] sm:$0xff] %v848
    %1021 = vst [vmem:[#allocation3 + $0x28] sm:$0xff] %v910
    %1022 = vst [vmem:[#allocation3 + $0x30] sm:$0xff] %v972
    %1023 = vst [vmem:[#allocation3 + $0x38] sm:$0xff] %v603
    %1024 = vst [vmem:[#allocation3 + $0x40] sm:$0xff] %v665
    %1025 = vst [vmem:[#allocation3 + $0x48] sm:$0xff] %v727
    %1026 = vst [vmem:[#allocation3 + $0x50] sm:$0xff] %v789
    %1027 = vst [vmem:[#allocation3 + $0x58] sm:$0xff] %v851
    %1028 = vst [vmem:[#allocation3 + $0x60] sm:$0xff] %v913
    %1029 = vst [vmem:[#allocation3 + $0x68] sm:$0xff] %v975
    %1030 = vst [vmem:[#allocation3 + $0x70] sm:$0xff] %v606
    %1031 = vst [vmem:[#allocation3 + $0x78] sm:$0xff] %v668
    %1032 = vst [vmem:[#allocation3 + $0x80] sm:$0xff] %v730
    %1033 = vst [vmem:[#allocation3 + $0x88] sm:$0xff] %v792
    %1034 = vst [vmem:[#allocation3 + $0x90] sm:$0xff] %v854
    %1035 = vst [vmem:[#allocation3 + $0x98] sm:$0xff] %v916
    %1036 = vst [vmem:[#allocation3 + $0xa0] sm:$0xff] %v978
    %1037 = vst [vmem:[#allocation3 + $0xa8] sm:$0xff] %v609
    %1038 = vst [vmem:[#allocation3 + $0xb0] sm:$0xff] %v671
    %1039 = vst [vmem:[#allocation3 + $0xb8] sm:$0xff] %v733
    %1040 = vst [vmem:[#allocation3 + $0xc0] sm:$0xff] %v795
    %1041 = vst [vmem:[#allocation3 + $0xc8] sm:$0xff] %v857
    %1042 = vst [vmem:[#allocation3 + $0xd0] sm:$0xff] %v919
    %1043 = vst [vmem:[#allocation3 + $0xd8] sm:$0xff] %v981
    %1044 = vst [vmem:[#allocation3 + $0xe0] sm:$0xff] %v612
    %1045 = vst [vmem:[#allocation3 + $0xe8] sm:$0xff] %v674
    %1046 = vst [vmem:[#allocation3 + $0xf0] sm:$0xff] %v736
    %1047 = vst [vmem:[#allocation3 + $0xf8] sm:$0xff] %v798
    %1048 = vst [vmem:[#allocation3 + $0x100] sm:$0xff] %v860
    %1049 = vst [vmem:[#allocation3 + $0x108] sm:$0xff] %v922
    %1050 = vst [vmem:[#allocation3 + $0x110] sm:$0xff] %v984
    %1051 = vst [vmem:[#allocation3 + $0x118] sm:$0xff] %v615
    %1052 = vst [vmem:[#allocation3 + $0x120] sm:$0xff] %v677
    %1053 = vst [vmem:[#allocation3 + $0x128] sm:$0xff] %v739
    %1054 = vst [vmem:[#allocation3 + $0x130] sm:$0xff] %v801
    %1055 = vst [vmem:[#allocation3 + $0x138] sm:$0xff] %v863
    %1056 = vst [vmem:[#allocation3 + $0x140] sm:$0xff] %v925
    %1057 = vst [vmem:[#allocation3 + $0x148] sm:$0xff] %v987
    %1058 = vst [vmem:[#allocation3 + $0x150] sm:$0xff] %v618
    %1059 = vst [vmem:[#allocation3 + $0x158] sm:$0xff] %v680
    %1060 = vst [vmem:[#allocation3 + $0x160] sm:$0xff] %v742
    %1061 = vst [vmem:[#allocation3 + $0x168] sm:$0xff] %v804
    %1062 = vst [vmem:[#allocation3 + $0x170] sm:$0xff] %v866
    %1063 = vst [vmem:[#allocation3 + $0x178] sm:$0xff] %v928
    %1064 = vst [vmem:[#allocation3 + $0x180] sm:$0xff] %v990
    %1065 = vst [vmem:[#allocation3 + $0x188] sm:$0xff] %v621
    %1066 = vst [vmem:[#allocation3 + $0x190] sm:$0xff] %v683
    %1067 = vst [vmem:[#allocation3 + $0x198] sm:$0xff] %v745
    %1068 = vst [vmem:[#allocation3 + $0x1a0] sm:$0xff] %v807
    %1069 = vst [vmem:[#allocation3 + $0x1a8] sm:$0xff] %v869
    %1070 = vst [vmem:[#allocation3 + $0x1b0] sm:$0xff] %v931
    %1071 = vst [vmem:[#allocation3 + $0x1b8] sm:$0xff] %v993
    %1072 = vst [vmem:[#allocation3 + $0x1c0] sm:$0xff] %v624
    %1073 = vst [vmem:[#allocation3 + $0x1c8] sm:$0xff] %v686
    %1074 = vst [vmem:[#allocation3 + $0x1d0] sm:$0xff] %v748
    %1075 = vst [vmem:[#allocation3 + $0x1d8] sm:$0xff] %v810
    %1076 = vst [vmem:[#allocation3 + $0x1e0] sm:$0xff] %v872
    %1077 = vst [vmem:[#allocation3 + $0x1e8] sm:$0xff] %v934
    %1078 = vst [vmem:[#allocation3 + $0x1f0] sm:$0xff] %v996
    %1079 = vst [vmem:[#allocation3 + $0x1f8] sm:$0xff] %v627
    %1080 = vst [vmem:[#allocation3 + $0x200] sm:$0xff] %v689
    %1081 = vst [vmem:[#allocation3 + $0x208] sm:$0xff] %v751
    %1082 = vst [vmem:[#allocation3 + $0x210] sm:$0xff] %v813
    %1083 = vst [vmem:[#allocation3 + $0x218] sm:$0xff] %v875
    %1084 = vst [vmem:[#allocation3 + $0x220] sm:$0xff] %v937
    %1085 = vst [vmem:[#allocation3 + $0x228] sm:$0xff] %v999
    %1086 = vst [vmem:[#allocation3 + $0x230] sm:$0xff] %v630
    %1087 = vst [vmem:[#allocation3 + $0x238] sm:$0xff] %v692
    %1088 = vst [vmem:[#allocation3 + $0x240] sm:$0xff] %v754
    %1089 = vst [vmem:[#allocation3 + $0x248] sm:$0xff] %v816
    %1090 = vst [vmem:[#allocation3 + $0x250] sm:$0xff] %v878
    %1091 = vst [vmem:[#allocation3 + $0x258] sm:$0xff] %v940
    %1092 = vst [vmem:[#allocation3 + $0x260] sm:$0xff] %v1002
    %1093 = vst [vmem:[#allocation3 + $0x268] sm:$0xff] %v633
    %1094 = vst [vmem:[#allocation3 + $0x270] sm:$0xff] %v695
    %1095 = vst [vmem:[#allocation3 + $0x278] sm:$0xff] %v757
    %1096 = vst [vmem:[#allocation3 + $0x280] sm:$0xff] %v819
    %1097 = vst [vmem:[#allocation3 + $0x288] sm:$0xff] %v881
    %1098 = vst [vmem:[#allocation3 + $0x290] sm:$0xff] %v943
    %1099 = vst [vmem:[#allocation3 + $0x298] sm:$0xff] %v1005
    %1100 = vst [vmem:[#allocation3 + $0x2a0] sm:$0xff] %v636
    %1101 = vst [vmem:[#allocation3 + $0x2a8] sm:$0xff] %v698
    %1102 = vst [vmem:[#allocation3 + $0x2b0] sm:$0xff] %v760
    %1103 = vst [vmem:[#allocation3 + $0x2b8] sm:$0xff] %v822
    %1104 = vst [vmem:[#allocation3 + $0x2c0] sm:$0xff] %v884
    %1105 = vst [vmem:[#allocation3 + $0x2c8] sm:$0xff] %v946
    %1106 = vst [vmem:[#allocation3 + $0x2d0] sm:$0xff] %v1008
    %1107 = vst [vmem:[#allocation3 + $0x2d8] sm:$0xff] %v639
    %1108 = vst [vmem:[#allocation3 + $0x2e0] sm:$0xff] %v701
    %1109 = vst [vmem:[#allocation3 + $0x2e8] sm:$0xff] %v763
    %1110 = vst [vmem:[#allocation3 + $0x2f0] sm:$0xff] %v825
    %1111 = vst [vmem:[#allocation3 + $0x2f8] sm:$0xff] %v887
    %1112 = vst [vmem:[#allocation3 + $0x300] sm:$0xff] %v949
    %1113 = vst [vmem:[#allocation3 + $0x308] sm:$0xff] %v1011
    %1114 = vst [vmem:[#allocation3 + $0x310] sm:$0xff] %v642
    %1115 = vst [vmem:[#allocation3 + $0x318] sm:$0xff] %v704
    %1116 = vst [vmem:[#allocation3 + $0x320] sm:$0xff] %v766
    %1117 = vst [vmem:[#allocation3 + $0x328] sm:$0xff] %v828
    %1118 = vst [vmem:[#allocation3 + $0x330] sm:$0xff] %v890
    %1119 = vst [vmem:[#allocation3 + $0x338] sm:$0xff] %v952
    %1120 = vst [vmem:[#allocation3 + $0x340] sm:$0xff] %v1014
    %v1121 = vld [vmem:[#allocation3] sm:$0xff]
    %v1122 = vld [vmem:[#allocation3 + $0x8] sm:$0xff]
    %v1123 = vld [vmem:[#allocation3 + $0x10] sm:$0xff]
    %v1124 = vld [vmem:[#allocation3 + $0x18] sm:$0xff]
    %v1125 = vld [vmem:[#allocation3 + $0x20] sm:$0xff]
    %v1126 = vld [vmem:[#allocation3 + $0x28] sm:$0xff]
    %v1127 = vld [vmem:[#allocation3 + $0x30] sm:$0xff]
    %v1128 = vadd.f32 %v1121, 0.0
    %v1129 = vadd.f32 %v1122, 0.0
    %v1130 = vadd.f32 %v1123, 0.0
    %v1131 = vadd.f32 %v1124, 0.0
    %v1132 = vadd.f32 %v1125, 0.0
    %v1133 = vadd.f32 %v1126, 0.0
    %v1134 = vadd.f32 %v1127, 0.0
    %vm1135 = vcmp.gt.f32.partialorder %v1128, 1.0
    %vm1136 = vcmp.gt.f32.partialorder %v1129, 1.0
    %vm1137 = vcmp.gt.f32.partialorder %v1130, 1.0
    %vm1138 = vcmp.gt.f32.partialorder %v1131, 1.0
    %vm1139 = vcmp.gt.f32.partialorder %v1132, 1.0
    %vm1140 = vcmp.gt.f32.partialorder %v1133, 1.0
    %vm1141 = vcmp.gt.f32.partialorder %v1134, 1.0
    %v1142 = vsel %vm1135, 1, 0
    %v1143 = vsel %vm1136, 1, 0
    %v1144 = vsel %vm1137, 1, 0
    %v1145 = vsel %vm1138, 1, 0
    %v1146 = vsel %vm1139, 1, 0
    %v1147 = vsel %vm1140, 1, 0
    %v1148 = vsel %vm1141, 1, 0
    %v1149 = vcvt.s32.f32 %v1142
    %v1150 = vcvt.s32.f32 %v1143
    %v1151 = vcvt.s32.f32 %v1144
    %v1152 = vcvt.s32.f32 %v1145
    %v1153 = vcvt.s32.f32 %v1146
    %v1154 = vcvt.s32.f32 %v1147
    %v1155 = vcvt.s32.f32 %v1148
    %1156 = vst [vmem:[#allocation12] sm:$0xff] %v1149
    %1157 = vst [vmem:[#allocation12 + $0x8] sm:$0xff] %v1150
    %1158 = vst [vmem:[#allocation12 + $0x10] sm:$0xff] %v1151
    %1159 = vst [vmem:[#allocation12 + $0x18] sm:$0xff] %v1152
    %1160 = vst [vmem:[#allocation12 + $0x20] sm:$0xff] %v1153
    %1161 = vst [vmem:[#allocation12 + $0x28] sm:$0xff] %v1154
    %1162 = vst [vmem:[#allocation12 + $0x30] sm:$0xff] %v1155
    %1163 = vst [vmem:[#allocation13] sm:$0xff] %v1128
    %1164 = vst [vmem:[#allocation13 + $0x8] sm:$0xff] %v1129
    %1165 = vst [vmem:[#allocation13 + $0x10] sm:$0xff] %v1130
    %1166 = vst [vmem:[#allocation13 + $0x18] sm:$0xff] %v1131
    %1167 = vst [vmem:[#allocation13 + $0x20] sm:$0xff] %v1132
    %1168 = vst [vmem:[#allocation13 + $0x28] sm:$0xff] %v1133
    %1169 = vst [vmem:[#allocation13 + $0x30] sm:$0xff] %v1134
    %v1170 = vld [vmem:[#allocation3 + $0x38] sm:$0xff]
    %v1171 = vld [vmem:[#allocation3 + $0x40] sm:$0xff]
    %v1172 = vld [vmem:[#allocation3 + $0x48] sm:$0xff]
    %v1173 = vld [vmem:[#allocation3 + $0x50] sm:$0xff]
    %v1174 = vld [vmem:[#allocation3 + $0x58] sm:$0xff]
    %v1175 = vld [vmem:[#allocation3 + $0x60] sm:$0xff]
    %v1176 = vld [vmem:[#allocation3 + $0x68] sm:$0xff]
    %v1177 = vmul.f32 %v1128, 0.9
    %v1178 = vmul.f32 %v1129, 0.9
    %v1179 = vmul.f32 %v1130, 0.9
    %v1180 = vmul.f32 %v1131, 0.9
    %v1181 = vmul.f32 %v1132, 0.9
    %v1182 = vmul.f32 %v1133, 0.9
    %v1183 = vmul.f32 %v1134, 0.9
    %v1184 = vadd.f32 %v1177, %v1170
    %v1185 = vadd.f32 %v1178, %v1171
    %v1186 = vadd.f32 %v1179, %v1172
    %v1187 = vadd.f32 %v1180, %v1173
    %v1188 = vadd.f32 %v1181, %v1174
    %v1189 = vadd.f32 %v1182, %v1175
    %v1190 = vadd.f32 %v1183, %v1176
    %v1191 = vsub.f32 %v1184, %v1149
    %v1192 = vsub.f32 %v1185, %v1150
    %v1193 = vsub.f32 %v1186, %v1151
    %v1194 = vsub.f32 %v1187, %v1152
    %v1195 = vsub.f32 %v1188, %v1153
    %v1196 = vsub.f32 %v1189, %v1154
    %v1197 = vsub.f32 %v1190, %v1155
    %vm1198 = vcmp.gt.f32.partialorder %v1191, 1.0
    %vm1199 = vcmp.gt.f32.partialorder %v1192, 1.0
    %vm1200 = vcmp.gt.f32.partialorder %v1193, 1.0
    %vm1201 = vcmp.gt.f32.partialorder %v1194, 1.0
    %vm1202 = vcmp.gt.f32.partialorder %v1195, 1.0
    %vm1203 = vcmp.gt.f32.partialorder %v1196, 1.0
    %vm1204 = vcmp.gt.f32.partialorder %v1197, 1.0
    %v1205 = vsel %vm1198, 1, 0
    %v1206 = vsel %vm1199, 1, 0
    %v1207 = vsel %vm1200, 1, 0
    %v1208 = vsel %vm1201, 1, 0
    %v1209 = vsel %vm1202, 1, 0
    %v1210 = vsel %vm1203, 1, 0
    %v1211 = vsel %vm1204, 1, 0
    %v1212 = vcvt.s32.f32 %v1205
    %v1213 = vcvt.s32.f32 %v1206
    %v1214 = vcvt.s32.f32 %v1207
    %v1215 = vcvt.s32.f32 %v1208
    %v1216 = vcvt.s32.f32 %v1209
    %v1217 = vcvt.s32.f32 %v1210
    %v1218 = vcvt.s32.f32 %v1211
    %s1219 = scalar_lea.vmem [#allocation12], 56
    %1220 = vst [vmem:[%s1219] sm:$0xff] %v1212
    %1221 = vst [vmem:[%s1219 + $0x8] sm:$0xff] %v1213
    %1222 = vst [vmem:[%s1219 + $0x10] sm:$0xff] %v1214
    %1223 = vst [vmem:[%s1219 + $0x18] sm:$0xff] %v1215
    %1224 = vst [vmem:[%s1219 + $0x20] sm:$0xff] %v1216
    %1225 = vst [vmem:[%s1219 + $0x28] sm:$0xff] %v1217
    %1226 = vst [vmem:[%s1219 + $0x30] sm:$0xff] %v1218
    %s1227 = scalar_lea.vmem [#allocation13], 56
    %1228 = vst [vmem:[%s1227] sm:$0xff] %v1191
    %1229 = vst [vmem:[%s1227 + $0x8] sm:$0xff] %v1192
    %1230 = vst [vmem:[%s1227 + $0x10] sm:$0xff] %v1193
    %1231 = vst [vmem:[%s1227 + $0x18] sm:$0xff] %v1194
    %1232 = vst [vmem:[%s1227 + $0x20] sm:$0xff] %v1195
    %1233 = vst [vmem:[%s1227 + $0x28] sm:$0xff] %v1196
    %1234 = vst [vmem:[%s1227 + $0x30] sm:$0xff] %v1197
    %v1235 = vld [vmem:[#allocation3 + $0x70] sm:$0xff]
    %v1236 = vld [vmem:[#allocation3 + $0x78] sm:$0xff]
    %v1237 = vld [vmem:[#allocation3 + $0x80] sm:$0xff]
    %v1238 = vld [vmem:[#allocation3 + $0x88] sm:$0xff]
    %v1239 = vld [vmem:[#allocation3 + $0x90] sm:$0xff]
    %v1240 = vld [vmem:[#allocation3 + $0x98] sm:$0xff]
    %v1241 = vld [vmem:[#allocation3 + $0xa0] sm:$0xff]
    %v1242 = vmul.f32 %v1191, 0.9
    %v1243 = vmul.f32 %v1192, 0.9
    %v1244 = vmul.f32 %v1193, 0.9
    %v1245 = vmul.f32 %v1194, 0.9
    %v1246 = vmul.f32 %v1195, 0.9
    %v1247 = vmul.f32 %v1196, 0.9
    %v1248 = vmul.f32 %v1197, 0.9
    %v1249 = vadd.f32 %v1242, %v1235
    %v1250 = vadd.f32 %v1243, %v1236
    %v1251 = vadd.f32 %v1244, %v1237
    %v1252 = vadd.f32 %v1245, %v1238
    %v1253 = vadd.f32 %v1246, %v1239
    %v1254 = vadd.f32 %v1247, %v1240
    %v1255 = vadd.f32 %v1248, %v1241
    %v1256 = vsub.f32 %v1249, %v1212
    %v1257 = vsub.f32 %v1250, %v1213
    %v1258 = vsub.f32 %v1251, %v1214
    %v1259 = vsub.f32 %v1252, %v1215
    %v1260 = vsub.f32 %v1253, %v1216
    %v1261 = vsub.f32 %v1254, %v1217
    %v1262 = vsub.f32 %v1255, %v1218
    %vm1263 = vcmp.gt.f32.partialorder %v1256, 1.0
    %vm1264 = vcmp.gt.f32.partialorder %v1257, 1.0
    %vm1265 = vcmp.gt.f32.partialorder %v1258, 1.0
    %vm1266 = vcmp.gt.f32.partialorder %v1259, 1.0
    %vm1267 = vcmp.gt.f32.partialorder %v1260, 1.0
    %vm1268 = vcmp.gt.f32.partialorder %v1261, 1.0
    %vm1269 = vcmp.gt.f32.partialorder %v1262, 1.0
    %v1270 = vsel %vm1263, 1, 0
    %v1271 = vsel %vm1264, 1, 0
    %v1272 = vsel %vm1265, 1, 0
    %v1273 = vsel %vm1266, 1, 0
    %v1274 = vsel %vm1267, 1, 0
    %v1275 = vsel %vm1268, 1, 0
    %v1276 = vsel %vm1269, 1, 0
    %v1277 = vcvt.s32.f32 %v1270
    %v1278 = vcvt.s32.f32 %v1271
    %v1279 = vcvt.s32.f32 %v1272
    %v1280 = vcvt.s32.f32 %v1273
    %v1281 = vcvt.s32.f32 %v1274
    %v1282 = vcvt.s32.f32 %v1275
    %v1283 = vcvt.s32.f32 %v1276
    %s1284 = scalar_lea.vmem [#allocation12], 112
    %1285 = vst [vmem:[%s1284] sm:$0xff] %v1277
    %1286 = vst [vmem:[%s1284 + $0x8] sm:$0xff] %v1278
    %1287 = vst [vmem:[%s1284 + $0x10] sm:$0xff] %v1279
    %1288 = vst [vmem:[%s1284 + $0x18] sm:$0xff] %v1280
    %1289 = vst [vmem:[%s1284 + $0x20] sm:$0xff] %v1281
    %1290 = vst [vmem:[%s1284 + $0x28] sm:$0xff] %v1282
    %1291 = vst [vmem:[%s1284 + $0x30] sm:$0xff] %v1283
    %s1292 = scalar_lea.vmem [#allocation13], 112
    %1293 = vst [vmem:[%s1292] sm:$0xff] %v1256
    %1294 = vst [vmem:[%s1292 + $0x8] sm:$0xff] %v1257
    %1295 = vst [vmem:[%s1292 + $0x10] sm:$0xff] %v1258
    %1296 = vst [vmem:[%s1292 + $0x18] sm:$0xff] %v1259
    %1297 = vst [vmem:[%s1292 + $0x20] sm:$0xff] %v1260
    %1298 = vst [vmem:[%s1292 + $0x28] sm:$0xff] %v1261
    %1299 = vst [vmem:[%s1292 + $0x30] sm:$0xff] %v1262
    %v1300 = vld [vmem:[#allocation3 + $0xa8] sm:$0xff]
    %v1301 = vld [vmem:[#allocation3 + $0xb0] sm:$0xff]
    %v1302 = vld [vmem:[#allocation3 + $0xb8] sm:$0xff]
    %v1303 = vld [vmem:[#allocation3 + $0xc0] sm:$0xff]
    %v1304 = vld [vmem:[#allocation3 + $0xc8] sm:$0xff]
    %v1305 = vld [vmem:[#allocation3 + $0xd0] sm:$0xff]
    %v1306 = vld [vmem:[#allocation3 + $0xd8] sm:$0xff]
    %v1307 = vmul.f32 %v1256, 0.9
    %v1308 = vmul.f32 %v1257, 0.9
    %v1309 = vmul.f32 %v1258, 0.9
    %v1310 = vmul.f32 %v1259, 0.9
    %v1311 = vmul.f32 %v1260, 0.9
    %v1312 = vmul.f32 %v1261, 0.9
    %v1313 = vmul.f32 %v1262, 0.9
    %v1314 = vadd.f32 %v1307, %v1300
    %v1315 = vadd.f32 %v1308, %v1301
    %v1316 = vadd.f32 %v1309, %v1302
    %v1317 = vadd.f32 %v1310, %v1303
    %v1318 = vadd.f32 %v1311, %v1304
    %v1319 = vadd.f32 %v1312, %v1305
    %v1320 = vadd.f32 %v1313, %v1306
    %v1321 = vsub.f32 %v1314, %v1277
    %v1322 = vsub.f32 %v1315, %v1278
    %v1323 = vsub.f32 %v1316, %v1279
    %v1324 = vsub.f32 %v1317, %v1280
    %v1325 = vsub.f32 %v1318, %v1281
    %v1326 = vsub.f32 %v1319, %v1282
    %v1327 = vsub.f32 %v1320, %v1283
    %vm1328 = vcmp.gt.f32.partialorder %v1321, 1.0
    %vm1329 = vcmp.gt.f32.partialorder %v1322, 1.0
    %vm1330 = vcmp.gt.f32.partialorder %v1323, 1.0
    %vm1331 = vcmp.gt.f32.partialorder %v1324, 1.0
    %vm1332 = vcmp.gt.f32.partialorder %v1325, 1.0
    %vm1333 = vcmp.gt.f32.partialorder %v1326, 1.0
    %vm1334 = vcmp.gt.f32.partialorder %v1327, 1.0
    %v1335 = vsel %vm1328, 1, 0
    %v1336 = vsel %vm1329, 1, 0
    %v1337 = vsel %vm1330, 1, 0
    %v1338 = vsel %vm1331, 1, 0
    %v1339 = vsel %vm1332, 1, 0
    %v1340 = vsel %vm1333, 1, 0
    %v1341 = vsel %vm1334, 1, 0
    %v1342 = vcvt.s32.f32 %v1335
    %v1343 = vcvt.s32.f32 %v1336
    %v1344 = vcvt.s32.f32 %v1337
    %v1345 = vcvt.s32.f32 %v1338
    %v1346 = vcvt.s32.f32 %v1339
    %v1347 = vcvt.s32.f32 %v1340
    %v1348 = vcvt.s32.f32 %v1341
    %s1349 = scalar_lea.vmem [#allocation12], 168
    %1350 = vst [vmem:[%s1349] sm:$0xff] %v1342
    %1351 = vst [vmem:[%s1349 + $0x8] sm:$0xff] %v1343
    %1352 = vst [vmem:[%s1349 + $0x10] sm:$0xff] %v1344
    %1353 = vst [vmem:[%s1349 + $0x18] sm:$0xff] %v1345
    %1354 = vst [vmem:[%s1349 + $0x20] sm:$0xff] %v1346
    %1355 = vst [vmem:[%s1349 + $0x28] sm:$0xff] %v1347
    %1356 = vst [vmem:[%s1349 + $0x30] sm:$0xff] %v1348
    %s1357 = scalar_lea.vmem [#allocation13], 168
    %1358 = vst [vmem:[%s1357] sm:$0xff] %v1321
    %1359 = vst [vmem:[%s1357 + $0x8] sm:$0xff] %v1322
    %1360 = vst [vmem:[%s1357 + $0x10] sm:$0xff] %v1323
    %1361 = vst [vmem:[%s1357 + $0x18] sm:$0xff] %v1324
    %1362 = vst [vmem:[%s1357 + $0x20] sm:$0xff] %v1325
    %1363 = vst [vmem:[%s1357 + $0x28] sm:$0xff] %v1326
    %1364 = vst [vmem:[%s1357 + $0x30] sm:$0xff] %v1327
    %v1365 = vld [vmem:[#allocation3 + $0xe0] sm:$0xff]
    %v1366 = vld [vmem:[#allocation3 + $0xe8] sm:$0xff]
    %v1367 = vld [vmem:[#allocation3 + $0xf0] sm:$0xff]
    %v1368 = vld [vmem:[#allocation3 + $0xf8] sm:$0xff]
    %v1369 = vld [vmem:[#allocation3 + $0x100] sm:$0xff]
    %v1370 = vld [vmem:[#allocation3 + $0x108] sm:$0xff]
    %v1371 = vld [vmem:[#allocation3 + $0x110] sm:$0xff]
    %v1372 = vmul.f32 %v1321, 0.9
    %v1373 = vmul.f32 %v1322, 0.9
    %v1374 = vmul.f32 %v1323, 0.9
    %v1375 = vmul.f32 %v1324, 0.9
    %v1376 = vmul.f32 %v1325, 0.9
    %v1377 = vmul.f32 %v1326, 0.9
    %v1378 = vmul.f32 %v1327, 0.9
    %v1379 = vadd.f32 %v1372, %v1365
    %v1380 = vadd.f32 %v1373, %v1366
    %v1381 = vadd.f32 %v1374, %v1367
    %v1382 = vadd.f32 %v1375, %v1368
    %v1383 = vadd.f32 %v1376, %v1369
    %v1384 = vadd.f32 %v1377, %v1370
    %v1385 = vadd.f32 %v1378, %v1371
    %v1386 = vsub.f32 %v1379, %v1342
    %v1387 = vsub.f32 %v1380, %v1343
    %v1388 = vsub.f32 %v1381, %v1344
    %v1389 = vsub.f32 %v1382, %v1345
    %v1390 = vsub.f32 %v1383, %v1346
    %v1391 = vsub.f32 %v1384, %v1347
    %v1392 = vsub.f32 %v1385, %v1348
    %vm1393 = vcmp.gt.f32.partialorder %v1386, 1.0
    %vm1394 = vcmp.gt.f32.partialorder %v1387, 1.0
    %vm1395 = vcmp.gt.f32.partialorder %v1388, 1.0
    %vm1396 = vcmp.gt.f32.partialorder %v1389, 1.0
    %vm1397 = vcmp.gt.f32.partialorder %v1390, 1.0
    %vm1398 = vcmp.gt.f32.partialorder %v1391, 1.0
    %vm1399 = vcmp.gt.f32.partialorder %v1392, 1.0
    %v1400 = vsel %vm1393, 1, 0
    %v1401 = vsel %vm1394, 1, 0
    %v1402 = vsel %vm1395, 1, 0
    %v1403 = vsel %vm1396, 1, 0
    %v1404 = vsel %vm1397, 1, 0
    %v1405 = vsel %vm1398, 1, 0
    %v1406 = vsel %vm1399, 1, 0
    %v1407 = vcvt.s32.f32 %v1400
    %v1408 = vcvt.s32.f32 %v1401
    %v1409 = vcvt.s32.f32 %v1402
    %v1410 = vcvt.s32.f32 %v1403
    %v1411 = vcvt.s32.f32 %v1404
    %v1412 = vcvt.s32.f32 %v1405
    %v1413 = vcvt.s32.f32 %v1406
    %s1414 = scalar_lea.vmem [#allocation12], 224
    %1415 = vst [vmem:[%s1414] sm:$0xff] %v1407
    %1416 = vst [vmem:[%s1414 + $0x8] sm:$0xff] %v1408
    %1417 = vst [vmem:[%s1414 + $0x10] sm:$0xff] %v1409
    %1418 = vst [vmem:[%s1414 + $0x18] sm:$0xff] %v1410
    %1419 = vst [vmem:[%s1414 + $0x20] sm:$0xff] %v1411
    %1420 = vst [vmem:[%s1414 + $0x28] sm:$0xff] %v1412
    %1421 = vst [vmem:[%s1414 + $0x30] sm:$0xff] %v1413
    %s1422 = scalar_lea.vmem [#allocation13], 224
    %1423 = vst [vmem:[%s1422] sm:$0xff] %v1386
    %1424 = vst [vmem:[%s1422 + $0x8] sm:$0xff] %v1387
    %1425 = vst [vmem:[%s1422 + $0x10] sm:$0xff] %v1388
    %1426 = vst [vmem:[%s1422 + $0x18] sm:$0xff] %v1389
    %1427 = vst [vmem:[%s1422 + $0x20] sm:$0xff] %v1390
    %1428 = vst [vmem:[%s1422 + $0x28] sm:$0xff] %v1391
    %1429 = vst [vmem:[%s1422 + $0x30] sm:$0xff] %v1392
    %v1430 = vld [vmem:[#allocation3 + $0x118] sm:$0xff]
    %v1431 = vld [vmem:[#allocation3 + $0x120] sm:$0xff]
    %v1432 = vld [vmem:[#allocation3 + $0x128] sm:$0xff]
    %v1433 = vld [vmem:[#allocation3 + $0x130] sm:$0xff]
    %v1434 = vld [vmem:[#allocation3 + $0x138] sm:$0xff]
    %v1435 = vld [vmem:[#allocation3 + $0x140] sm:$0xff]
    %v1436 = vld [vmem:[#allocation3 + $0x148] sm:$0xff]
    %v1437 = vmul.f32 %v1386, 0.9
    %v1438 = vmul.f32 %v1387, 0.9
    %v1439 = vmul.f32 %v1388, 0.9
    %v1440 = vmul.f32 %v1389, 0.9
    %v1441 = vmul.f32 %v1390, 0.9
    %v1442 = vmul.f32 %v1391, 0.9
    %v1443 = vmul.f32 %v1392, 0.9
    %v1444 = vadd.f32 %v1437, %v1430
    %v1445 = vadd.f32 %v1438, %v1431
    %v1446 = vadd.f32 %v1439, %v1432
    %v1447 = vadd.f32 %v1440, %v1433
    %v1448 = vadd.f32 %v1441, %v1434
    %v1449 = vadd.f32 %v1442, %v1435
    %v1450 = vadd.f32 %v1443, %v1436
    %v1451 = vsub.f32 %v1444, %v1407
    %v1452 = vsub.f32 %v1445, %v1408
    %v1453 = vsub.f32 %v1446, %v1409
    %v1454 = vsub.f32 %v1447, %v1410
    %v1455 = vsub.f32 %v1448, %v1411
    %v1456 = vsub.f32 %v1449, %v1412
    %v1457 = vsub.f32 %v1450, %v1413
    %vm1458 = vcmp.gt.f32.partialorder %v1451, 1.0
    %vm1459 = vcmp.gt.f32.partialorder %v1452, 1.0
    %vm1460 = vcmp.gt.f32.partialorder %v1453, 1.0
    %vm1461 = vcmp.gt.f32.partialorder %v1454, 1.0
    %vm1462 = vcmp.gt.f32.partialorder %v1455, 1.0
    %vm1463 = vcmp.gt.f32.partialorder %v1456, 1.0
    %vm1464 = vcmp.gt.f32.partialorder %v1457, 1.0
    %v1465 = vsel %vm1458, 1, 0
    %v1466 = vsel %vm1459, 1, 0
    %v1467 = vsel %vm1460, 1, 0
    %v1468 = vsel %vm1461, 1, 0
    %v1469 = vsel %vm1462, 1, 0
    %v1470 = vsel %vm1463, 1, 0
    %v1471 = vsel %vm1464, 1, 0
    %v1472 = vcvt.s32.f32 %v1465
    %v1473 = vcvt.s32.f32 %v1466
    %v1474 = vcvt.s32.f32 %v1467
    %v1475 = vcvt.s32.f32 %v1468
    %v1476 = vcvt.s32.f32 %v1469
    %v1477 = vcvt.s32.f32 %v1470
    %v1478 = vcvt.s32.f32 %v1471
    %s1479 = scalar_lea.vmem [#allocation12], 280
    %1480 = vst [vmem:[%s1479] sm:$0xff] %v1472
    %1481 = vst [vmem:[%s1479 + $0x8] sm:$0xff] %v1473
    %1482 = vst [vmem:[%s1479 + $0x10] sm:$0xff] %v1474
    %1483 = vst [vmem:[%s1479 + $0x18] sm:$0xff] %v1475
    %1484 = vst [vmem:[%s1479 + $0x20] sm:$0xff] %v1476
    %1485 = vst [vmem:[%s1479 + $0x28] sm:$0xff] %v1477
    %1486 = vst [vmem:[%s1479 + $0x30] sm:$0xff] %v1478
    %s1487 = scalar_lea.vmem [#allocation13], 280
    %1488 = vst [vmem:[%s1487] sm:$0xff] %v1451
    %1489 = vst [vmem:[%s1487 + $0x8] sm:$0xff] %v1452
    %1490 = vst [vmem:[%s1487 + $0x10] sm:$0xff] %v1453
    %1491 = vst [vmem:[%s1487 + $0x18] sm:$0xff] %v1454
    %1492 = vst [vmem:[%s1487 + $0x20] sm:$0xff] %v1455
    %1493 = vst [vmem:[%s1487 + $0x28] sm:$0xff] %v1456
    %1494 = vst [vmem:[%s1487 + $0x30] sm:$0xff] %v1457
    %v1495 = vld [vmem:[#allocation3 + $0x150] sm:$0xff]
    %v1496 = vld [vmem:[#allocation3 + $0x158] sm:$0xff]
    %v1497 = vld [vmem:[#allocation3 + $0x160] sm:$0xff]
    %v1498 = vld [vmem:[#allocation3 + $0x168] sm:$0xff]
    %v1499 = vld [vmem:[#allocation3 + $0x170] sm:$0xff]
    %v1500 = vld [vmem:[#allocation3 + $0x178] sm:$0xff]
    %v1501 = vld [vmem:[#allocation3 + $0x180] sm:$0xff]
    %v1502 = vmul.f32 %v1451, 0.9
    %v1503 = vmul.f32 %v1452, 0.9
    %v1504 = vmul.f32 %v1453, 0.9
    %v1505 = vmul.f32 %v1454, 0.9
    %v1506 = vmul.f32 %v1455, 0.9
    %v1507 = vmul.f32 %v1456, 0.9
    %v1508 = vmul.f32 %v1457, 0.9
    %v1509 = vadd.f32 %v1502, %v1495
    %v1510 = vadd.f32 %v1503, %v1496
    %v1511 = vadd.f32 %v1504, %v1497
    %v1512 = vadd.f32 %v1505, %v1498
    %v1513 = vadd.f32 %v1506, %v1499
    %v1514 = vadd.f32 %v1507, %v1500
    %v1515 = vadd.f32 %v1508, %v1501
    %v1516 = vsub.f32 %v1509, %v1472
    %v1517 = vsub.f32 %v1510, %v1473
    %v1518 = vsub.f32 %v1511, %v1474
    %v1519 = vsub.f32 %v1512, %v1475
    %v1520 = vsub.f32 %v1513, %v1476
    %v1521 = vsub.f32 %v1514, %v1477
    %v1522 = vsub.f32 %v1515, %v1478
    %vm1523 = vcmp.gt.f32.partialorder %v1516, 1.0
    %vm1524 = vcmp.gt.f32.partialorder %v1517, 1.0
    %vm1525 = vcmp.gt.f32.partialorder %v1518, 1.0
    %vm1526 = vcmp.gt.f32.partialorder %v1519, 1.0
    %vm1527 = vcmp.gt.f32.partialorder %v1520, 1.0
    %vm1528 = vcmp.gt.f32.partialorder %v1521, 1.0
    %vm1529 = vcmp.gt.f32.partialorder %v1522, 1.0
    %v1530 = vsel %vm1523, 1, 0
    %v1531 = vsel %vm1524, 1, 0
    %v1532 = vsel %vm1525, 1, 0
    %v1533 = vsel %vm1526, 1, 0
    %v1534 = vsel %vm1527, 1, 0
    %v1535 = vsel %vm1528, 1, 0
    %v1536 = vsel %vm1529, 1, 0
    %v1537 = vcvt.s32.f32 %v1530
    %v1538 = vcvt.s32.f32 %v1531
    %v1539 = vcvt.s32.f32 %v1532
    %v1540 = vcvt.s32.f32 %v1533
    %v1541 = vcvt.s32.f32 %v1534
    %v1542 = vcvt.s32.f32 %v1535
    %v1543 = vcvt.s32.f32 %v1536
    %s1544 = scalar_lea.vmem [#allocation12], 336
    %1545 = vst [vmem:[%s1544] sm:$0xff] %v1537
    %1546 = vst [vmem:[%s1544 + $0x8] sm:$0xff] %v1538
    %1547 = vst [vmem:[%s1544 + $0x10] sm:$0xff] %v1539
    %1548 = vst [vmem:[%s1544 + $0x18] sm:$0xff] %v1540
    %1549 = vst [vmem:[%s1544 + $0x20] sm:$0xff] %v1541
    %1550 = vst [vmem:[%s1544 + $0x28] sm:$0xff] %v1542
    %1551 = vst [vmem:[%s1544 + $0x30] sm:$0xff] %v1543
    %s1552 = scalar_lea.vmem [#allocation13], 336
    %1553 = vst [vmem:[%s1552] sm:$0xff] %v1516
    %1554 = vst [vmem:[%s1552 + $0x8] sm:$0xff] %v1517
    %1555 = vst [vmem:[%s1552 + $0x10] sm:$0xff] %v1518
    %1556 = vst [vmem:[%s1552 + $0x18] sm:$0xff] %v1519
    %1557 = vst [vmem:[%s1552 + $0x20] sm:$0xff] %v1520
    %1558 = vst [vmem:[%s1552 + $0x28] sm:$0xff] %v1521
    %1559 = vst [vmem:[%s1552 + $0x30] sm:$0xff] %v1522
    %v1560 = vld [vmem:[#allocation3 + $0x188] sm:$0xff]
    %v1561 = vld [vmem:[#allocation3 + $0x190] sm:$0xff]
    %v1562 = vld [vmem:[#allocation3 + $0x198] sm:$0xff]
    %v1563 = vld [vmem:[#allocation3 + $0x1a0] sm:$0xff]
    %v1564 = vld [vmem:[#allocation3 + $0x1a8] sm:$0xff]
    %v1565 = vld [vmem:[#allocation3 + $0x1b0] sm:$0xff]
    %v1566 = vld [vmem:[#allocation3 + $0x1b8] sm:$0xff]
    %v1567 = vmul.f32 %v1516, 0.9
    %v1568 = vmul.f32 %v1517, 0.9
    %v1569 = vmul.f32 %v1518, 0.9
    %v1570 = vmul.f32 %v1519, 0.9
    %v1571 = vmul.f32 %v1520, 0.9
    %v1572 = vmul.f32 %v1521, 0.9
    %v1573 = vmul.f32 %v1522, 0.9
    %v1574 = vadd.f32 %v1567, %v1560
    %v1575 = vadd.f32 %v1568, %v1561
    %v1576 = vadd.f32 %v1569, %v1562
    %v1577 = vadd.f32 %v1570, %v1563
    %v1578 = vadd.f32 %v1571, %v1564
    %v1579 = vadd.f32 %v1572, %v1565
    %v1580 = vadd.f32 %v1573, %v1566
    %v1581 = vsub.f32 %v1574, %v1537
    %v1582 = vsub.f32 %v1575, %v1538
    %v1583 = vsub.f32 %v1576, %v1539
    %v1584 = vsub.f32 %v1577, %v1540
    %v1585 = vsub.f32 %v1578, %v1541
    %v1586 = vsub.f32 %v1579, %v1542
    %v1587 = vsub.f32 %v1580, %v1543
    %vm1588 = vcmp.gt.f32.partialorder %v1581, 1.0
    %vm1589 = vcmp.gt.f32.partialorder %v1582, 1.0
    %vm1590 = vcmp.gt.f32.partialorder %v1583, 1.0
    %vm1591 = vcmp.gt.f32.partialorder %v1584, 1.0
    %vm1592 = vcmp.gt.f32.partialorder %v1585, 1.0
    %vm1593 = vcmp.gt.f32.partialorder %v1586, 1.0
    %vm1594 = vcmp.gt.f32.partialorder %v1587, 1.0
    %v1595 = vsel %vm1588, 1, 0
    %v1596 = vsel %vm1589, 1, 0
    %v1597 = vsel %vm1590, 1, 0
    %v1598 = vsel %vm1591, 1, 0
    %v1599 = vsel %vm1592, 1, 0
    %v1600 = vsel %vm1593, 1, 0
    %v1601 = vsel %vm1594, 1, 0
    %v1602 = vcvt.s32.f32 %v1595
    %v1603 = vcvt.s32.f32 %v1596
    %v1604 = vcvt.s32.f32 %v1597
    %v1605 = vcvt.s32.f32 %v1598
    %v1606 = vcvt.s32.f32 %v1599
    %v1607 = vcvt.s32.f32 %v1600
    %v1608 = vcvt.s32.f32 %v1601
    %s1609 = scalar_lea.vmem [#allocation12], 392
    %1610 = vst [vmem:[%s1609] sm:$0xff] %v1602
    %1611 = vst [vmem:[%s1609 + $0x8] sm:$0xff] %v1603
    %1612 = vst [vmem:[%s1609 + $0x10] sm:$0xff] %v1604
    %1613 = vst [vmem:[%s1609 + $0x18] sm:$0xff] %v1605
    %1614 = vst [vmem:[%s1609 + $0x20] sm:$0xff] %v1606
    %1615 = vst [vmem:[%s1609 + $0x28] sm:$0xff] %v1607
    %1616 = vst [vmem:[%s1609 + $0x30] sm:$0xff] %v1608
    %s1617 = scalar_lea.vmem [#allocation13], 392
    %1618 = vst [vmem:[%s1617] sm:$0xff] %v1581
    %1619 = vst [vmem:[%s1617 + $0x8] sm:$0xff] %v1582
    %1620 = vst [vmem:[%s1617 + $0x10] sm:$0xff] %v1583
    %1621 = vst [vmem:[%s1617 + $0x18] sm:$0xff] %v1584
    %1622 = vst [vmem:[%s1617 + $0x20] sm:$0xff] %v1585
    %1623 = vst [vmem:[%s1617 + $0x28] sm:$0xff] %v1586
    %1624 = vst [vmem:[%s1617 + $0x30] sm:$0xff] %v1587
    %v1625 = vld [vmem:[#allocation3 + $0x1c0] sm:$0xff]
    %v1626 = vld [vmem:[#allocation3 + $0x1c8] sm:$0xff]
    %v1627 = vld [vmem:[#allocation3 + $0x1d0] sm:$0xff]
    %v1628 = vld [vmem:[#allocation3 + $0x1d8] sm:$0xff]
    %v1629 = vld [vmem:[#allocation3 + $0x1e0] sm:$0xff]
    %v1630 = vld [vmem:[#allocation3 + $0x1e8] sm:$0xff]
    %v1631 = vld [vmem:[#allocation3 + $0x1f0] sm:$0xff]
    %v1632 = vmul.f32 %v1581, 0.9
    %v1633 = vmul.f32 %v1582, 0.9
    %v1634 = vmul.f32 %v1583, 0.9
    %v1635 = vmul.f32 %v1584, 0.9
    %v1636 = vmul.f32 %v1585, 0.9
    %v1637 = vmul.f32 %v1586, 0.9
    %v1638 = vmul.f32 %v1587, 0.9
    %v1639 = vadd.f32 %v1632, %v1625
    %v1640 = vadd.f32 %v1633, %v1626
    %v1641 = vadd.f32 %v1634, %v1627
    %v1642 = vadd.f32 %v1635, %v1628
    %v1643 = vadd.f32 %v1636, %v1629
    %v1644 = vadd.f32 %v1637, %v1630
    %v1645 = vadd.f32 %v1638, %v1631
    %v1646 = vsub.f32 %v1639, %v1602
    %v1647 = vsub.f32 %v1640, %v1603
    %v1648 = vsub.f32 %v1641, %v1604
    %v1649 = vsub.f32 %v1642, %v1605
    %v1650 = vsub.f32 %v1643, %v1606
    %v1651 = vsub.f32 %v1644, %v1607
    %v1652 = vsub.f32 %v1645, %v1608
    %vm1653 = vcmp.gt.f32.partialorder %v1646, 1.0
    %vm1654 = vcmp.gt.f32.partialorder %v1647, 1.0
    %vm1655 = vcmp.gt.f32.partialorder %v1648, 1.0
    %vm1656 = vcmp.gt.f32.partialorder %v1649, 1.0
    %vm1657 = vcmp.gt.f32.partialorder %v1650, 1.0
    %vm1658 = vcmp.gt.f32.partialorder %v1651, 1.0
    %vm1659 = vcmp.gt.f32.partialorder %v1652, 1.0
    %v1660 = vsel %vm1653, 1, 0
    %v1661 = vsel %vm1654, 1, 0
    %v1662 = vsel %vm1655, 1, 0
    %v1663 = vsel %vm1656, 1, 0
    %v1664 = vsel %vm1657, 1, 0
    %v1665 = vsel %vm1658, 1, 0
    %v1666 = vsel %vm1659, 1, 0
    %v1667 = vcvt.s32.f32 %v1660
    %v1668 = vcvt.s32.f32 %v1661
    %v1669 = vcvt.s32.f32 %v1662
    %v1670 = vcvt.s32.f32 %v1663
    %v1671 = vcvt.s32.f32 %v1664
    %v1672 = vcvt.s32.f32 %v1665
    %v1673 = vcvt.s32.f32 %v1666
    %s1674 = scalar_lea.vmem [#allocation12], 448
    %1675 = vst [vmem:[%s1674] sm:$0xff] %v1667
    %1676 = vst [vmem:[%s1674 + $0x8] sm:$0xff] %v1668
    %1677 = vst [vmem:[%s1674 + $0x10] sm:$0xff] %v1669
    %1678 = vst [vmem:[%s1674 + $0x18] sm:$0xff] %v1670
    %1679 = vst [vmem:[%s1674 + $0x20] sm:$0xff] %v1671
    %1680 = vst [vmem:[%s1674 + $0x28] sm:$0xff] %v1672
    %1681 = vst [vmem:[%s1674 + $0x30] sm:$0xff] %v1673
    %s1682 = scalar_lea.vmem [#allocation13], 448
    %1683 = vst [vmem:[%s1682] sm:$0xff] %v1646
    %1684 = vst [vmem:[%s1682 + $0x8] sm:$0xff] %v1647
    %1685 = vst [vmem:[%s1682 + $0x10] sm:$0xff] %v1648
    %1686 = vst [vmem:[%s1682 + $0x18] sm:$0xff] %v1649
    %1687 = vst [vmem:[%s1682 + $0x20] sm:$0xff] %v1650
    %1688 = vst [vmem:[%s1682 + $0x28] sm:$0xff] %v1651
    %1689 = vst [vmem:[%s1682 + $0x30] sm:$0xff] %v1652
    %v1690 = vld [vmem:[#allocation3 + $0x1f8] sm:$0xff]
    %v1691 = vld [vmem:[#allocation3 + $0x200] sm:$0xff]
    %v1692 = vld [vmem:[#allocation3 + $0x208] sm:$0xff]
    %v1693 = vld [vmem:[#allocation3 + $0x210] sm:$0xff]
    %v1694 = vld [vmem:[#allocation3 + $0x218] sm:$0xff]
    %v1695 = vld [vmem:[#allocation3 + $0x220] sm:$0xff]
    %v1696 = vld [vmem:[#allocation3 + $0x228] sm:$0xff]
    %v1697 = vmul.f32 %v1646, 0.9
    %v1698 = vmul.f32 %v1647, 0.9
    %v1699 = vmul.f32 %v1648, 0.9
    %v1700 = vmul.f32 %v1649, 0.9
    %v1701 = vmul.f32 %v1650, 0.9
    %v1702 = vmul.f32 %v1651, 0.9
    %v1703 = vmul.f32 %v1652, 0.9
    %v1704 = vadd.f32 %v1697, %v1690
    %v1705 = vadd.f32 %v1698, %v1691
    %v1706 = vadd.f32 %v1699, %v1692
    %v1707 = vadd.f32 %v1700, %v1693
    %v1708 = vadd.f32 %v1701, %v1694
    %v1709 = vadd.f32 %v1702, %v1695
    %v1710 = vadd.f32 %v1703, %v1696
    %v1711 = vsub.f32 %v1704, %v1667
    %v1712 = vsub.f32 %v1705, %v1668
    %v1713 = vsub.f32 %v1706, %v1669
    %v1714 = vsub.f32 %v1707, %v1670
    %v1715 = vsub.f32 %v1708, %v1671
    %v1716 = vsub.f32 %v1709, %v1672
    %v1717 = vsub.f32 %v1710, %v1673
    %vm1718 = vcmp.gt.f32.partialorder %v1711, 1.0
    %vm1719 = vcmp.gt.f32.partialorder %v1712, 1.0
    %vm1720 = vcmp.gt.f32.partialorder %v1713, 1.0
    %vm1721 = vcmp.gt.f32.partialorder %v1714, 1.0
    %vm1722 = vcmp.gt.f32.partialorder %v1715, 1.0
    %vm1723 = vcmp.gt.f32.partialorder %v1716, 1.0
    %vm1724 = vcmp.gt.f32.partialorder %v1717, 1.0
    %v1725 = vsel %vm1718, 1, 0
    %v1726 = vsel %vm1719, 1, 0
    %v1727 = vsel %vm1720, 1, 0
    %v1728 = vsel %vm1721, 1, 0
    %v1729 = vsel %vm1722, 1, 0
    %v1730 = vsel %vm1723, 1, 0
    %v1731 = vsel %vm1724, 1, 0
    %v1732 = vcvt.s32.f32 %v1725
    %v1733 = vcvt.s32.f32 %v1726
    %v1734 = vcvt.s32.f32 %v1727
    %v1735 = vcvt.s32.f32 %v1728
    %v1736 = vcvt.s32.f32 %v1729
    %v1737 = vcvt.s32.f32 %v1730
    %v1738 = vcvt.s32.f32 %v1731
    %s1739 = scalar_lea.vmem [#allocation12], 504
    %1740 = vst [vmem:[%s1739] sm:$0xff] %v1732
    %1741 = vst [vmem:[%s1739 + $0x8] sm:$0xff] %v1733
    %1742 = vst [vmem:[%s1739 + $0x10] sm:$0xff] %v1734
    %1743 = vst [vmem:[%s1739 + $0x18] sm:$0xff] %v1735
    %1744 = vst [vmem:[%s1739 + $0x20] sm:$0xff] %v1736
    %1745 = vst [vmem:[%s1739 + $0x28] sm:$0xff] %v1737
    %1746 = vst [vmem:[%s1739 + $0x30] sm:$0xff] %v1738
    %s1747 = scalar_lea.vmem [#allocation13], 504
    %1748 = vst [vmem:[%s1747] sm:$0xff] %v1711
    %1749 = vst [vmem:[%s1747 + $0x8] sm:$0xff] %v1712
    %1750 = vst [vmem:[%s1747 + $0x10] sm:$0xff] %v1713
    %1751 = vst [vmem:[%s1747 + $0x18] sm:$0xff] %v1714
    %1752 = vst [vmem:[%s1747 + $0x20] sm:$0xff] %v1715
    %1753 = vst [vmem:[%s1747 + $0x28] sm:$0xff] %v1716
    %1754 = vst [vmem:[%s1747 + $0x30] sm:$0xff] %v1717
    %v1755 = vld [vmem:[#allocation3 + $0x230] sm:$0xff]
    %v1756 = vld [vmem:[#allocation3 + $0x238] sm:$0xff]
    %v1757 = vld [vmem:[#allocation3 + $0x240] sm:$0xff]
    %v1758 = vld [vmem:[#allocation3 + $0x248] sm:$0xff]
    %v1759 = vld [vmem:[#allocation3 + $0x250] sm:$0xff]
    %v1760 = vld [vmem:[#allocation3 + $0x258] sm:$0xff]
    %v1761 = vld [vmem:[#allocation3 + $0x260] sm:$0xff]
    %v1762 = vmul.f32 %v1711, 0.9
    %v1763 = vmul.f32 %v1712, 0.9
    %v1764 = vmul.f32 %v1713, 0.9
    %v1765 = vmul.f32 %v1714, 0.9
    %v1766 = vmul.f32 %v1715, 0.9
    %v1767 = vmul.f32 %v1716, 0.9
    %v1768 = vmul.f32 %v1717, 0.9
    %v1769 = vadd.f32 %v1762, %v1755
    %v1770 = vadd.f32 %v1763, %v1756
    %v1771 = vadd.f32 %v1764, %v1757
    %v1772 = vadd.f32 %v1765, %v1758
    %v1773 = vadd.f32 %v1766, %v1759
    %v1774 = vadd.f32 %v1767, %v1760
    %v1775 = vadd.f32 %v1768, %v1761
    %v1776 = vsub.f32 %v1769, %v1732
    %v1777 = vsub.f32 %v1770, %v1733
    %v1778 = vsub.f32 %v1771, %v1734
    %v1779 = vsub.f32 %v1772, %v1735
    %v1780 = vsub.f32 %v1773, %v1736
    %v1781 = vsub.f32 %v1774, %v1737
    %v1782 = vsub.f32 %v1775, %v1738
    %vm1783 = vcmp.gt.f32.partialorder %v1776, 1.0
    %vm1784 = vcmp.gt.f32.partialorder %v1777, 1.0
    %vm1785 = vcmp.gt.f32.partialorder %v1778, 1.0
    %vm1786 = vcmp.gt.f32.partialorder %v1779, 1.0
    %vm1787 = vcmp.gt.f32.partialorder %v1780, 1.0
    %vm1788 = vcmp.gt.f32.partialorder %v1781, 1.0
    %vm1789 = vcmp.gt.f32.partialorder %v1782, 1.0
    %v1790 = vsel %vm1783, 1, 0
    %v1791 = vsel %vm1784, 1, 0
    %v1792 = vsel %vm1785, 1, 0
    %v1793 = vsel %vm1786, 1, 0
    %v1794 = vsel %vm1787, 1, 0
    %v1795 = vsel %vm1788, 1, 0
    %v1796 = vsel %vm1789, 1, 0
    %v1797 = vcvt.s32.f32 %v1790
    %v1798 = vcvt.s32.f32 %v1791
    %v1799 = vcvt.s32.f32 %v1792
    %v1800 = vcvt.s32.f32 %v1793
    %v1801 = vcvt.s32.f32 %v1794
    %v1802 = vcvt.s32.f32 %v1795
    %v1803 = vcvt.s32.f32 %v1796
    %s1804 = scalar_lea.vmem [#allocation12], 560
    %1805 = vst [vmem:[%s1804] sm:$0xff] %v1797
    %1806 = vst [vmem:[%s1804 + $0x8] sm:$0xff] %v1798
    %1807 = vst [vmem:[%s1804 + $0x10] sm:$0xff] %v1799
    %1808 = vst [vmem:[%s1804 + $0x18] sm:$0xff] %v1800
    %1809 = vst [vmem:[%s1804 + $0x20] sm:$0xff] %v1801
    %1810 = vst [vmem:[%s1804 + $0x28] sm:$0xff] %v1802
    %1811 = vst [vmem:[%s1804 + $0x30] sm:$0xff] %v1803
    %s1812 = scalar_lea.vmem [#allocation13], 560
    %1813 = vst [vmem:[%s1812] sm:$0xff] %v1776
    %1814 = vst [vmem:[%s1812 + $0x8] sm:$0xff] %v1777
    %1815 = vst [vmem:[%s1812 + $0x10] sm:$0xff] %v1778
    %1816 = vst [vmem:[%s1812 + $0x18] sm:$0xff] %v1779
    %1817 = vst [vmem:[%s1812 + $0x20] sm:$0xff] %v1780
    %1818 = vst [vmem:[%s1812 + $0x28] sm:$0xff] %v1781
    %1819 = vst [vmem:[%s1812 + $0x30] sm:$0xff] %v1782
    %v1820 = vld [vmem:[#allocation3 + $0x268] sm:$0xff]
    %v1821 = vld [vmem:[#allocation3 + $0x270] sm:$0xff]
    %v1822 = vld [vmem:[#allocation3 + $0x278] sm:$0xff]
    %v1823 = vld [vmem:[#allocation3 + $0x280] sm:$0xff]
    %v1824 = vld [vmem:[#allocation3 + $0x288] sm:$0xff]
    %v1825 = vld [vmem:[#allocation3 + $0x290] sm:$0xff]
    %v1826 = vld [vmem:[#allocation3 + $0x298] sm:$0xff]
    %v1827 = vmul.f32 %v1776, 0.9
    %v1828 = vmul.f32 %v1777, 0.9
    %v1829 = vmul.f32 %v1778, 0.9
    %v1830 = vmul.f32 %v1779, 0.9
    %v1831 = vmul.f32 %v1780, 0.9
    %v1832 = vmul.f32 %v1781, 0.9
    %v1833 = vmul.f32 %v1782, 0.9
    %v1834 = vadd.f32 %v1827, %v1820
    %v1835 = vadd.f32 %v1828, %v1821
    %v1836 = vadd.f32 %v1829, %v1822
    %v1837 = vadd.f32 %v1830, %v1823
    %v1838 = vadd.f32 %v1831, %v1824
    %v1839 = vadd.f32 %v1832, %v1825
    %v1840 = vadd.f32 %v1833, %v1826
    %v1841 = vsub.f32 %v1834, %v1797
    %v1842 = vsub.f32 %v1835, %v1798
    %v1843 = vsub.f32 %v1836, %v1799
    %v1844 = vsub.f32 %v1837, %v1800
    %v1845 = vsub.f32 %v1838, %v1801
    %v1846 = vsub.f32 %v1839, %v1802
    %v1847 = vsub.f32 %v1840, %v1803
    %vm1848 = vcmp.gt.f32.partialorder %v1841, 1.0
    %vm1849 = vcmp.gt.f32.partialorder %v1842, 1.0
    %vm1850 = vcmp.gt.f32.partialorder %v1843, 1.0
    %vm1851 = vcmp.gt.f32.partialorder %v1844, 1.0
    %vm1852 = vcmp.gt.f32.partialorder %v1845, 1.0
    %vm1853 = vcmp.gt.f32.partialorder %v1846, 1.0
    %vm1854 = vcmp.gt.f32.partialorder %v1847, 1.0
    %v1855 = vsel %vm1848, 1, 0
    %v1856 = vsel %vm1849, 1, 0
    %v1857 = vsel %vm1850, 1, 0
    %v1858 = vsel %vm1851, 1, 0
    %v1859 = vsel %vm1852, 1, 0
    %v1860 = vsel %vm1853, 1, 0
    %v1861 = vsel %vm1854, 1, 0
    %v1862 = vcvt.s32.f32 %v1855
    %v1863 = vcvt.s32.f32 %v1856
    %v1864 = vcvt.s32.f32 %v1857
    %v1865 = vcvt.s32.f32 %v1858
    %v1866 = vcvt.s32.f32 %v1859
    %v1867 = vcvt.s32.f32 %v1860
    %v1868 = vcvt.s32.f32 %v1861
    %s1869 = scalar_lea.vmem [#allocation12], 616
    %1870 = vst [vmem:[%s1869] sm:$0xff] %v1862
    %1871 = vst [vmem:[%s1869 + $0x8] sm:$0xff] %v1863
    %1872 = vst [vmem:[%s1869 + $0x10] sm:$0xff] %v1864
    %1873 = vst [vmem:[%s1869 + $0x18] sm:$0xff] %v1865
    %1874 = vst [vmem:[%s1869 + $0x20] sm:$0xff] %v1866
    %1875 = vst [vmem:[%s1869 + $0x28] sm:$0xff] %v1867
    %1876 = vst [vmem:[%s1869 + $0x30] sm:$0xff] %v1868
    %s1877 = scalar_lea.vmem [#allocation13], 616
    %1878 = vst [vmem:[%s1877] sm:$0xff] %v1841
    %1879 = vst [vmem:[%s1877 + $0x8] sm:$0xff] %v1842
    %1880 = vst [vmem:[%s1877 + $0x10] sm:$0xff] %v1843
    %1881 = vst [vmem:[%s1877 + $0x18] sm:$0xff] %v1844
    %1882 = vst [vmem:[%s1877 + $0x20] sm:$0xff] %v1845
    %1883 = vst [vmem:[%s1877 + $0x28] sm:$0xff] %v1846
    %1884 = vst [vmem:[%s1877 + $0x30] sm:$0xff] %v1847
    %v1885 = vld [vmem:[#allocation3 + $0x2a0] sm:$0xff]
    %v1886 = vld [vmem:[#allocation3 + $0x2a8] sm:$0xff]
    %v1887 = vld [vmem:[#allocation3 + $0x2b0] sm:$0xff]
    %v1888 = vld [vmem:[#allocation3 + $0x2b8] sm:$0xff]
    %v1889 = vld [vmem:[#allocation3 + $0x2c0] sm:$0xff]
    %v1890 = vld [vmem:[#allocation3 + $0x2c8] sm:$0xff]
    %v1891 = vld [vmem:[#allocation3 + $0x2d0] sm:$0xff]
    %v1892 = vmul.f32 %v1841, 0.9
    %v1893 = vmul.f32 %v1842, 0.9
    %v1894 = vmul.f32 %v1843, 0.9
    %v1895 = vmul.f32 %v1844, 0.9
    %v1896 = vmul.f32 %v1845, 0.9
    %v1897 = vmul.f32 %v1846, 0.9
    %v1898 = vmul.f32 %v1847, 0.9
    %v1899 = vadd.f32 %v1892, %v1885
    %v1900 = vadd.f32 %v1893, %v1886
    %v1901 = vadd.f32 %v1894, %v1887
    %v1902 = vadd.f32 %v1895, %v1888
    %v1903 = vadd.f32 %v1896, %v1889
    %v1904 = vadd.f32 %v1897, %v1890
    %v1905 = vadd.f32 %v1898, %v1891
    %v1906 = vsub.f32 %v1899, %v1862
    %v1907 = vsub.f32 %v1900, %v1863
    %v1908 = vsub.f32 %v1901, %v1864
    %v1909 = vsub.f32 %v1902, %v1865
    %v1910 = vsub.f32 %v1903, %v1866
    %v1911 = vsub.f32 %v1904, %v1867
    %v1912 = vsub.f32 %v1905, %v1868
    %vm1913 = vcmp.gt.f32.partialorder %v1906, 1.0
    %vm1914 = vcmp.gt.f32.partialorder %v1907, 1.0
    %vm1915 = vcmp.gt.f32.partialorder %v1908, 1.0
    %vm1916 = vcmp.gt.f32.partialorder %v1909, 1.0
    %vm1917 = vcmp.gt.f32.partialorder %v1910, 1.0
    %vm1918 = vcmp.gt.f32.partialorder %v1911, 1.0
    %vm1919 = vcmp.gt.f32.partialorder %v1912, 1.0
    %v1920 = vsel %vm1913, 1, 0
    %v1921 = vsel %vm1914, 1, 0
    %v1922 = vsel %vm1915, 1, 0
    %v1923 = vsel %vm1916, 1, 0
    %v1924 = vsel %vm1917, 1, 0
    %v1925 = vsel %vm1918, 1, 0
    %v1926 = vsel %vm1919, 1, 0
    %v1927 = vcvt.s32.f32 %v1920
    %v1928 = vcvt.s32.f32 %v1921
    %v1929 = vcvt.s32.f32 %v1922
    %v1930 = vcvt.s32.f32 %v1923
    %v1931 = vcvt.s32.f32 %v1924
    %v1932 = vcvt.s32.f32 %v1925
    %v1933 = vcvt.s32.f32 %v1926
    %s1934 = scalar_lea.vmem [#allocation12], 672
    %1935 = vst [vmem:[%s1934] sm:$0xff] %v1927
    %1936 = vst [vmem:[%s1934 + $0x8] sm:$0xff] %v1928
    %1937 = vst [vmem:[%s1934 + $0x10] sm:$0xff] %v1929
    %1938 = vst [vmem:[%s1934 + $0x18] sm:$0xff] %v1930
    %1939 = vst [vmem:[%s1934 + $0x20] sm:$0xff] %v1931
    %1940 = vst [vmem:[%s1934 + $0x28] sm:$0xff] %v1932
    %1941 = vst [vmem:[%s1934 + $0x30] sm:$0xff] %v1933
    %s1942 = scalar_lea.vmem [#allocation13], 672
    %1943 = vst [vmem:[%s1942] sm:$0xff] %v1906
    %1944 = vst [vmem:[%s1942 + $0x8] sm:$0xff] %v1907
    %1945 = vst [vmem:[%s1942 + $0x10] sm:$0xff] %v1908
    %1946 = vst [vmem:[%s1942 + $0x18] sm:$0xff] %v1909
    %1947 = vst [vmem:[%s1942 + $0x20] sm:$0xff] %v1910
    %1948 = vst [vmem:[%s1942 + $0x28] sm:$0xff] %v1911
    %1949 = vst [vmem:[%s1942 + $0x30] sm:$0xff] %v1912
    %v1950 = vld [vmem:[#allocation3 + $0x2d8] sm:$0xff]
    %v1951 = vld [vmem:[#allocation3 + $0x2e0] sm:$0xff]
    %v1952 = vld [vmem:[#allocation3 + $0x2e8] sm:$0xff]
    %v1953 = vld [vmem:[#allocation3 + $0x2f0] sm:$0xff]
    %v1954 = vld [vmem:[#allocation3 + $0x2f8] sm:$0xff]
    %v1955 = vld [vmem:[#allocation3 + $0x300] sm:$0xff]
    %v1956 = vld [vmem:[#allocation3 + $0x308] sm:$0xff]
    %v1957 = vmul.f32 %v1906, 0.9
    %v1958 = vmul.f32 %v1907, 0.9
    %v1959 = vmul.f32 %v1908, 0.9
    %v1960 = vmul.f32 %v1909, 0.9
    %v1961 = vmul.f32 %v1910, 0.9
    %v1962 = vmul.f32 %v1911, 0.9
    %v1963 = vmul.f32 %v1912, 0.9
    %v1964 = vadd.f32 %v1957, %v1950
    %v1965 = vadd.f32 %v1958, %v1951
    %v1966 = vadd.f32 %v1959, %v1952
    %v1967 = vadd.f32 %v1960, %v1953
    %v1968 = vadd.f32 %v1961, %v1954
    %v1969 = vadd.f32 %v1962, %v1955
    %v1970 = vadd.f32 %v1963, %v1956
    %v1971 = vsub.f32 %v1964, %v1927
    %v1972 = vsub.f32 %v1965, %v1928
    %v1973 = vsub.f32 %v1966, %v1929
    %v1974 = vsub.f32 %v1967, %v1930
    %v1975 = vsub.f32 %v1968, %v1931
    %v1976 = vsub.f32 %v1969, %v1932
    %v1977 = vsub.f32 %v1970, %v1933
    %vm1978 = vcmp.gt.f32.partialorder %v1971, 1.0
    %vm1979 = vcmp.gt.f32.partialorder %v1972, 1.0
    %vm1980 = vcmp.gt.f32.partialorder %v1973, 1.0
    %vm1981 = vcmp.gt.f32.partialorder %v1974, 1.0
    %vm1982 = vcmp.gt.f32.partialorder %v1975, 1.0
    %vm1983 = vcmp.gt.f32.partialorder %v1976, 1.0
    %vm1984 = vcmp.gt.f32.partialorder %v1977, 1.0
    %v1985 = vsel %vm1978, 1, 0
    %v1986 = vsel %vm1979, 1, 0
    %v1987 = vsel %vm1980, 1, 0
    %v1988 = vsel %vm1981, 1, 0
    %v1989 = vsel %vm1982, 1, 0
    %v1990 = vsel %vm1983, 1, 0
    %v1991 = vsel %vm1984, 1, 0
    %v1992 = vcvt.s32.f32 %v1985
    %v1993 = vcvt.s32.f32 %v1986
    %v1994 = vcvt.s32.f32 %v1987
    %v1995 = vcvt.s32.f32 %v1988
    %v1996 = vcvt.s32.f32 %v1989
    %v1997 = vcvt.s32.f32 %v1990
    %v1998 = vcvt.s32.f32 %v1991
    %s1999 = scalar_lea.vmem [#allocation12], 728
    %2000 = vst [vmem:[%s1999] sm:$0xff] %v1992
    %2001 = vst [vmem:[%s1999 + $0x8] sm:$0xff] %v1993
    %2002 = vst [vmem:[%s1999 + $0x10] sm:$0xff] %v1994
    %2003 = vst [vmem:[%s1999 + $0x18] sm:$0xff] %v1995
    %2004 = vst [vmem:[%s1999 + $0x20] sm:$0xff] %v1996
    %2005 = vst [vmem:[%s1999 + $0x28] sm:$0xff] %v1997
    %2006 = vst [vmem:[%s1999 + $0x30] sm:$0xff] %v1998
    %s2007 = scalar_lea.vmem [#allocation13], 728
    %2008 = vst [vmem:[%s2007] sm:$0xff] %v1971
    %2009 = vst [vmem:[%s2007 + $0x8] sm:$0xff] %v1972
    %2010 = vst [vmem:[%s2007 + $0x10] sm:$0xff] %v1973
    %2011 = vst [vmem:[%s2007 + $0x18] sm:$0xff] %v1974
    %2012 = vst [vmem:[%s2007 + $0x20] sm:$0xff] %v1975
    %2013 = vst [vmem:[%s2007 + $0x28] sm:$0xff] %v1976
    %2014 = vst [vmem:[%s2007 + $0x30] sm:$0xff] %v1977
    %v2015 = vld [vmem:[#allocation3 + $0x310] sm:$0xff]
    %v2016 = vld [vmem:[#allocation3 + $0x318] sm:$0xff]
    %v2017 = vld [vmem:[#allocation3 + $0x320] sm:$0xff]
    %v2018 = vld [vmem:[#allocation3 + $0x328] sm:$0xff]
    %v2019 = vld [vmem:[#allocation3 + $0x330] sm:$0xff]
    %v2020 = vld [vmem:[#allocation3 + $0x338] sm:$0xff]
    %v2021 = vld [vmem:[#allocation3 + $0x340] sm:$0xff]
    %v2022 = vmul.f32 %v1971, 0.9
    %v2023 = vmul.f32 %v1972, 0.9
    %v2024 = vmul.f32 %v1973, 0.9
    %v2025 = vmul.f32 %v1974, 0.9
    %v2026 = vmul.f32 %v1975, 0.9
    %v2027 = vmul.f32 %v1976, 0.9
    %v2028 = vmul.f32 %v1977, 0.9
    %v2029 = vadd.f32 %v2022, %v2015
    %v2030 = vadd.f32 %v2023, %v2016
    %v2031 = vadd.f32 %v2024, %v2017
    %v2032 = vadd.f32 %v2025, %v2018
    %v2033 = vadd.f32 %v2026, %v2019
    %v2034 = vadd.f32 %v2027, %v2020
    %v2035 = vadd.f32 %v2028, %v2021
    %v2036 = vsub.f32 %v2029, %v1992
    %v2037 = vsub.f32 %v2030, %v1993
    %v2038 = vsub.f32 %v2031, %v1994
    %v2039 = vsub.f32 %v2032, %v1995
    %v2040 = vsub.f32 %v2033, %v1996
    %v2041 = vsub.f32 %v2034, %v1997
    %v2042 = vsub.f32 %v2035, %v1998
    %vm2043 = vcmp.gt.f32.partialorder %v2036, 1.0
    %vm2044 = vcmp.gt.f32.partialorder %v2037, 1.0
    %vm2045 = vcmp.gt.f32.partialorder %v2038, 1.0
    %vm2046 = vcmp.gt.f32.partialorder %v2039, 1.0
    %vm2047 = vcmp.gt.f32.partialorder %v2040, 1.0
    %vm2048 = vcmp.gt.f32.partialorder %v2041, 1.0
    %vm2049 = vcmp.gt.f32.partialorder %v2042, 1.0
    %v2050 = vsel %vm2043, 1, 0
    %v2051 = vsel %vm2044, 1, 0
    %v2052 = vsel %vm2045, 1, 0
    %v2053 = vsel %vm2046, 1, 0
    %v2054 = vsel %vm2047, 1, 0
    %v2055 = vsel %vm2048, 1, 0
    %v2056 = vsel %vm2049, 1, 0
    %v2057 = vcvt.s32.f32 %v2050
    %v2058 = vcvt.s32.f32 %v2051
    %v2059 = vcvt.s32.f32 %v2052
    %v2060 = vcvt.s32.f32 %v2053
    %v2061 = vcvt.s32.f32 %v2054
    %v2062 = vcvt.s32.f32 %v2055
    %v2063 = vcvt.s32.f32 %v2056
    %s2064 = scalar_lea.vmem [#allocation12], 784
    %2065 = vst [vmem:[%s2064] sm:$0xff] %v2057
    %2066 = vst [vmem:[%s2064 + $0x8] sm:$0xff] %v2058
    %2067 = vst [vmem:[%s2064 + $0x10] sm:$0xff] %v2059
    %2068 = vst [vmem:[%s2064 + $0x18] sm:$0xff] %v2060
    %2069 = vst [vmem:[%s2064 + $0x20] sm:$0xff] %v2061
    %2070 = vst [vmem:[%s2064 + $0x28] sm:$0xff] %v2062
    %2071 = vst [vmem:[%s2064 + $0x30] sm:$0xff] %v2063
    %s2072 = scalar_lea.vmem [#allocation13], 784
    %2073 = vst [vmem:[%s2072] sm:$0xff] %v2036
    %2074 = vst [vmem:[%s2072 + $0x8] sm:$0xff] %v2037
    %2075 = vst [vmem:[%s2072 + $0x10] sm:$0xff] %v2038
    %2076 = vst [vmem:[%s2072 + $0x18] sm:$0xff] %v2039
    %2077 = vst [vmem:[%s2072 + $0x20] sm:$0xff] %v2040
    %2078 = vst [vmem:[%s2072 + $0x28] sm:$0xff] %v2041
    %2079 = vst [vmem:[%s2072 + $0x30] sm:$0xff] %v2042
    // Predicated region
    $region38: #{tpu_custom_call.1} parent=1 // pred_check
      _
    $region39: #{tpu_custom_call.1} parent=1 // pred_check_branch
      %2081 = sbr.rel (0) target = $region41
    $region40: #{tpu_custom_call.1} parent=1 // pred_region
      %2083 = vsyncadd [#allocation6], 0
      %s2084 = sshll.u32 [#allocation12], 4
      %s2085 = int_to_ptr.vmem [resolvable:$true] %s2084
      %s2086 = sshll.u32 %s5, 4
      %s2087 = int_to_ptr.hbm [resolvable:$true] %s2086
      %2092 = dma.vmem_to_hbm [thread:$0]  %s2085, 13440, %s2087, [#allocation6], 896, 896, 56
    $region41: #{tpu_custom_call.1} parent=1 // pred_fallthru
      _
    // Predicated region
    $region42: #{tpu_custom_call.1} parent=1 // pred_check
      _
    $region43: #{tpu_custom_call.1} parent=1 // pred_check_branch
      %2094 = sbr.rel (0) target = $region45
    $region44: #{tpu_custom_call.1} parent=1 // pred_region
      %2096 = vsyncadd [#allocation14], 0
      %s2097 = sshll.u32 [#allocation13], 4
      %s2098 = int_to_ptr.vmem [resolvable:$true] %s2097
      %s2099 = sshll.u32 %s6, 4
      %s2100 = int_to_ptr.hbm [resolvable:$true] %s2099
      %2105 = dma.vmem_to_hbm [thread:$0]  %s2098, 13440, %s2100, [#allocation14], 896, 896, 56
    $region45: #{tpu_custom_call.1} parent=1 // pred_fallthru
      _
    // Predicated region
    $region46: #{tpu_custom_call.1} parent=1 // pred_check
      _
    $region47: #{tpu_custom_call.1} parent=1 // pred_check_branch
      %2107 = sbr.rel (0) target = $region49
    $region48: #{tpu_custom_call.1} parent=1 // pred_region
      %2109 = dma.done [#allocation6], 13440
    $region49: #{tpu_custom_call.1} parent=1 // pred_fallthru
      _
    // Predicated region
    $region50: #{tpu_custom_call.1} parent=1 // pred_check
      _
    $region51: #{tpu_custom_call.1} parent=1 // pred_check_branch
      %2111 = sbr.rel (0) target = $region53
    $region52: #{tpu_custom_call.1} parent=1 // pred_region
      %2113 = dma.done [#allocation14], 13440
    $region53: #{tpu_custom_call.1} parent=1 // pred_fallthru
      _
    %2114 = vsyncpa [#allocation5], 1
    %2115 = vsyncpa [#allocation8], 1
    %2116 = vsyncpa [#allocation11], 1
    %2117 = vsyncpa [#allocation6], 1
    %2118 = vsyncpa [#allocation14], 1

</llo_original>
